<compile_context>
chip_gen: v5e
topology: v5e:2x2
jax: 0.10.0
libtpu: 0.0.40
codegen_flags: <defaults>
</compile_context>

<pallas_src>
import numpy as np
import jax
import jax.numpy as jnp
from jax.experimental import pallas as pl
from jax.experimental.pallas import tpu as pltpu

_BN_EPS = 1e-5
_BN_SCALE = float(1.0 / (1.0 + _BN_EPS) ** 0.5)


# ----------------------- constant spatial gather matrices (numpy) -----------------------

def _dw_shift_gather(h, w):
    """(9*h*w, h*w) one-hot rows: row k*h*w + r selects neighbour (dy,dx) of flat pos r,
    k = (dy+1)*3 + (dx+1); all-zero row when the neighbour is outside (== zero padding)."""
    m = h * w
    mat = np.zeros((9 * m, m), np.float32)
    k = 0
    for dy in (-1, 0, 1):
        for dx in (-1, 0, 1):
            for hh in range(h):
                for ww in range(w):
                    y2, x2 = hh + dy, ww + dx
                    if 0 <= y2 < h and 0 <= x2 < w:
                        mat[k * m + hh * w + ww, y2 * w + x2] = 1.0
            k += 1
    return jnp.asarray(mat)


def _pool3x3s2_gather(h, w):
    """ceil-mode 3x3 / stride-2 max-pool as 9 stacked one-hot row-gather matrices.
    Valid because pooled values are >= 0 (post-ReLU), so an all-zero row == excluded member."""
    ho = -(-(h - 3) // 2) + 1
    wo = -(-(w - 3) // 2) + 1
    if (ho - 1) * 2 >= h:
        ho -= 1
    if (wo - 1) * 2 >= w:
        wo -= 1
    mo = ho * wo
    mat = np.zeros((9 * mo, h * w), np.float32)
    for a in range(3):
        for b in range(3):
            k = a * 3 + b
            for i in range(ho):
                for j in range(wo):
                    yy, xx = 2 * i + a, 2 * j + b
                    if yy < h and xx < w:
                        mat[k * mo + i * wo + j, yy * w + xx] = 1.0
    return ho, wo, jnp.asarray(mat)


# ------------------------------------ kernel body ------------------------------------

def _fire3(x, wsq, bsq, wexp, bexp, wdw, bdw, wpost, bpost, gdw):
    """Fire3 on flattened (M, C) rows.  squeeze -> merged [expand1x1 | expand3x3-pre] 1x1 ->
    depthwise 3x3 (one-hot gather matmul + per-channel FMA, e3 half only) -> post 1x1 ->
    concat -> optional residual (inplanes == outplanes)."""
    m, cin = x.shape
    e3 = wpost.shape[0]
    e1 = wexp.shape[1] - e3
    sq = jnp.maximum(jnp.dot(x.astype(jnp.bfloat16), wsq[...],
                             preferred_element_type=jnp.float32) + bsq[...], 0.0)
    ex = jnp.maximum(jnp.dot(sq.astype(jnp.bfloat16), wexp[...],
                             preferred_element_type=jnp.float32) + bexp[...], 0.0)
    ex1 = ex[:, :e1]
    ex3 = ex[:, e1:]
    # depthwise 3x3 (pad=1): 9 spatially-shifted copies via one one-hot gather matmul (f32,
    # exact), then per-channel multiply-accumulate on the VPU.
    taps = jnp.dot(gdw[...], ex3, preferred_element_type=jnp.float32)      # (9*m, e3)
    wdw_all = wdw[...]                                                     # (9, 1, e3)
    acc = taps[0:m] * wdw_all[0]
    for k in range(1, 9):
        acc = acc + taps[k * m:(k + 1) * m] * wdw_all[k]
    dwv = jnp.maximum(acc + bdw[...], 0.0)
    post = jnp.maximum(jnp.dot(dwv.astype(jnp.bfloat16), wpost[...],
                               preferred_element_type=jnp.float32) + bpost[...], 0.0)
    out = jnp.concatenate([ex1, post], axis=-1)
    if cin == e1 + e3:                      # inplanes == outplanes -> residual add
        out = out + x
    return out


def _squeezenet_kernel(*refs):
    (patches_ref, w1_ref, b1_ref, g8_ref, g4_ref, p2_ref) = refs[:6]
    o_ref = refs[-1]
    fire_refs = [refs[6 + 8 * i: 6 + 8 * (i + 1)] for i in range(4)]

    # ---- conv1: im2col matmul + bias + ReLU (rows pre-grouped by 2x2 pool phase) ----
    x = patches_ref[0]                                                     # (4*m1, 9*cin) bf16
    y1 = jnp.maximum(jnp.dot(x, w1_ref[...],
                             preferred_element_type=jnp.float32) + b1_ref[...], 0.0)
    # ---- maxpool 2x2 / stride 2 (ceil): elementwise max of the 4 phase slabs ----
    m1 = y1.shape[0] // 4
    p1 = jnp.maximum(jnp.maximum(y1[0:m1], y1[m1:2 * m1]),
                     jnp.maximum(y1[2 * m1:3 * m1], y1[3 * m1:4 * m1]))    # (m1, 32)

    # ---- Fire3(32,16,64,64) + Fire3(128,16,64,64) (residual on the second) ----
    f1 = _fire3(p1, *fire_refs[0], g8_ref)
    f2 = _fire3(f1, *fire_refs[1], g8_ref)

    # ---- maxpool 3x3 / stride 2 (ceil) via one-hot gather matmul (values >= 0) ----
    g = jnp.dot(p2_ref[...], f2, preferred_element_type=jnp.float32)       # (9*m2, 128)
    m2 = g.shape[0] // 9
    p2 = g[0:m2]
    for k in range(1, 9):
        p2 = jnp.maximum(p2, g[k * m2:(k + 1) * m2])

    # ---- Fire3(128,32,128,128) + Fire3(256,64,128,128) (residual on the second) ----
    f3 = _fire3(p2, *fire_refs[2], g4_ref)
    f4 = _fire3(f3, *fire_refs[3], g4_ref)
    o_ref[0] = f4


# ------------------------------------ parameters ------------------------------------

def _kaiming_uniform(key, shape, fan_in):
    bound = (6.0 / fan_in) ** 0.5
    return jax.random.uniform(key, shape, jnp.float32, -bound, bound)


def _fire_params(key, cin, sqp, e1, e3):
    k = jax.random.split(key, 5)
    wsq = (_kaiming_uniform(k[0], (cin, sqp), cin) * _BN_SCALE).astype(jnp.bfloat16)
    # merged [expand1x1 | expand3x3-pre] 1x1 weights (BN scale folded)
    we1 = _kaiming_uniform(k[1], (sqp, e1), sqp) * _BN_SCALE
    we3 = _kaiming_uniform(k[2], (sqp, e3), sqp) * _BN_SCALE
    wexp = jnp.concatenate([we1, we3], axis=1).astype(jnp.bfloat16)
    wdw = _kaiming_uniform(k[3], (9, 1, e3), 9) * _BN_SCALE                # depthwise 3x3 (f32)
    wpost = (_kaiming_uniform(k[4], (e3, e3), e3) * _BN_SCALE).astype(jnp.bfloat16)
    zeros = lambda c: jnp.zeros((1, c), jnp.float32)
    return {"wsq": wsq, "bsq": zeros(sqp),
            "wexp": wexp, "bexp": zeros(e1 + e3),
            "wdw": wdw, "bdw": zeros(e3),
            "wpost": wpost, "bpost": zeros(e3)}


def make_params(key):
    ks = jax.random.split(key, 5)
    w1 = _kaiming_uniform(ks[0], (3, 3, 16, 32), fan_in=9 * 16) * _BN_SCALE
    return {
        "conv1": {"w": w1.reshape(9 * 16, 32).astype(jnp.bfloat16),
                  "b": jnp.zeros((1, 32), jnp.float32)},
        "fire1": _fire_params(ks[1], 32, 16, 64, 64),
        "fire2": _fire_params(ks[2], 128, 16, 64, 64),
        "fire3": _fire_params(ks[3], 128, 32, 128, 128),
        "fire4": _fire_params(ks[4], 256, 64, 128, 128),
    }


# ------------------------------------- forward -------------------------------------

def _const_spec(shape):
    zeros = (0,) * len(shape)
    return pl.BlockSpec(tuple(shape), lambda n: zeros)


def squeezenet_cw_forward(x_nchw, params):
    x = jnp.transpose(x_nchw, (0, 2, 3, 1)).astype(jnp.float32)            # NCHW -> NHWC
    n, h, w, cin = x.shape

    # conv1 (3x3, stride 2, pad 1) im2col; rows grouped phase-major for the in-kernel 2x2 pool.
    ho = (h - 1) // 2 + 1
    wo = (w - 1) // 2 + 1
    assert ho % 2 == 0 and wo % 2 == 0, "pool1 phase grouping needs even conv1 output dims"
    xp = jnp.pad(x, ((0, 0), (1, 1), (1, 1), (0, 0)))
    taps = [xp[:, dy:dy + 2 * (ho - 1) + 1:2, dx:dx + 2 * (wo - 1) + 1:2, :]
            for dy in range(3) for dx in range(3)]
    patches = jnp.concatenate(taps, axis=-1)                               # (n, ho, wo, 9*cin)
    h1, w1p = ho // 2, wo // 2
    patches = patches.reshape(n, h1, 2, w1p, 2, 9 * cin)
    patches = jnp.transpose(patches, (0, 2, 4, 1, 3, 5))                   # phase-major rows
    patches = patches.reshape(n, 4 * h1 * w1p, 9 * cin).astype(jnp.bfloat16)

    # constant spatial gather matrices
    g8 = _dw_shift_gather(h1, w1p)                       # depthwise taps for fire1/fire2
    h2, w2, p2m = _pool3x3s2_gather(h1, w1p)             # 3x3/2 ceil-mode max-pool
    g4 = _dw_shift_gather(h2, w2)                        # depthwise taps for fire3/fire4

    fire_arrays = []
    for name in ("fire1", "fire2", "fire3", "fire4"):
        p = params[name]
        fire_arrays += [p["wsq"], p["bsq"], p["wexp"], p["bexp"],
                        p["wdw"], p["bdw"], p["wpost"], p["bpost"]]
    inputs = [patches, params["conv1"]["w"], params["conv1"]["b"], g8, g4, p2m] + fire_arrays

    cout = params["fire4"]["wexp"].shape[1]
    m2 = h2 * w2
    in_specs = [pl.BlockSpec((1,) + patches.shape[1:], lambda i: (i, 0, 0))]
    in_specs += [_const_spec(a.shape) for a in inputs[1:]]

    out = pl.pallas_call(
        _squeezenet_kernel,
        out_shape=jax.ShapeDtypeStruct((n, m2, cout), jnp.float32),
        grid=(n,),
        in_specs=in_specs,
        out_specs=pl.BlockSpec((1, m2, cout), lambda i: (i, 0, 0)),
        compiler_params=pltpu.CompilerParams(
            dimension_semantics=("parallel",),
            vmem_limit_bytes=8 * 1024 * 1024),
    )(*inputs)

    out = out.reshape(n, h2, w2, cout)
    return jnp.transpose(out, (0, 3, 1, 2))                                # NHWC -> NCHW


if __name__ == "__main__":
    key = jax.random.PRNGKey(0)
    kp, kx = jax.random.split(key)
    params = make_params(kp)
    x = jax.random.normal(kx, (2, 16, 32, 32), jnp.float32)                # NCHW, 16 input channels

    fwd = jax.jit(lambda inp: squeezenet_cw_forward(inp, params))
    out = fwd(x)
    jax.block_until_ready(out)
    assert out.shape == (2, 256, 4, 4), out.shape
    assert bool(jnp.all(jnp.isfinite(out)))
    print("KERNEL_OK")
</pallas_src>

<mosaic_0001>
module attributes {stable_mosaic.version = 11 : i64} {
  func.func @_squeezenet_kernel(%arg0: i32, %arg1: memref<1x256x144xbf16, #tpu.memory_space<vmem>>, %arg2: memref<144x32xbf16, #tpu.memory_space<vmem>>, %arg3: memref<1x32xf32, #tpu.memory_space<vmem>>, %arg4: memref<576x64xf32, #tpu.memory_space<vmem>>, %arg5: memref<144x16xf32, #tpu.memory_space<vmem>>, %arg6: memref<144x64xf32, #tpu.memory_space<vmem>>, %arg7: memref<32x16xbf16, #tpu.memory_space<vmem>>, %arg8: memref<1x16xf32, #tpu.memory_space<vmem>>, %arg9: memref<16x128xbf16, #tpu.memory_space<vmem>>, %arg10: memref<1x128xf32, #tpu.memory_space<vmem>>, %arg11: memref<9x1x64xf32, #tpu.memory_space<vmem>>, %arg12: memref<1x64xf32, #tpu.memory_space<vmem>>, %arg13: memref<64x64xbf16, #tpu.memory_space<vmem>>, %arg14: memref<1x64xf32, #tpu.memory_space<vmem>>, %arg15: memref<128x16xbf16, #tpu.memory_space<vmem>>, %arg16: memref<1x16xf32, #tpu.memory_space<vmem>>, %arg17: memref<16x128xbf16, #tpu.memory_space<vmem>>, %arg18: memref<1x128xf32, #tpu.memory_space<vmem>>, %arg19: memref<9x1x64xf32, #tpu.memory_space<vmem>>, %arg20: memref<1x64xf32, #tpu.memory_space<vmem>>, %arg21: memref<64x64xbf16, #tpu.memory_space<vmem>>, %arg22: memref<1x64xf32, #tpu.memory_space<vmem>>, %arg23: memref<128x32xbf16, #tpu.memory_space<vmem>>, %arg24: memref<1x32xf32, #tpu.memory_space<vmem>>, %arg25: memref<32x256xbf16, #tpu.memory_space<vmem>>, %arg26: memref<1x256xf32, #tpu.memory_space<vmem>>, %arg27: memref<9x1x128xf32, #tpu.memory_space<vmem>>, %arg28: memref<1x128xf32, #tpu.memory_space<vmem>>, %arg29: memref<128x128xbf16, #tpu.memory_space<vmem>>, %arg30: memref<1x128xf32, #tpu.memory_space<vmem>>, %arg31: memref<256x64xbf16, #tpu.memory_space<vmem>>, %arg32: memref<1x64xf32, #tpu.memory_space<vmem>>, %arg33: memref<64x256xbf16, #tpu.memory_space<vmem>>, %arg34: memref<1x256xf32, #tpu.memory_space<vmem>>, %arg35: memref<9x1x128xf32, #tpu.memory_space<vmem>>, %arg36: memref<1x128xf32, #tpu.memory_space<vmem>>, %arg37: memref<128x128xbf16, #tpu.memory_space<vmem>>, %arg38: memref<1x128xf32, #tpu.memory_space<vmem>>, %arg39: memref<1x16x256xf32, #tpu.memory_space<vmem>>) attributes {dimension_semantics = [#tpu.dimension_semantics<parallel>], iteration_bounds = array<i64: 2>, scalar_prefetch = 0 : i64, scratch_operands = 0 : i64, tpu.core_type = #tpu.core_type<tc>, window_params = [{transform_indices = @transform_0, window_bounds = array<i64: 1, 256, 144>}, {pipeline_mode = #tpu.pipeline_mode<synchronous>, transform_indices = @transform_1, window_bounds = array<i64: 144, 32>}, {pipeline_mode = #tpu.pipeline_mode<synchronous>, transform_indices = @transform_2, window_bounds = array<i64: 1, 32>}, {pipeline_mode = #tpu.pipeline_mode<synchronous>, transform_indices = @transform_3, window_bounds = array<i64: 576, 64>}, {pipeline_mode = #tpu.pipeline_mode<synchronous>, transform_indices = @transform_4, window_bounds = array<i64: 144, 16>}, {pipeline_mode = #tpu.pipeline_mode<synchronous>, transform_indices = @transform_5, window_bounds = array<i64: 144, 64>}, {pipeline_mode = #tpu.pipeline_mode<synchronous>, transform_indices = @transform_6, window_bounds = array<i64: 32, 16>}, {pipeline_mode = #tpu.pipeline_mode<synchronous>, transform_indices = @transform_7, window_bounds = array<i64: 1, 16>}, {pipeline_mode = #tpu.pipeline_mode<synchronous>, transform_indices = @transform_8, window_bounds = array<i64: 16, 128>}, {pipeline_mode = #tpu.pipeline_mode<synchronous>, transform_indices = @transform_9, window_bounds = array<i64: 1, 128>}, {pipeline_mode = #tpu.pipeline_mode<synchronous>, transform_indices = @transform_10, window_bounds = array<i64: 9, 1, 64>}, {pipeline_mode = #tpu.pipeline_mode<synchronous>, transform_indices = @transform_11, window_bounds = array<i64: 1, 64>}, {pipeline_mode = #tpu.pipeline_mode<synchronous>, transform_indices = @transform_12, window_bounds = array<i64: 64, 64>}, {pipeline_mode = #tpu.pipeline_mode<synchronous>, transform_indices = @transform_13, window_bounds = array<i64: 1, 64>}, {pipeline_mode = #tpu.pipeline_mode<synchronous>, transform_indices = @transform_14, window_bounds = array<i64: 128, 16>}, {pipeline_mode = #tpu.pipeline_mode<synchronous>, transform_indices = @transform_15, window_bounds = array<i64: 1, 16>}, {pipeline_mode = #tpu.pipeline_mode<synchronous>, transform_indices = @transform_16, window_bounds = array<i64: 16, 128>}, {pipeline_mode = #tpu.pipeline_mode<synchronous>, transform_indices = @transform_17, window_bounds = array<i64: 1, 128>}, {pipeline_mode = #tpu.pipeline_mode<synchronous>, transform_indices = @transform_18, window_bounds = array<i64: 9, 1, 64>}, {pipeline_mode = #tpu.pipeline_mode<synchronous>, transform_indices = @transform_19, window_bounds = array<i64: 1, 64>}, {pipeline_mode = #tpu.pipeline_mode<synchronous>, transform_indices = @transform_20, window_bounds = array<i64: 64, 64>}, {pipeline_mode = #tpu.pipeline_mode<synchronous>, transform_indices = @transform_21, window_bounds = array<i64: 1, 64>}, {pipeline_mode = #tpu.pipeline_mode<synchronous>, transform_indices = @transform_22, window_bounds = array<i64: 128, 32>}, {pipeline_mode = #tpu.pipeline_mode<synchronous>, transform_indices = @transform_23, window_bounds = array<i64: 1, 32>}, {pipeline_mode = #tpu.pipeline_mode<synchronous>, transform_indices = @transform_24, window_bounds = array<i64: 32, 256>}, {pipeline_mode = #tpu.pipeline_mode<synchronous>, transform_indices = @transform_25, window_bounds = array<i64: 1, 256>}, {pipeline_mode = #tpu.pipeline_mode<synchronous>, transform_indices = @transform_26, window_bounds = array<i64: 9, 1, 128>}, {pipeline_mode = #tpu.pipeline_mode<synchronous>, transform_indices = @transform_27, window_bounds = array<i64: 1, 128>}, {pipeline_mode = #tpu.pipeline_mode<synchronous>, transform_indices = @transform_28, window_bounds = array<i64: 128, 128>}, {pipeline_mode = #tpu.pipeline_mode<synchronous>, transform_indices = @transform_29, window_bounds = array<i64: 1, 128>}, {pipeline_mode = #tpu.pipeline_mode<synchronous>, transform_indices = @transform_30, window_bounds = array<i64: 256, 64>}, {pipeline_mode = #tpu.pipeline_mode<synchronous>, transform_indices = @transform_31, window_bounds = array<i64: 1, 64>}, {pipeline_mode = #tpu.pipeline_mode<synchronous>, transform_indices = @transform_32, window_bounds = array<i64: 64, 256>}, {pipeline_mode = #tpu.pipeline_mode<synchronous>, transform_indices = @transform_33, window_bounds = array<i64: 1, 256>}, {pipeline_mode = #tpu.pipeline_mode<synchronous>, transform_indices = @transform_34, window_bounds = array<i64: 9, 1, 128>}, {pipeline_mode = #tpu.pipeline_mode<synchronous>, transform_indices = @transform_35, window_bounds = array<i64: 1, 128>}, {pipeline_mode = #tpu.pipeline_mode<synchronous>, transform_indices = @transform_36, window_bounds = array<i64: 128, 128>}, {pipeline_mode = #tpu.pipeline_mode<synchronous>, transform_indices = @transform_37, window_bounds = array<i64: 1, 128>}, {transform_indices = @transform_38, window_bounds = array<i64: 1, 16, 256>}]} {
    %c0 = arith.constant 0 : index
    %c0_0 = arith.constant 0 : index
    %c0_1 = arith.constant 0 : index
    %0 = vector.load %arg1[%c0, %c0_0, %c0_1] : memref<1x256x144xbf16, #tpu.memory_space<vmem>>, vector<1x256x144xbf16>
    %1 = vector.shape_cast %0 : vector<1x256x144xbf16> to vector<256x144xbf16>
    %c0_2 = arith.constant 0 : index
    %c0_3 = arith.constant 0 : index
    %2 = vector.load %arg2[%c0_2, %c0_3] : memref<144x32xbf16, #tpu.memory_space<vmem>>, vector<144x32xbf16>
    %cst = arith.constant dense<0.000000e+00> : vector<256x32xf32>
    %3 = tpu.matmul %1, %2, %cst {dimension_numbers = #tpu.dot_dimension_numbers<[1], [0], [0], [1], [0, 0, 1, 1], [], []>} : vector<256x144xbf16>, vector<144x32xbf16>, vector<256x32xf32> -> vector<256x32xf32>
    %c0_4 = arith.constant 0 : index
    %c0_5 = arith.constant 0 : index
    %4 = vector.load %arg3[%c0_4, %c0_5] : memref<1x32xf32, #tpu.memory_space<vmem>>, vector<1x32xf32>
    %5 = vector.broadcast %4 : vector<1x32xf32> to vector<256x32xf32>
    %6 = arith.addf %3, %5 : vector<256x32xf32>
    %cst_6 = arith.constant 0.000000e+00 : f32
    %7 = vector.broadcast %cst_6 : f32 to vector<256x32xf32>
    %8 = arith.maximumf %6, %7 : vector<256x32xf32>
    %9 = vector.extract_strided_slice %8 {offsets = [0, 0], sizes = [64, 32], strides = [1, 1]} : vector<256x32xf32> to vector<64x32xf32>
    %10 = vector.extract_strided_slice %8 {offsets = [64, 0], sizes = [64, 32], strides = [1, 1]} : vector<256x32xf32> to vector<64x32xf32>
    %11 = arith.maximumf %9, %10 : vector<64x32xf32>
    %12 = vector.extract_strided_slice %8 {offsets = [128, 0], sizes = [64, 32], strides = [1, 1]} : vector<256x32xf32> to vector<64x32xf32>
    %13 = vector.extract_strided_slice %8 {offsets = [192, 0], sizes = [64, 32], strides = [1, 1]} : vector<256x32xf32> to vector<64x32xf32>
    %14 = arith.maximumf %12, %13 : vector<64x32xf32>
    %15 = arith.maximumf %11, %14 : vector<64x32xf32>
    %16 = arith.truncf %15 : vector<64x32xf32> to vector<64x32xbf16>
    %c0_7 = arith.constant 0 : index
    %c0_8 = arith.constant 0 : index
    %17 = vector.load %arg7[%c0_7, %c0_8] : memref<32x16xbf16, #tpu.memory_space<vmem>>, vector<32x16xbf16>
    %cst_9 = arith.constant dense<0.000000e+00> : vector<64x16xf32>
    %18 = tpu.matmul %16, %17, %cst_9 {dimension_numbers = #tpu.dot_dimension_numbers<[1], [0], [0], [1], [0, 0, 1, 1], [], []>} : vector<64x32xbf16>, vector<32x16xbf16>, vector<64x16xf32> -> vector<64x16xf32>
    %c0_10 = arith.constant 0 : index
    %c0_11 = arith.constant 0 : index
    %19 = vector.load %arg8[%c0_10, %c0_11] : memref<1x16xf32, #tpu.memory_space<vmem>>, vector<1x16xf32>
    %20 = vector.broadcast %19 : vector<1x16xf32> to vector<64x16xf32>
    %21 = arith.addf %18, %20 : vector<64x16xf32>
    %cst_12 = arith.constant 0.000000e+00 : f32
    %22 = vector.broadcast %cst_12 : f32 to vector<64x16xf32>
    %23 = arith.maximumf %21, %22 : vector<64x16xf32>
    %24 = arith.truncf %23 : vector<64x16xf32> to vector<64x16xbf16>
    %c0_13 = arith.constant 0 : index
    %c0_14 = arith.constant 0 : index
    %25 = vector.load %arg9[%c0_13, %c0_14] : memref<16x128xbf16, #tpu.memory_space<vmem>>, vector<16x128xbf16>
    %cst_15 = arith.constant dense<0.000000e+00> : vector<64x128xf32>
    %26 = tpu.matmul %24, %25, %cst_15 {dimension_numbers = #tpu.dot_dimension_numbers<[1], [0], [0], [1], [0, 0, 1, 1], [], []>} : vector<64x16xbf16>, vector<16x128xbf16>, vector<64x128xf32> -> vector<64x128xf32>
    %c0_16 = arith.constant 0 : index
    %c0_17 = arith.constant 0 : index
    %27 = vector.load %arg10[%c0_16, %c0_17] : memref<1x128xf32, #tpu.memory_space<vmem>>, vector<1x128xf32>
    %28 = vector.broadcast %27 : vector<1x128xf32> to vector<64x128xf32>
    %29 = arith.addf %26, %28 : vector<64x128xf32>
    %cst_18 = arith.constant 0.000000e+00 : f32
    %30 = vector.broadcast %cst_18 : f32 to vector<64x128xf32>
    %31 = arith.maximumf %29, %30 : vector<64x128xf32>
    %32 = vector.extract_strided_slice %31 {offsets = [0, 0], sizes = [64, 64], strides = [1, 1]} : vector<64x128xf32> to vector<64x64xf32>
    %33 = vector.extract_strided_slice %31 {offsets = [0, 64], sizes = [64, 64], strides = [1, 1]} : vector<64x128xf32> to vector<64x64xf32>
    %c0_19 = arith.constant 0 : index
    %c0_20 = arith.constant 0 : index
    %34 = vector.load %arg4[%c0_19, %c0_20] : memref<576x64xf32, #tpu.memory_space<vmem>>, vector<576x64xf32>
    %cst_21 = arith.constant dense<0.000000e+00> : vector<576x64xf32>
    %35 = tpu.matmul %34, %33, %cst_21 {dimension_numbers = #tpu.dot_dimension_numbers<[1], [0], [0], [1], [0, 0, 1, 1], [], []>} : vector<576x64xf32>, vector<64x64xf32>, vector<576x64xf32> -> vector<576x64xf32>
    %c0_22 = arith.constant 0 : index
    %c0_23 = arith.constant 0 : index
    %c0_24 = arith.constant 0 : index
    %36 = vector.load %arg11[%c0_22, %c0_23, %c0_24] : memref<9x1x64xf32, #tpu.memory_space<vmem>>, vector<9x1x64xf32>
    %37 = vector.extract_strided_slice %35 {offsets = [0, 0], sizes = [64, 64], strides = [1, 1]} : vector<576x64xf32> to vector<64x64xf32>
    %38 = vector.extract_strided_slice %36 {offsets = [0, 0, 0], sizes = [1, 1, 64], strides = [1, 1, 1]} : vector<9x1x64xf32> to vector<1x1x64xf32>
    %39 = vector.shape_cast %38 : vector<1x1x64xf32> to vector<1x64xf32>
    %40 = vector.broadcast %39 : vector<1x64xf32> to vector<64x64xf32>
    %41 = arith.mulf %37, %40 : vector<64x64xf32>
    %42 = vector.extract_strided_slice %35 {offsets = [64, 0], sizes = [64, 64], strides = [1, 1]} : vector<576x64xf32> to vector<64x64xf32>
    %43 = vector.extract_strided_slice %36 {offsets = [1, 0, 0], sizes = [1, 1, 64], strides = [1, 1, 1]} : vector<9x1x64xf32> to vector<1x1x64xf32>
    %44 = vector.shape_cast %43 : vector<1x1x64xf32> to vector<1x64xf32>
    %45 = vector.broadcast %44 : vector<1x64xf32> to vector<64x64xf32>
    %46 = arith.mulf %42, %45 : vector<64x64xf32>
    %47 = arith.addf %41, %46 : vector<64x64xf32>
    %48 = vector.extract_strided_slice %35 {offsets = [128, 0], sizes = [64, 64], strides = [1, 1]} : vector<576x64xf32> to vector<64x64xf32>
    %49 = vector.extract_strided_slice %36 {offsets = [2, 0, 0], sizes = [1, 1, 64], strides = [1, 1, 1]} : vector<9x1x64xf32> to vector<1x1x64xf32>
    %50 = vector.shape_cast %49 : vector<1x1x64xf32> to vector<1x64xf32>
    %51 = vector.broadcast %50 : vector<1x64xf32> to vector<64x64xf32>
    %52 = arith.mulf %48, %51 : vector<64x64xf32>
    %53 = arith.addf %47, %52 : vector<64x64xf32>
    %54 = vector.extract_strided_slice %35 {offsets = [192, 0], sizes = [64, 64], strides = [1, 1]} : vector<576x64xf32> to vector<64x64xf32>
    %55 = vector.extract_strided_slice %36 {offsets = [3, 0, 0], sizes = [1, 1, 64], strides = [1, 1, 1]} : vector<9x1x64xf32> to vector<1x1x64xf32>
    %56 = vector.shape_cast %55 : vector<1x1x64xf32> to vector<1x64xf32>
    %57 = vector.broadcast %56 : vector<1x64xf32> to vector<64x64xf32>
    %58 = arith.mulf %54, %57 : vector<64x64xf32>
    %59 = arith.addf %53, %58 : vector<64x64xf32>
    %60 = vector.extract_strided_slice %35 {offsets = [256, 0], sizes = [64, 64], strides = [1, 1]} : vector<576x64xf32> to vector<64x64xf32>
    %61 = vector.extract_strided_slice %36 {offsets = [4, 0, 0], sizes = [1, 1, 64], strides = [1, 1, 1]} : vector<9x1x64xf32> to vector<1x1x64xf32>
    %62 = vector.shape_cast %61 : vector<1x1x64xf32> to vector<1x64xf32>
    %63 = vector.broadcast %62 : vector<1x64xf32> to vector<64x64xf32>
    %64 = arith.mulf %60, %63 : vector<64x64xf32>
    %65 = arith.addf %59, %64 : vector<64x64xf32>
    %66 = vector.extract_strided_slice %35 {offsets = [320, 0], sizes = [64, 64], strides = [1, 1]} : vector<576x64xf32> to vector<64x64xf32>
    %67 = vector.extract_strided_slice %36 {offsets = [5, 0, 0], sizes = [1, 1, 64], strides = [1, 1, 1]} : vector<9x1x64xf32> to vector<1x1x64xf32>
    %68 = vector.shape_cast %67 : vector<1x1x64xf32> to vector<1x64xf32>
    %69 = vector.broadcast %68 : vector<1x64xf32> to vector<64x64xf32>
    %70 = arith.mulf %66, %69 : vector<64x64xf32>
    %71 = arith.addf %65, %70 : vector<64x64xf32>
    %72 = vector.extract_strided_slice %35 {offsets = [384, 0], sizes = [64, 64], strides = [1, 1]} : vector<576x64xf32> to vector<64x64xf32>
    %73 = vector.extract_strided_slice %36 {offsets = [6, 0, 0], sizes = [1, 1, 64], strides = [1, 1, 1]} : vector<9x1x64xf32> to vector<1x1x64xf32>
    %74 = vector.shape_cast %73 : vector<1x1x64xf32> to vector<1x64xf32>
    %75 = vector.broadcast %74 : vector<1x64xf32> to vector<64x64xf32>
    %76 = arith.mulf %72, %75 : vector<64x64xf32>
    %77 = arith.addf %71, %76 : vector<64x64xf32>
    %78 = vector.extract_strided_slice %35 {offsets = [448, 0], sizes = [64, 64], strides = [1, 1]} : vector<576x64xf32> to vector<64x64xf32>
    %79 = vector.extract_strided_slice %36 {offsets = [7, 0, 0], sizes = [1, 1, 64], strides = [1, 1, 1]} : vector<9x1x64xf32> to vector<1x1x64xf32>
    %80 = vector.shape_cast %79 : vector<1x1x64xf32> to vector<1x64xf32>
    %81 = vector.broadcast %80 : vector<1x64xf32> to vector<64x64xf32>
    %82 = arith.mulf %78, %81 : vector<64x64xf32>
    %83 = arith.addf %77, %82 : vector<64x64xf32>
    %84 = vector.extract_strided_slice %35 {offsets = [512, 0], sizes = [64, 64], strides = [1, 1]} : vector<576x64xf32> to vector<64x64xf32>
    %85 = vector.extract_strided_slice %36 {offsets = [8, 0, 0], sizes = [1, 1, 64], strides = [1, 1, 1]} : vector<9x1x64xf32> to vector<1x1x64xf32>
    %86 = vector.shape_cast %85 : vector<1x1x64xf32> to vector<1x64xf32>
    %87 = vector.broadcast %86 : vector<1x64xf32> to vector<64x64xf32>
    %88 = arith.mulf %84, %87 : vector<64x64xf32>
    %89 = arith.addf %83, %88 : vector<64x64xf32>
    %c0_25 = arith.constant 0 : index
    %c0_26 = arith.constant 0 : index
    %90 = vector.load %arg12[%c0_25, %c0_26] : memref<1x64xf32, #tpu.memory_space<vmem>>, vector<1x64xf32>
    %91 = vector.broadcast %90 : vector<1x64xf32> to vector<64x64xf32>
    %92 = arith.addf %89, %91 : vector<64x64xf32>
    %cst_27 = arith.constant 0.000000e+00 : f32
    %93 = vector.broadcast %cst_27 : f32 to vector<64x64xf32>
    %94 = arith.maximumf %92, %93 : vector<64x64xf32>
    %95 = arith.truncf %94 : vector<64x64xf32> to vector<64x64xbf16>
    %c0_28 = arith.constant 0 : index
    %c0_29 = arith.constant 0 : index
    %96 = vector.load %arg13[%c0_28, %c0_29] : memref<64x64xbf16, #tpu.memory_space<vmem>>, vector<64x64xbf16>
    %cst_30 = arith.constant dense<0.000000e+00> : vector<64x64xf32>
    %97 = tpu.matmul %95, %96, %cst_30 {dimension_numbers = #tpu.dot_dimension_numbers<[1], [0], [0], [1], [0, 0, 1, 1], [], []>} : vector<64x64xbf16>, vector<64x64xbf16>, vector<64x64xf32> -> vector<64x64xf32>
    %c0_31 = arith.constant 0 : index
    %c0_32 = arith.constant 0 : index
    %98 = vector.load %arg14[%c0_31, %c0_32] : memref<1x64xf32, #tpu.memory_space<vmem>>, vector<1x64xf32>
    %99 = vector.broadcast %98 : vector<1x64xf32> to vector<64x64xf32>
    %100 = arith.addf %97, %99 : vector<64x64xf32>
    %cst_33 = arith.constant 0.000000e+00 : f32
    %101 = vector.broadcast %cst_33 : f32 to vector<64x64xf32>
    %102 = arith.maximumf %100, %101 : vector<64x64xf32>
    %103 = tpu.concatenate %32, %102 in 1 : vector<64x64xf32>, vector<64x64xf32> -> vector<64x128xf32>
    %104 = arith.truncf %103 : vector<64x128xf32> to vector<64x128xbf16>
    %c0_34 = arith.constant 0 : index
    %c0_35 = arith.constant 0 : index
    %105 = vector.load %arg15[%c0_34, %c0_35] : memref<128x16xbf16, #tpu.memory_space<vmem>>, vector<128x16xbf16>
    %cst_36 = arith.constant dense<0.000000e+00> : vector<64x16xf32>
    %106 = tpu.matmul %104, %105, %cst_36 {dimension_numbers = #tpu.dot_dimension_numbers<[1], [0], [0], [1], [0, 0, 1, 1], [], []>} : vector<64x128xbf16>, vector<128x16xbf16>, vector<64x16xf32> -> vector<64x16xf32>
    %c0_37 = arith.constant 0 : index
    %c0_38 = arith.constant 0 : index
    %107 = vector.load %arg16[%c0_37, %c0_38] : memref<1x16xf32, #tpu.memory_space<vmem>>, vector<1x16xf32>
    %108 = vector.broadcast %107 : vector<1x16xf32> to vector<64x16xf32>
    %109 = arith.addf %106, %108 : vector<64x16xf32>
    %cst_39 = arith.constant 0.000000e+00 : f32
    %110 = vector.broadcast %cst_39 : f32 to vector<64x16xf32>
    %111 = arith.maximumf %109, %110 : vector<64x16xf32>
    %112 = arith.truncf %111 : vector<64x16xf32> to vector<64x16xbf16>
    %c0_40 = arith.constant 0 : index
    %c0_41 = arith.constant 0 : index
    %113 = vector.load %arg17[%c0_40, %c0_41] : memref<16x128xbf16, #tpu.memory_space<vmem>>, vector<16x128xbf16>
    %cst_42 = arith.constant dense<0.000000e+00> : vector<64x128xf32>
    %114 = tpu.matmul %112, %113, %cst_42 {dimension_numbers = #tpu.dot_dimension_numbers<[1], [0], [0], [1], [0, 0, 1, 1], [], []>} : vector<64x16xbf16>, vector<16x128xbf16>, vector<64x128xf32> -> vector<64x128xf32>
    %c0_43 = arith.constant 0 : index
    %c0_44 = arith.constant 0 : index
    %115 = vector.load %arg18[%c0_43, %c0_44] : memref<1x128xf32, #tpu.memory_space<vmem>>, vector<1x128xf32>
    %116 = vector.broadcast %115 : vector<1x128xf32> to vector<64x128xf32>
    %117 = arith.addf %114, %116 : vector<64x128xf32>
    %cst_45 = arith.constant 0.000000e+00 : f32
    %118 = vector.broadcast %cst_45 : f32 to vector<64x128xf32>
    %119 = arith.maximumf %117, %118 : vector<64x128xf32>
    %120 = vector.extract_strided_slice %119 {offsets = [0, 0], sizes = [64, 64], strides = [1, 1]} : vector<64x128xf32> to vector<64x64xf32>
    %121 = vector.extract_strided_slice %119 {offsets = [0, 64], sizes = [64, 64], strides = [1, 1]} : vector<64x128xf32> to vector<64x64xf32>
    %c0_46 = arith.constant 0 : index
    %c0_47 = arith.constant 0 : index
    %122 = vector.load %arg4[%c0_46, %c0_47] : memref<576x64xf32, #tpu.memory_space<vmem>>, vector<576x64xf32>
    %cst_48 = arith.constant dense<0.000000e+00> : vector<576x64xf32>
    %123 = tpu.matmul %122, %121, %cst_48 {dimension_numbers = #tpu.dot_dimension_numbers<[1], [0], [0], [1], [0, 0, 1, 1], [], []>} : vector<576x64xf32>, vector<64x64xf32>, vector<576x64xf32> -> vector<576x64xf32>
    %c0_49 = arith.constant 0 : index
    %c0_50 = arith.constant 0 : index
    %c0_51 = arith.constant 0 : index
    %124 = vector.load %arg19[%c0_49, %c0_50, %c0_51] : memref<9x1x64xf32, #tpu.memory_space<vmem>>, vector<9x1x64xf32>
    %125 = vector.extract_strided_slice %123 {offsets = [0, 0], sizes = [64, 64], strides = [1, 1]} : vector<576x64xf32> to vector<64x64xf32>
    %126 = vector.extract_strided_slice %124 {offsets = [0, 0, 0], sizes = [1, 1, 64], strides = [1, 1, 1]} : vector<9x1x64xf32> to vector<1x1x64xf32>
    %127 = vector.shape_cast %126 : vector<1x1x64xf32> to vector<1x64xf32>
    %128 = vector.broadcast %127 : vector<1x64xf32> to vector<64x64xf32>
    %129 = arith.mulf %125, %128 : vector<64x64xf32>
    %130 = vector.extract_strided_slice %123 {offsets = [64, 0], sizes = [64, 64], strides = [1, 1]} : vector<576x64xf32> to vector<64x64xf32>
    %131 = vector.extract_strided_slice %124 {offsets = [1, 0, 0], sizes = [1, 1, 64], strides = [1, 1, 1]} : vector<9x1x64xf32> to vector<1x1x64xf32>
    %132 = vector.shape_cast %131 : vector<1x1x64xf32> to vector<1x64xf32>
    %133 = vector.broadcast %132 : vector<1x64xf32> to vector<64x64xf32>
    %134 = arith.mulf %130, %133 : vector<64x64xf32>
    %135 = arith.addf %129, %134 : vector<64x64xf32>
    %136 = vector.extract_strided_slice %123 {offsets = [128, 0], sizes = [64, 64], strides = [1, 1]} : vector<576x64xf32> to vector<64x64xf32>
    %137 = vector.extract_strided_slice %124 {offsets = [2, 0, 0], sizes = [1, 1, 64], strides = [1, 1, 1]} : vector<9x1x64xf32> to vector<1x1x64xf32>
    %138 = vector.shape_cast %137 : vector<1x1x64xf32> to vector<1x64xf32>
    %139 = vector.broadcast %138 : vector<1x64xf32> to vector<64x64xf32>
    %140 = arith.mulf %136, %139 : vector<64x64xf32>
    %141 = arith.addf %135, %140 : vector<64x64xf32>
    %142 = vector.extract_strided_slice %123 {offsets = [192, 0], sizes = [64, 64], strides = [1, 1]} : vector<576x64xf32> to vector<64x64xf32>
    %143 = vector.extract_strided_slice %124 {offsets = [3, 0, 0], sizes = [1, 1, 64], strides = [1, 1, 1]} : vector<9x1x64xf32> to vector<1x1x64xf32>
    %144 = vector.shape_cast %143 : vector<1x1x64xf32> to vector<1x64xf32>
    %145 = vector.broadcast %144 : vector<1x64xf32> to vector<64x64xf32>
    %146 = arith.mulf %142, %145 : vector<64x64xf32>
    %147 = arith.addf %141, %146 : vector<64x64xf32>
    %148 = vector.extract_strided_slice %123 {offsets = [256, 0], sizes = [64, 64], strides = [1, 1]} : vector<576x64xf32> to vector<64x64xf32>
    %149 = vector.extract_strided_slice %124 {offsets = [4, 0, 0], sizes = [1, 1, 64], strides = [1, 1, 1]} : vector<9x1x64xf32> to vector<1x1x64xf32>
    %150 = vector.shape_cast %149 : vector<1x1x64xf32> to vector<1x64xf32>
    %151 = vector.broadcast %150 : vector<1x64xf32> to vector<64x64xf32>
    %152 = arith.mulf %148, %151 : vector<64x64xf32>
    %153 = arith.addf %147, %152 : vector<64x64xf32>
    %154 = vector.extract_strided_slice %123 {offsets = [320, 0], sizes = [64, 64], strides = [1, 1]} : vector<576x64xf32> to vector<64x64xf32>
    %155 = vector.extract_strided_slice %124 {offsets = [5, 0, 0], sizes = [1, 1, 64], strides = [1, 1, 1]} : vector<9x1x64xf32> to vector<1x1x64xf32>
    %156 = vector.shape_cast %155 : vector<1x1x64xf32> to vector<1x64xf32>
    %157 = vector.broadcast %156 : vector<1x64xf32> to vector<64x64xf32>
    %158 = arith.mulf %154, %157 : vector<64x64xf32>
    %159 = arith.addf %153, %158 : vector<64x64xf32>
    %160 = vector.extract_strided_slice %123 {offsets = [384, 0], sizes = [64, 64], strides = [1, 1]} : vector<576x64xf32> to vector<64x64xf32>
    %161 = vector.extract_strided_slice %124 {offsets = [6, 0, 0], sizes = [1, 1, 64], strides = [1, 1, 1]} : vector<9x1x64xf32> to vector<1x1x64xf32>
    %162 = vector.shape_cast %161 : vector<1x1x64xf32> to vector<1x64xf32>
    %163 = vector.broadcast %162 : vector<1x64xf32> to vector<64x64xf32>
    %164 = arith.mulf %160, %163 : vector<64x64xf32>
    %165 = arith.addf %159, %164 : vector<64x64xf32>
    %166 = vector.extract_strided_slice %123 {offsets = [448, 0], sizes = [64, 64], strides = [1, 1]} : vector<576x64xf32> to vector<64x64xf32>
    %167 = vector.extract_strided_slice %124 {offsets = [7, 0, 0], sizes = [1, 1, 64], strides = [1, 1, 1]} : vector<9x1x64xf32> to vector<1x1x64xf32>
    %168 = vector.shape_cast %167 : vector<1x1x64xf32> to vector<1x64xf32>
    %169 = vector.broadcast %168 : vector<1x64xf32> to vector<64x64xf32>
    %170 = arith.mulf %166, %169 : vector<64x64xf32>
    %171 = arith.addf %165, %170 : vector<64x64xf32>
    %172 = vector.extract_strided_slice %123 {offsets = [512, 0], sizes = [64, 64], strides = [1, 1]} : vector<576x64xf32> to vector<64x64xf32>
    %173 = vector.extract_strided_slice %124 {offsets = [8, 0, 0], sizes = [1, 1, 64], strides = [1, 1, 1]} : vector<9x1x64xf32> to vector<1x1x64xf32>
    %174 = vector.shape_cast %173 : vector<1x1x64xf32> to vector<1x64xf32>
    %175 = vector.broadcast %174 : vector<1x64xf32> to vector<64x64xf32>
    %176 = arith.mulf %172, %175 : vector<64x64xf32>
    %177 = arith.addf %171, %176 : vector<64x64xf32>
    %c0_52 = arith.constant 0 : index
    %c0_53 = arith.constant 0 : index
    %178 = vector.load %arg20[%c0_52, %c0_53] : memref<1x64xf32, #tpu.memory_space<vmem>>, vector<1x64xf32>
    %179 = vector.broadcast %178 : vector<1x64xf32> to vector<64x64xf32>
    %180 = arith.addf %177, %179 : vector<64x64xf32>
    %cst_54 = arith.constant 0.000000e+00 : f32
    %181 = vector.broadcast %cst_54 : f32 to vector<64x64xf32>
    %182 = arith.maximumf %180, %181 : vector<64x64xf32>
    %183 = arith.truncf %182 : vector<64x64xf32> to vector<64x64xbf16>
    %c0_55 = arith.constant 0 : index
    %c0_56 = arith.constant 0 : index
    %184 = vector.load %arg21[%c0_55, %c0_56] : memref<64x64xbf16, #tpu.memory_space<vmem>>, vector<64x64xbf16>
    %cst_57 = arith.constant dense<0.000000e+00> : vector<64x64xf32>
    %185 = tpu.matmul %183, %184, %cst_57 {dimension_numbers = #tpu.dot_dimension_numbers<[1], [0], [0], [1], [0, 0, 1, 1], [], []>} : vector<64x64xbf16>, vector<64x64xbf16>, vector<64x64xf32> -> vector<64x64xf32>
    %c0_58 = arith.constant 0 : index
    %c0_59 = arith.constant 0 : index
    %186 = vector.load %arg22[%c0_58, %c0_59] : memref<1x64xf32, #tpu.memory_space<vmem>>, vector<1x64xf32>
    %187 = vector.broadcast %186 : vector<1x64xf32> to vector<64x64xf32>
    %188 = arith.addf %185, %187 : vector<64x64xf32>
    %cst_60 = arith.constant 0.000000e+00 : f32
    %189 = vector.broadcast %cst_60 : f32 to vector<64x64xf32>
    %190 = arith.maximumf %188, %189 : vector<64x64xf32>
    %191 = tpu.concatenate %120, %190 in 1 : vector<64x64xf32>, vector<64x64xf32> -> vector<64x128xf32>
    %192 = arith.addf %191, %103 : vector<64x128xf32>
    %c0_61 = arith.constant 0 : index
    %c0_62 = arith.constant 0 : index
    %193 = vector.load %arg6[%c0_61, %c0_62] : memref<144x64xf32, #tpu.memory_space<vmem>>, vector<144x64xf32>
    %cst_63 = arith.constant dense<0.000000e+00> : vector<144x128xf32>
    %194 = tpu.matmul %193, %192, %cst_63 {dimension_numbers = #tpu.dot_dimension_numbers<[1], [0], [0], [1], [0, 0, 1, 1], [], []>} : vector<144x64xf32>, vector<64x128xf32>, vector<144x128xf32> -> vector<144x128xf32>
    %195 = vector.extract_strided_slice %194 {offsets = [0, 0], sizes = [16, 128], strides = [1, 1]} : vector<144x128xf32> to vector<16x128xf32>
    %196 = vector.extract_strided_slice %194 {offsets = [16, 0], sizes = [16, 128], strides = [1, 1]} : vector<144x128xf32> to vector<16x128xf32>
    %197 = arith.maximumf %195, %196 : vector<16x128xf32>
    %198 = vector.extract_strided_slice %194 {offsets = [32, 0], sizes = [16, 128], strides = [1, 1]} : vector<144x128xf32> to vector<16x128xf32>
    %199 = arith.maximumf %197, %198 : vector<16x128xf32>
    %200 = vector.extract_strided_slice %194 {offsets = [48, 0], sizes = [16, 128], strides = [1, 1]} : vector<144x128xf32> to vector<16x128xf32>
    %201 = arith.maximumf %199, %200 : vector<16x128xf32>
    %202 = vector.extract_strided_slice %194 {offsets = [64, 0], sizes = [16, 128], strides = [1, 1]} : vector<144x128xf32> to vector<16x128xf32>
    %203 = arith.maximumf %201, %202 : vector<16x128xf32>
    %204 = vector.extract_strided_slice %194 {offsets = [80, 0], sizes = [16, 128], strides = [1, 1]} : vector<144x128xf32> to vector<16x128xf32>
    %205 = arith.maximumf %203, %204 : vector<16x128xf32>
    %206 = vector.extract_strided_slice %194 {offsets = [96, 0], sizes = [16, 128], strides = [1, 1]} : vector<144x128xf32> to vector<16x128xf32>
    %207 = arith.maximumf %205, %206 : vector<16x128xf32>
    %208 = vector.extract_strided_slice %194 {offsets = [112, 0], sizes = [16, 128], strides = [1, 1]} : vector<144x128xf32> to vector<16x128xf32>
    %209 = arith.maximumf %207, %208 : vector<16x128xf32>
    %210 = vector.extract_strided_slice %194 {offsets = [128, 0], sizes = [16, 128], strides = [1, 1]} : vector<144x128xf32> to vector<16x128xf32>
    %211 = arith.maximumf %209, %210 : vector<16x128xf32>
    %212 = arith.truncf %211 : vector<16x128xf32> to vector<16x128xbf16>
    %c0_64 = arith.constant 0 : index
    %c0_65 = arith.constant 0 : index
    %213 = vector.load %arg23[%c0_64, %c0_65] : memref<128x32xbf16, #tpu.memory_space<vmem>>, vector<128x32xbf16>
    %cst_66 = arith.constant dense<0.000000e+00> : vector<16x32xf32>
    %214 = tpu.matmul %212, %213, %cst_66 {dimension_numbers = #tpu.dot_dimension_numbers<[1], [0], [0], [1], [0, 0, 1, 1], [], []>} : vector<16x128xbf16>, vector<128x32xbf16>, vector<16x32xf32> -> vector<16x32xf32>
    %c0_67 = arith.constant 0 : index
    %c0_68 = arith.constant 0 : index
    %215 = vector.load %arg24[%c0_67, %c0_68] : memref<1x32xf32, #tpu.memory_space<vmem>>, vector<1x32xf32>
    %216 = vector.broadcast %215 : vector<1x32xf32> to vector<16x32xf32>
    %217 = arith.addf %214, %216 : vector<16x32xf32>
    %cst_69 = arith.constant 0.000000e+00 : f32
    %218 = vector.broadcast %cst_69 : f32 to vector<16x32xf32>
    %219 = arith.maximumf %217, %218 : vector<16x32xf32>
    %220 = arith.truncf %219 : vector<16x32xf32> to vector<16x32xbf16>
    %c0_70 = arith.constant 0 : index
    %c0_71 = arith.constant 0 : index
    %221 = vector.load %arg25[%c0_70, %c0_71] : memref<32x256xbf16, #tpu.memory_space<vmem>>, vector<32x256xbf16>
    %cst_72 = arith.constant dense<0.000000e+00> : vector<16x256xf32>
    %222 = tpu.matmul %220, %221, %cst_72 {dimension_numbers = #tpu.dot_dimension_numbers<[1], [0], [0], [1], [0, 0, 1, 1], [], []>} : vector<16x32xbf16>, vector<32x256xbf16>, vector<16x256xf32> -> vector<16x256xf32>
    %c0_73 = arith.constant 0 : index
    %c0_74 = arith.constant 0 : index
    %223 = vector.load %arg26[%c0_73, %c0_74] : memref<1x256xf32, #tpu.memory_space<vmem>>, vector<1x256xf32>
    %224 = vector.broadcast %223 : vector<1x256xf32> to vector<16x256xf32>
    %225 = arith.addf %222, %224 : vector<16x256xf32>
    %cst_75 = arith.constant 0.000000e+00 : f32
    %226 = vector.broadcast %cst_75 : f32 to vector<16x256xf32>
    %227 = arith.maximumf %225, %226 : vector<16x256xf32>
    %228 = vector.extract_strided_slice %227 {offsets = [0, 0], sizes = [16, 128], strides = [1, 1]} : vector<16x256xf32> to vector<16x128xf32>
    %229 = vector.extract_strided_slice %227 {offsets = [0, 128], sizes = [16, 128], strides = [1, 1]} : vector<16x256xf32> to vector<16x128xf32>
    %c0_76 = arith.constant 0 : index
    %c0_77 = arith.constant 0 : index
    %230 = vector.load %arg5[%c0_76, %c0_77] : memref<144x16xf32, #tpu.memory_space<vmem>>, vector<144x16xf32>
    %cst_78 = arith.constant dense<0.000000e+00> : vector<144x128xf32>
    %231 = tpu.matmul %230, %229, %cst_78 {dimension_numbers = #tpu.dot_dimension_numbers<[1], [0], [0], [1], [0, 0, 1, 1], [], []>} : vector<144x16xf32>, vector<16x128xf32>, vector<144x128xf32> -> vector<144x128xf32>
    %c0_79 = arith.constant 0 : index
    %c0_80 = arith.constant 0 : index
    %c0_81 = arith.constant 0 : index
    %232 = vector.load %arg27[%c0_79, %c0_80, %c0_81] : memref<9x1x128xf32, #tpu.memory_space<vmem>>, vector<9x1x128xf32>
    %233 = vector.extract_strided_slice %231 {offsets = [0, 0], sizes = [16, 128], strides = [1, 1]} : vector<144x128xf32> to vector<16x128xf32>
    %234 = vector.extract_strided_slice %232 {offsets = [0, 0, 0], sizes = [1, 1, 128], strides = [1, 1, 1]} : vector<9x1x128xf32> to vector<1x1x128xf32>
    %235 = vector.shape_cast %234 : vector<1x1x128xf32> to vector<1x128xf32>
    %236 = vector.broadcast %235 : vector<1x128xf32> to vector<16x128xf32>
    %237 = arith.mulf %233, %236 : vector<16x128xf32>
    %238 = vector.extract_strided_slice %231 {offsets = [16, 0], sizes = [16, 128], strides = [1, 1]} : vector<144x128xf32> to vector<16x128xf32>
    %239 = vector.extract_strided_slice %232 {offsets = [1, 0, 0], sizes = [1, 1, 128], strides = [1, 1, 1]} : vector<9x1x128xf32> to vector<1x1x128xf32>
    %240 = vector.shape_cast %239 : vector<1x1x128xf32> to vector<1x128xf32>
    %241 = vector.broadcast %240 : vector<1x128xf32> to vector<16x128xf32>
    %242 = arith.mulf %238, %241 : vector<16x128xf32>
    %243 = arith.addf %237, %242 : vector<16x128xf32>
    %244 = vector.extract_strided_slice %231 {offsets = [32, 0], sizes = [16, 128], strides = [1, 1]} : vector<144x128xf32> to vector<16x128xf32>
    %245 = vector.extract_strided_slice %232 {offsets = [2, 0, 0], sizes = [1, 1, 128], strides = [1, 1, 1]} : vector<9x1x128xf32> to vector<1x1x128xf32>
    %246 = vector.shape_cast %245 : vector<1x1x128xf32> to vector<1x128xf32>
    %247 = vector.broadcast %246 : vector<1x128xf32> to vector<16x128xf32>
    %248 = arith.mulf %244, %247 : vector<16x128xf32>
    %249 = arith.addf %243, %248 : vector<16x128xf32>
    %250 = vector.extract_strided_slice %231 {offsets = [48, 0], sizes = [16, 128], strides = [1, 1]} : vector<144x128xf32> to vector<16x128xf32>
    %251 = vector.extract_strided_slice %232 {offsets = [3, 0, 0], sizes = [1, 1, 128], strides = [1, 1, 1]} : vector<9x1x128xf32> to vector<1x1x128xf32>
    %252 = vector.shape_cast %251 : vector<1x1x128xf32> to vector<1x128xf32>
    %253 = vector.broadcast %252 : vector<1x128xf32> to vector<16x128xf32>
    %254 = arith.mulf %250, %253 : vector<16x128xf32>
    %255 = arith.addf %249, %254 : vector<16x128xf32>
    %256 = vector.extract_strided_slice %231 {offsets = [64, 0], sizes = [16, 128], strides = [1, 1]} : vector<144x128xf32> to vector<16x128xf32>
    %257 = vector.extract_strided_slice %232 {offsets = [4, 0, 0], sizes = [1, 1, 128], strides = [1, 1, 1]} : vector<9x1x128xf32> to vector<1x1x128xf32>
    %258 = vector.shape_cast %257 : vector<1x1x128xf32> to vector<1x128xf32>
    %259 = vector.broadcast %258 : vector<1x128xf32> to vector<16x128xf32>
    %260 = arith.mulf %256, %259 : vector<16x128xf32>
    %261 = arith.addf %255, %260 : vector<16x128xf32>
    %262 = vector.extract_strided_slice %231 {offsets = [80, 0], sizes = [16, 128], strides = [1, 1]} : vector<144x128xf32> to vector<16x128xf32>
    %263 = vector.extract_strided_slice %232 {offsets = [5, 0, 0], sizes = [1, 1, 128], strides = [1, 1, 1]} : vector<9x1x128xf32> to vector<1x1x128xf32>
    %264 = vector.shape_cast %263 : vector<1x1x128xf32> to vector<1x128xf32>
    %265 = vector.broadcast %264 : vector<1x128xf32> to vector<16x128xf32>
    %266 = arith.mulf %262, %265 : vector<16x128xf32>
    %267 = arith.addf %261, %266 : vector<16x128xf32>
    %268 = vector.extract_strided_slice %231 {offsets = [96, 0], sizes = [16, 128], strides = [1, 1]} : vector<144x128xf32> to vector<16x128xf32>
    %269 = vector.extract_strided_slice %232 {offsets = [6, 0, 0], sizes = [1, 1, 128], strides = [1, 1, 1]} : vector<9x1x128xf32> to vector<1x1x128xf32>
    %270 = vector.shape_cast %269 : vector<1x1x128xf32> to vector<1x128xf32>
    %271 = vector.broadcast %270 : vector<1x128xf32> to vector<16x128xf32>
    %272 = arith.mulf %268, %271 : vector<16x128xf32>
    %273 = arith.addf %267, %272 : vector<16x128xf32>
    %274 = vector.extract_strided_slice %231 {offsets = [112, 0], sizes = [16, 128], strides = [1, 1]} : vector<144x128xf32> to vector<16x128xf32>
    %275 = vector.extract_strided_slice %232 {offsets = [7, 0, 0], sizes = [1, 1, 128], strides = [1, 1, 1]} : vector<9x1x128xf32> to vector<1x1x128xf32>
    %276 = vector.shape_cast %275 : vector<1x1x128xf32> to vector<1x128xf32>
    %277 = vector.broadcast %276 : vector<1x128xf32> to vector<16x128xf32>
    %278 = arith.mulf %274, %277 : vector<16x128xf32>
    %279 = arith.addf %273, %278 : vector<16x128xf32>
    %280 = vector.extract_strided_slice %231 {offsets = [128, 0], sizes = [16, 128], strides = [1, 1]} : vector<144x128xf32> to vector<16x128xf32>
    %281 = vector.extract_strided_slice %232 {offsets = [8, 0, 0], sizes = [1, 1, 128], strides = [1, 1, 1]} : vector<9x1x128xf32> to vector<1x1x128xf32>
    %282 = vector.shape_cast %281 : vector<1x1x128xf32> to vector<1x128xf32>
    %283 = vector.broadcast %282 : vector<1x128xf32> to vector<16x128xf32>
    %284 = arith.mulf %280, %283 : vector<16x128xf32>
    %285 = arith.addf %279, %284 : vector<16x128xf32>
    %c0_82 = arith.constant 0 : index
    %c0_83 = arith.constant 0 : index
    %286 = vector.load %arg28[%c0_82, %c0_83] : memref<1x128xf32, #tpu.memory_space<vmem>>, vector<1x128xf32>
    %287 = vector.broadcast %286 : vector<1x128xf32> to vector<16x128xf32>
    %288 = arith.addf %285, %287 : vector<16x128xf32>
    %cst_84 = arith.constant 0.000000e+00 : f32
    %289 = vector.broadcast %cst_84 : f32 to vector<16x128xf32>
    %290 = arith.maximumf %288, %289 : vector<16x128xf32>
    %291 = arith.truncf %290 : vector<16x128xf32> to vector<16x128xbf16>
    %c0_85 = arith.constant 0 : index
    %c0_86 = arith.constant 0 : index
    %292 = vector.load %arg29[%c0_85, %c0_86] : memref<128x128xbf16, #tpu.memory_space<vmem>>, vector<128x128xbf16>
    %cst_87 = arith.constant dense<0.000000e+00> : vector<16x128xf32>
    %293 = tpu.matmul %291, %292, %cst_87 {dimension_numbers = #tpu.dot_dimension_numbers<[1], [0], [0], [1], [0, 0, 1, 1], [], []>} : vector<16x128xbf16>, vector<128x128xbf16>, vector<16x128xf32> -> vector<16x128xf32>
    %c0_88 = arith.constant 0 : index
    %c0_89 = arith.constant 0 : index
    %294 = vector.load %arg30[%c0_88, %c0_89] : memref<1x128xf32, #tpu.memory_space<vmem>>, vector<1x128xf32>
    %295 = vector.broadcast %294 : vector<1x128xf32> to vector<16x128xf32>
    %296 = arith.addf %293, %295 : vector<16x128xf32>
    %cst_90 = arith.constant 0.000000e+00 : f32
    %297 = vector.broadcast %cst_90 : f32 to vector<16x128xf32>
    %298 = arith.maximumf %296, %297 : vector<16x128xf32>
    %299 = tpu.concatenate %228, %298 in 1 : vector<16x128xf32>, vector<16x128xf32> -> vector<16x256xf32>
    %300 = arith.truncf %299 : vector<16x256xf32> to vector<16x256xbf16>
    %c0_91 = arith.constant 0 : index
    %c0_92 = arith.constant 0 : index
    %301 = vector.load %arg31[%c0_91, %c0_92] : memref<256x64xbf16, #tpu.memory_space<vmem>>, vector<256x64xbf16>
    %cst_93 = arith.constant dense<0.000000e+00> : vector<16x64xf32>
    %302 = tpu.matmul %300, %301, %cst_93 {dimension_numbers = #tpu.dot_dimension_numbers<[1], [0], [0], [1], [0, 0, 1, 1], [], []>} : vector<16x256xbf16>, vector<256x64xbf16>, vector<16x64xf32> -> vector<16x64xf32>
    %c0_94 = arith.constant 0 : index
    %c0_95 = arith.constant 0 : index
    %303 = vector.load %arg32[%c0_94, %c0_95] : memref<1x64xf32, #tpu.memory_space<vmem>>, vector<1x64xf32>
    %304 = vector.broadcast %303 : vector<1x64xf32> to vector<16x64xf32>
    %305 = arith.addf %302, %304 : vector<16x64xf32>
    %cst_96 = arith.constant 0.000000e+00 : f32
    %306 = vector.broadcast %cst_96 : f32 to vector<16x64xf32>
    %307 = arith.maximumf %305, %306 : vector<16x64xf32>
    %308 = arith.truncf %307 : vector<16x64xf32> to vector<16x64xbf16>
    %c0_97 = arith.constant 0 : index
    %c0_98 = arith.constant 0 : index
    %309 = vector.load %arg33[%c0_97, %c0_98] : memref<64x256xbf16, #tpu.memory_space<vmem>>, vector<64x256xbf16>
    %cst_99 = arith.constant dense<0.000000e+00> : vector<16x256xf32>
    %310 = tpu.matmul %308, %309, %cst_99 {dimension_numbers = #tpu.dot_dimension_numbers<[1], [0], [0], [1], [0, 0, 1, 1], [], []>} : vector<16x64xbf16>, vector<64x256xbf16>, vector<16x256xf32> -> vector<16x256xf32>
    %c0_100 = arith.constant 0 : index
    %c0_101 = arith.constant 0 : index
    %311 = vector.load %arg34[%c0_100, %c0_101] : memref<1x256xf32, #tpu.memory_space<vmem>>, vector<1x256xf32>
    %312 = vector.broadcast %311 : vector<1x256xf32> to vector<16x256xf32>
    %313 = arith.addf %310, %312 : vector<16x256xf32>
    %cst_102 = arith.constant 0.000000e+00 : f32
    %314 = vector.broadcast %cst_102 : f32 to vector<16x256xf32>
    %315 = arith.maximumf %313, %314 : vector<16x256xf32>
    %316 = vector.extract_strided_slice %315 {offsets = [0, 0], sizes = [16, 128], strides = [1, 1]} : vector<16x256xf32> to vector<16x128xf32>
    %317 = vector.extract_strided_slice %315 {offsets = [0, 128], sizes = [16, 128], strides = [1, 1]} : vector<16x256xf32> to vector<16x128xf32>
    %c0_103 = arith.constant 0 : index
    %c0_104 = arith.constant 0 : index
    %318 = vector.load %arg5[%c0_103, %c0_104] : memref<144x16xf32, #tpu.memory_space<vmem>>, vector<144x16xf32>
    %cst_105 = arith.constant dense<0.000000e+00> : vector<144x128xf32>
    %319 = tpu.matmul %318, %317, %cst_105 {dimension_numbers = #tpu.dot_dimension_numbers<[1], [0], [0], [1], [0, 0, 1, 1], [], []>} : vector<144x16xf32>, vector<16x128xf32>, vector<144x128xf32> -> vector<144x128xf32>
    %c0_106 = arith.constant 0 : index
    %c0_107 = arith.constant 0 : index
    %c0_108 = arith.constant 0 : index
    %320 = vector.load %arg35[%c0_106, %c0_107, %c0_108] : memref<9x1x128xf32, #tpu.memory_space<vmem>>, vector<9x1x128xf32>
    %321 = vector.extract_strided_slice %319 {offsets = [0, 0], sizes = [16, 128], strides = [1, 1]} : vector<144x128xf32> to vector<16x128xf32>
    %322 = vector.extract_strided_slice %320 {offsets = [0, 0, 0], sizes = [1, 1, 128], strides = [1, 1, 1]} : vector<9x1x128xf32> to vector<1x1x128xf32>
    %323 = vector.shape_cast %322 : vector<1x1x128xf32> to vector<1x128xf32>
    %324 = vector.broadcast %323 : vector<1x128xf32> to vector<16x128xf32>
    %325 = arith.mulf %321, %324 : vector<16x128xf32>
    %326 = vector.extract_strided_slice %319 {offsets = [16, 0], sizes = [16, 128], strides = [1, 1]} : vector<144x128xf32> to vector<16x128xf32>
    %327 = vector.extract_strided_slice %320 {offsets = [1, 0, 0], sizes = [1, 1, 128], strides = [1, 1, 1]} : vector<9x1x128xf32> to vector<1x1x128xf32>
    %328 = vector.shape_cast %327 : vector<1x1x128xf32> to vector<1x128xf32>
    %329 = vector.broadcast %328 : vector<1x128xf32> to vector<16x128xf32>
    %330 = arith.mulf %326, %329 : vector<16x128xf32>
    %331 = arith.addf %325, %330 : vector<16x128xf32>
    %332 = vector.extract_strided_slice %319 {offsets = [32, 0], sizes = [16, 128], strides = [1, 1]} : vector<144x128xf32> to vector<16x128xf32>
    %333 = vector.extract_strided_slice %320 {offsets = [2, 0, 0], sizes = [1, 1, 128], strides = [1, 1, 1]} : vector<9x1x128xf32> to vector<1x1x128xf32>
    %334 = vector.shape_cast %333 : vector<1x1x128xf32> to vector<1x128xf32>
    %335 = vector.broadcast %334 : vector<1x128xf32> to vector<16x128xf32>
    %336 = arith.mulf %332, %335 : vector<16x128xf32>
    %337 = arith.addf %331, %336 : vector<16x128xf32>
    %338 = vector.extract_strided_slice %319 {offsets = [48, 0], sizes = [16, 128], strides = [1, 1]} : vector<144x128xf32> to vector<16x128xf32>
    %339 = vector.extract_strided_slice %320 {offsets = [3, 0, 0], sizes = [1, 1, 128], strides = [1, 1, 1]} : vector<9x1x128xf32> to vector<1x1x128xf32>
    %340 = vector.shape_cast %339 : vector<1x1x128xf32> to vector<1x128xf32>
    %341 = vector.broadcast %340 : vector<1x128xf32> to vector<16x128xf32>
    %342 = arith.mulf %338, %341 : vector<16x128xf32>
    %343 = arith.addf %337, %342 : vector<16x128xf32>
    %344 = vector.extract_strided_slice %319 {offsets = [64, 0], sizes = [16, 128], strides = [1, 1]} : vector<144x128xf32> to vector<16x128xf32>
    %345 = vector.extract_strided_slice %320 {offsets = [4, 0, 0], sizes = [1, 1, 128], strides = [1, 1, 1]} : vector<9x1x128xf32> to vector<1x1x128xf32>
    %346 = vector.shape_cast %345 : vector<1x1x128xf32> to vector<1x128xf32>
    %347 = vector.broadcast %346 : vector<1x128xf32> to vector<16x128xf32>
    %348 = arith.mulf %344, %347 : vector<16x128xf32>
    %349 = arith.addf %343, %348 : vector<16x128xf32>
    %350 = vector.extract_strided_slice %319 {offsets = [80, 0], sizes = [16, 128], strides = [1, 1]} : vector<144x128xf32> to vector<16x128xf32>
    %351 = vector.extract_strided_slice %320 {offsets = [5, 0, 0], sizes = [1, 1, 128], strides = [1, 1, 1]} : vector<9x1x128xf32> to vector<1x1x128xf32>
    %352 = vector.shape_cast %351 : vector<1x1x128xf32> to vector<1x128xf32>
    %353 = vector.broadcast %352 : vector<1x128xf32> to vector<16x128xf32>
    %354 = arith.mulf %350, %353 : vector<16x128xf32>
    %355 = arith.addf %349, %354 : vector<16x128xf32>
    %356 = vector.extract_strided_slice %319 {offsets = [96, 0], sizes = [16, 128], strides = [1, 1]} : vector<144x128xf32> to vector<16x128xf32>
    %357 = vector.extract_strided_slice %320 {offsets = [6, 0, 0], sizes = [1, 1, 128], strides = [1, 1, 1]} : vector<9x1x128xf32> to vector<1x1x128xf32>
    %358 = vector.shape_cast %357 : vector<1x1x128xf32> to vector<1x128xf32>
    %359 = vector.broadcast %358 : vector<1x128xf32> to vector<16x128xf32>
    %360 = arith.mulf %356, %359 : vector<16x128xf32>
    %361 = arith.addf %355, %360 : vector<16x128xf32>
    %362 = vector.extract_strided_slice %319 {offsets = [112, 0], sizes = [16, 128], strides = [1, 1]} : vector<144x128xf32> to vector<16x128xf32>
    %363 = vector.extract_strided_slice %320 {offsets = [7, 0, 0], sizes = [1, 1, 128], strides = [1, 1, 1]} : vector<9x1x128xf32> to vector<1x1x128xf32>
    %364 = vector.shape_cast %363 : vector<1x1x128xf32> to vector<1x128xf32>
    %365 = vector.broadcast %364 : vector<1x128xf32> to vector<16x128xf32>
    %366 = arith.mulf %362, %365 : vector<16x128xf32>
    %367 = arith.addf %361, %366 : vector<16x128xf32>
    %368 = vector.extract_strided_slice %319 {offsets = [128, 0], sizes = [16, 128], strides = [1, 1]} : vector<144x128xf32> to vector<16x128xf32>
    %369 = vector.extract_strided_slice %320 {offsets = [8, 0, 0], sizes = [1, 1, 128], strides = [1, 1, 1]} : vector<9x1x128xf32> to vector<1x1x128xf32>
    %370 = vector.shape_cast %369 : vector<1x1x128xf32> to vector<1x128xf32>
    %371 = vector.broadcast %370 : vector<1x128xf32> to vector<16x128xf32>
    %372 = arith.mulf %368, %371 : vector<16x128xf32>
    %373 = arith.addf %367, %372 : vector<16x128xf32>
    %c0_109 = arith.constant 0 : index
    %c0_110 = arith.constant 0 : index
    %374 = vector.load %arg36[%c0_109, %c0_110] : memref<1x128xf32, #tpu.memory_space<vmem>>, vector<1x128xf32>
    %375 = vector.broadcast %374 : vector<1x128xf32> to vector<16x128xf32>
    %376 = arith.addf %373, %375 : vector<16x128xf32>
    %cst_111 = arith.constant 0.000000e+00 : f32
    %377 = vector.broadcast %cst_111 : f32 to vector<16x128xf32>
    %378 = arith.maximumf %376, %377 : vector<16x128xf32>
    %379 = arith.truncf %378 : vector<16x128xf32> to vector<16x128xbf16>
    %c0_112 = arith.constant 0 : index
    %c0_113 = arith.constant 0 : index
    %380 = vector.load %arg37[%c0_112, %c0_113] : memref<128x128xbf16, #tpu.memory_space<vmem>>, vector<128x128xbf16>
    %cst_114 = arith.constant dense<0.000000e+00> : vector<16x128xf32>
    %381 = tpu.matmul %379, %380, %cst_114 {dimension_numbers = #tpu.dot_dimension_numbers<[1], [0], [0], [1], [0, 0, 1, 1], [], []>} : vector<16x128xbf16>, vector<128x128xbf16>, vector<16x128xf32> -> vector<16x128xf32>
    %c0_115 = arith.constant 0 : index
    %c0_116 = arith.constant 0 : index
    %382 = vector.load %arg38[%c0_115, %c0_116] : memref<1x128xf32, #tpu.memory_space<vmem>>, vector<1x128xf32>
    %383 = vector.broadcast %382 : vector<1x128xf32> to vector<16x128xf32>
    %384 = arith.addf %381, %383 : vector<16x128xf32>
    %cst_117 = arith.constant 0.000000e+00 : f32
    %385 = vector.broadcast %cst_117 : f32 to vector<16x128xf32>
    %386 = arith.maximumf %384, %385 : vector<16x128xf32>
    %387 = tpu.concatenate %316, %386 in 1 : vector<16x128xf32>, vector<16x128xf32> -> vector<16x256xf32>
    %388 = arith.addf %387, %299 : vector<16x256xf32>
    %c0_118 = arith.constant 0 : index
    %c0_119 = arith.constant 0 : index
    %c0_120 = arith.constant 0 : index
    %389 = vector.load %arg39[%c0_118, %c0_119, %c0_120] : memref<1x16x256xf32, #tpu.memory_space<vmem>>, vector<1x16x256xf32>
    %390 = vector.shape_cast %389 : vector<1x16x256xf32> to vector<16x256xf32>
    %391 = vector.shape_cast %388 : vector<16x256xf32> to vector<1x16x256xf32>
    tpu.vector_store %arg39[%c0_118, %c0_119, %c0_120], %391 {strides = array<i32>} : memref<1x16x256xf32, #tpu.memory_space<vmem>>, vector<1x16x256xf32>,
    return
  }
  func.func @transform_0(%arg0: i32) -> (i32, i32, i32) {
    %c0_i32 = arith.constant 0 : i32
    %c0_i32_0 = arith.constant 0 : i32
    %c0_i32_1 = arith.constant 0 : i32
    return %arg0, %c0_i32, %c0_i32_0 : i32, i32, i32
  }
  func.func @transform_1(%arg0: i32) -> (i32, i32) {
    %c0_i32 = arith.constant 0 : i32
    %c0_i32_0 = arith.constant 0 : i32
    %c0_i32_1 = arith.constant 0 : i32
    return %c0_i32, %c0_i32_0 : i32, i32
  }
  func.func @transform_2(%arg0: i32) -> (i32, i32) {
    %c0_i32 = arith.constant 0 : i32
    %c0_i32_0 = arith.constant 0 : i32
    %c0_i32_1 = arith.constant 0 : i32
    return %c0_i32, %c0_i32_0 : i32, i32
  }
  func.func @transform_3(%arg0: i32) -> (i32, i32) {
    %c0_i32 = arith.constant 0 : i32
    %c0_i32_0 = arith.constant 0 : i32
    %c0_i32_1 = arith.constant 0 : i32
    return %c0_i32, %c0_i32_0 : i32, i32
  }
  func.func @transform_4(%arg0: i32) -> (i32, i32) {
    %c0_i32 = arith.constant 0 : i32
    %c0_i32_0 = arith.constant 0 : i32
    %c0_i32_1 = arith.constant 0 : i32
    return %c0_i32, %c0_i32_0 : i32, i32
  }
  func.func @transform_5(%arg0: i32) -> (i32, i32) {
    %c0_i32 = arith.constant 0 : i32
    %c0_i32_0 = arith.constant 0 : i32
    %c0_i32_1 = arith.constant 0 : i32
    return %c0_i32, %c0_i32_0 : i32, i32
  }
  func.func @transform_6(%arg0: i32) -> (i32, i32) {
    %c0_i32 = arith.constant 0 : i32
    %c0_i32_0 = arith.constant 0 : i32
    %c0_i32_1 = arith.constant 0 : i32
    return %c0_i32, %c0_i32_0 : i32, i32
  }
  func.func @transform_7(%arg0: i32) -> (i32, i32) {
    %c0_i32 = arith.constant 0 : i32
    %c0_i32_0 = arith.constant 0 : i32
    %c0_i32_1 = arith.constant 0 : i32
    return %c0_i32, %c0_i32_0 : i32, i32
  }
  func.func @transform_8(%arg0: i32) -> (i32, i32) {
    %c0_i32 = arith.constant 0 : i32
    %c0_i32_0 = arith.constant 0 : i32
    %c0_i32_1 = arith.constant 0 : i32
    return %c0_i32, %c0_i32_0 : i32, i32
  }
  func.func @transform_9(%arg0: i32) -> (i32, i32) {
    %c0_i32 = arith.constant 0 : i32
    %c0_i32_0 = arith.constant 0 : i32
    %c0_i32_1 = arith.constant 0 : i32
    return %c0_i32, %c0_i32_0 : i32, i32
  }
  func.func @transform_10(%arg0: i32) -> (i32, i32, i32) {
    %c0_i32 = arith.constant 0 : i32
    %c0_i32_0 = arith.constant 0 : i32
    %c0_i32_1 = arith.constant 0 : i32
    %c0_i32_2 = arith.constant 0 : i32
    return %c0_i32, %c0_i32_0, %c0_i32_1 : i32, i32, i32
  }
  func.func @transform_11(%arg0: i32) -> (i32, i32) {
    %c0_i32 = arith.constant 0 : i32
    %c0_i32_0 = arith.constant 0 : i32
    %c0_i32_1 = arith.constant 0 : i32
    return %c0_i32, %c0_i32_0 : i32, i32
  }
  func.func @transform_12(%arg0: i32) -> (i32, i32) {
    %c0_i32 = arith.constant 0 : i32
    %c0_i32_0 = arith.constant 0 : i32
    %c0_i32_1 = arith.constant 0 : i32
    return %c0_i32, %c0_i32_0 : i32, i32
  }
  func.func @transform_13(%arg0: i32) -> (i32, i32) {
    %c0_i32 = arith.constant 0 : i32
    %c0_i32_0 = arith.constant 0 : i32
    %c0_i32_1 = arith.constant 0 : i32
    return %c0_i32, %c0_i32_0 : i32, i32
  }
  func.func @transform_14(%arg0: i32) -> (i32, i32) {
    %c0_i32 = arith.constant 0 : i32
    %c0_i32_0 = arith.constant 0 : i32
    %c0_i32_1 = arith.constant 0 : i32
    return %c0_i32, %c0_i32_0 : i32, i32
  }
  func.func @transform_15(%arg0: i32) -> (i32, i32) {
    %c0_i32 = arith.constant 0 : i32
    %c0_i32_0 = arith.constant 0 : i32
    %c0_i32_1 = arith.constant 0 : i32
    return %c0_i32, %c0_i32_0 : i32, i32
  }
  func.func @transform_16(%arg0: i32) -> (i32, i32) {
    %c0_i32 = arith.constant 0 : i32
    %c0_i32_0 = arith.constant 0 : i32
    %c0_i32_1 = arith.constant 0 : i32
    return %c0_i32, %c0_i32_0 : i32, i32
  }
  func.func @transform_17(%arg0: i32) -> (i32, i32) {
    %c0_i32 = arith.constant 0 : i32
    %c0_i32_0 = arith.constant 0 : i32
    %c0_i32_1 = arith.constant 0 : i32
    return %c0_i32, %c0_i32_0 : i32, i32
  }
  func.func @transform_18(%arg0: i32) -> (i32, i32, i32) {
    %c0_i32 = arith.constant 0 : i32
    %c0_i32_0 = arith.constant 0 : i32
    %c0_i32_1 = arith.constant 0 : i32
    %c0_i32_2 = arith.constant 0 : i32
    return %c0_i32, %c0_i32_0, %c0_i32_1 : i32, i32, i32
  }
  func.func @transform_19(%arg0: i32) -> (i32, i32) {
    %c0_i32 = arith.constant 0 : i32
    %c0_i32_0 = arith.constant 0 : i32
    %c0_i32_1 = arith.constant 0 : i32
    return %c0_i32, %c0_i32_0 : i32, i32
  }
  func.func @transform_20(%arg0: i32) -> (i32, i32) {
    %c0_i32 = arith.constant 0 : i32
    %c0_i32_0 = arith.constant 0 : i32
    %c0_i32_1 = arith.constant 0 : i32
    return %c0_i32, %c0_i32_0 : i32, i32
  }
  func.func @transform_21(%arg0: i32) -> (i32, i32) {
    %c0_i32 = arith.constant 0 : i32
    %c0_i32_0 = arith.constant 0 : i32
    %c0_i32_1 = arith.constant 0 : i32
    return %c0_i32, %c0_i32_0 : i32, i32
  }
  func.func @transform_22(%arg0: i32) -> (i32, i32) {
    %c0_i32 = arith.constant 0 : i32
    %c0_i32_0 = arith.constant 0 : i32
    %c0_i32_1 = arith.constant 0 : i32
    return %c0_i32, %c0_i32_0 : i32, i32
  }
  func.func @transform_23(%arg0: i32) -> (i32, i32) {
    %c0_i32 = arith.constant 0 : i32
    %c0_i32_0 = arith.constant 0 : i32
    %c0_i32_1 = arith.constant 0 : i32
    return %c0_i32, %c0_i32_0 : i32, i32
  }
  func.func @transform_24(%arg0: i32) -> (i32, i32) {
    %c0_i32 = arith.constant 0 : i32
    %c0_i32_0 = arith.constant 0 : i32
    %c0_i32_1 = arith.constant 0 : i32
    return %c0_i32, %c0_i32_0 : i32, i32
  }
  func.func @transform_25(%arg0: i32) -> (i32, i32) {
    %c0_i32 = arith.constant 0 : i32
    %c0_i32_0 = arith.constant 0 : i32
    %c0_i32_1 = arith.constant 0 : i32
    return %c0_i32, %c0_i32_0 : i32, i32
  }
  func.func @transform_26(%arg0: i32) -> (i32, i32, i32) {
    %c0_i32 = arith.constant 0 : i32
    %c0_i32_0 = arith.constant 0 : i32
    %c0_i32_1 = arith.constant 0 : i32
    %c0_i32_2 = arith.constant 0 : i32
    return %c0_i32, %c0_i32_0, %c0_i32_1 : i32, i32, i32
  }
  func.func @transform_27(%arg0: i32) -> (i32, i32) {
    %c0_i32 = arith.constant 0 : i32
    %c0_i32_0 = arith.constant 0 : i32
    %c0_i32_1 = arith.constant 0 : i32
    return %c0_i32, %c0_i32_0 : i32, i32
  }
  func.func @transform_28(%arg0: i32) -> (i32, i32) {
    %c0_i32 = arith.constant 0 : i32
    %c0_i32_0 = arith.constant 0 : i32
    %c0_i32_1 = arith.constant 0 : i32
    return %c0_i32, %c0_i32_0 : i32, i32
  }
  func.func @transform_29(%arg0: i32) -> (i32, i32) {
    %c0_i32 = arith.constant 0 : i32
    %c0_i32_0 = arith.constant 0 : i32
    %c0_i32_1 = arith.constant 0 : i32
    return %c0_i32, %c0_i32_0 : i32, i32
  }
  func.func @transform_30(%arg0: i32) -> (i32, i32) {
    %c0_i32 = arith.constant 0 : i32
    %c0_i32_0 = arith.constant 0 : i32
    %c0_i32_1 = arith.constant 0 : i32
    return %c0_i32, %c0_i32_0 : i32, i32
  }
  func.func @transform_31(%arg0: i32) -> (i32, i32) {
    %c0_i32 = arith.constant 0 : i32
    %c0_i32_0 = arith.constant 0 : i32
    %c0_i32_1 = arith.constant 0 : i32
    return %c0_i32, %c0_i32_0 : i32, i32
  }
  func.func @transform_32(%arg0: i32) -> (i32, i32) {
    %c0_i32 = arith.constant 0 : i32
    %c0_i32_0 = arith.constant 0 : i32
    %c0_i32_1 = arith.constant 0 : i32
    return %c0_i32, %c0_i32_0 : i32, i32
  }
  func.func @transform_33(%arg0: i32) -> (i32, i32) {
    %c0_i32 = arith.constant 0 : i32
    %c0_i32_0 = arith.constant 0 : i32
    %c0_i32_1 = arith.constant 0 : i32
    return %c0_i32, %c0_i32_0 : i32, i32
  }
  func.func @transform_34(%arg0: i32) -> (i32, i32, i32) {
    %c0_i32 = arith.constant 0 : i32
    %c0_i32_0 = arith.constant 0 : i32
    %c0_i32_1 = arith.constant 0 : i32
    %c0_i32_2 = arith.constant 0 : i32
    return %c0_i32, %c0_i32_0, %c0_i32_1 : i32, i32, i32
  }
  func.func @transform_35(%arg0: i32) -> (i32, i32) {
    %c0_i32 = arith.constant 0 : i32
    %c0_i32_0 = arith.constant 0 : i32
    %c0_i32_1 = arith.constant 0 : i32
    return %c0_i32, %c0_i32_0 : i32, i32
  }
  func.func @transform_36(%arg0: i32) -> (i32, i32) {
    %c0_i32 = arith.constant 0 : i32
    %c0_i32_0 = arith.constant 0 : i32
    %c0_i32_1 = arith.constant 0 : i32
    return %c0_i32, %c0_i32_0 : i32, i32
  }
  func.func @transform_37(%arg0: i32) -> (i32, i32) {
    %c0_i32 = arith.constant 0 : i32
    %c0_i32_0 = arith.constant 0 : i32
    %c0_i32_1 = arith.constant 0 : i32
    return %c0_i32, %c0_i32_0 : i32, i32
  }
  func.func @transform_38(%arg0: i32) -> (i32, i32, i32) {
    %c0_i32 = arith.constant 0 : i32
    %c0_i32_0 = arith.constant 0 : i32
    %c0_i32_1 = arith.constant 0 : i32
    return %arg0, %c0_i32, %c0_i32_0 : i32, i32, i32
  }
}

</mosaic_0001>

<llo_original>
// kernel: _lambda_.1
$region0: #{_lambda_.1}
  #allocation0 [shape = 'u32[]', space=smem, size = 0x4, offset = 0x4, fixed_abs, tag = 'smem constant byte address 0x4 - core index']
  #allocation1 [shape = 'u32[72,128]{1,0:T(1,128)}', space=vmem, size = 0x9000, scoped, tag = 'internal scratch']
  %s0 = inlined_call_operand.smem [shape: u32[39], index: -1, kind: input, shape index: {}]
  %s1 = sld [smem:[%s0]]
  %s2 = scalar_lea.smem %s0, 1
  %s3 = sld [smem:[%s2]]
  %s4 = scalar_lea.smem %s0, 2
  %s5 = sld [smem:[%s4]]
  %s6 = scalar_lea.smem %s0, 3
  %s7 = sld [smem:[%s6]]
  %s8 = scalar_lea.smem %s0, 4
  %s9 = sld [smem:[%s8]]
  %s10 = scalar_lea.smem %s0, 5
  %s11 = sld [smem:[%s10]]
  %s12 = scalar_lea.smem %s0, 6
  %s13 = sld [smem:[%s12]]
  %s14 = scalar_lea.smem %s0, 7
  %s15 = sld [smem:[%s14]]
  %s16 = scalar_lea.smem %s0, 8
  %s17 = sld [smem:[%s16]]
  %s18 = scalar_lea.smem %s0, 9
  %s19 = sld [smem:[%s18]]
  %s20 = scalar_lea.smem %s0, 10
  %s21 = sld [smem:[%s20]]
  %s22 = scalar_lea.smem %s0, 11
  %s23 = sld [smem:[%s22]]
  %s24 = scalar_lea.smem %s0, 12
  %s25 = sld [smem:[%s24]]
  %s26 = scalar_lea.smem %s0, 13
  %s27 = sld [smem:[%s26]]
  %s28 = scalar_lea.smem %s0, 14
  %s29 = sld [smem:[%s28]]
  %s30 = scalar_lea.smem %s0, 15
  %s31 = sld [smem:[%s30]]
  %s32 = scalar_lea.smem %s0, 16
  %s33 = sld [smem:[%s32]]
  %s34 = scalar_lea.smem %s0, 17
  %s35 = sld [smem:[%s34]]
  %s36 = scalar_lea.smem %s0, 18
  %s37 = sld [smem:[%s36]]
  %s38 = scalar_lea.smem %s0, 19
  %s39 = sld [smem:[%s38]]
  %s40 = scalar_lea.smem %s0, 20
  %s41 = sld [smem:[%s40]]
  %s42 = scalar_lea.smem %s0, 21
  %s43 = sld [smem:[%s42]]
  %s44 = scalar_lea.smem %s0, 22
  %s45 = sld [smem:[%s44]]
  %s46 = scalar_lea.smem %s0, 23
  %s47 = sld [smem:[%s46]]
  %s48 = scalar_lea.smem %s0, 24
  %s49 = sld [smem:[%s48]]
  %s50 = scalar_lea.smem %s0, 25
  %s51 = sld [smem:[%s50]]
  %s52 = scalar_lea.smem %s0, 26
  %s53 = sld [smem:[%s52]]
  %s54 = scalar_lea.smem %s0, 27
  %s55 = sld [smem:[%s54]]
  %s56 = scalar_lea.smem %s0, 28
  %s57 = sld [smem:[%s56]]
  %s58 = scalar_lea.smem %s0, 29
  %s59 = sld [smem:[%s58]]
  %s60 = scalar_lea.smem %s0, 30
  %s61 = sld [smem:[%s60]]
  %s62 = scalar_lea.smem %s0, 31
  %s63 = sld [smem:[%s62]]
  %s64 = scalar_lea.smem %s0, 32
  %s65 = sld [smem:[%s64]]
  %s66 = scalar_lea.smem %s0, 33
  %s67 = sld [smem:[%s66]]
  %s68 = scalar_lea.smem %s0, 34
  %s69 = sld [smem:[%s68]]
  %s70 = scalar_lea.smem %s0, 35
  %s71 = sld [smem:[%s70]]
  %s72 = scalar_lea.smem %s0, 36
  %s73 = sld [smem:[%s72]]
  %s74 = scalar_lea.smem %s0, 37
  %s75 = sld [smem:[%s74]]
  %s76 = scalar_lea.smem %s0, 38
  %s77 = sld [smem:[%s76]]
  %s78 = sld [smem:[#allocation0]]
  $region185: #{_lambda_.1} parent=0
    _
  %s80 = ssub.s32 1, %s78
  %s81 = scalar_select 0, %s80, %s78
  loop: start=0, step=1, limit=4
  $region2: #{_lambda_.1} parent=0 // loop_pre_header
    _
  $region3: #{_lambda_.1} parent=0 // loop_header
    %s83 = sphi 0, %s87
    %p84 = scmp.ge.s32.totalorder %s83, 4
    %s93 = sphi 0, %s95
    %s96 = sphi 0, %s93
    %s97 = sphi 0, %s96
    %s113 = sphi 0, %s97
    %s117 = sphi 0, %s117
    %s119 = sphi 0, %s117
    %s120 = sphi 0, %s119
    %s134 = sphi 0, %s120
    %s138 = sphi 0, %s138
    %s140 = sphi 0, %s138
    %s141 = sphi 0, %s140
    %s155 = sphi 0, %s141
    %s159 = sphi 0, %s159
    %s161 = sphi 0, %s159
    %s162 = sphi 0, %s161
    %s176 = sphi 0, %s162
    %s180 = sphi 0, %s180
    %s182 = sphi 0, %s180
    %s183 = sphi 0, %s182
    %s197 = sphi 0, %s183
    %s201 = sphi 0, %s201
    %s203 = sphi 0, %s201
    %s204 = sphi 0, %s203
    %s218 = sphi 0, %s204
    %s222 = sphi 0, %s222
    %s224 = sphi 0, %s222
    %s225 = sphi 0, %s224
    %s239 = sphi 0, %s225
    %s243 = sphi 0, %s243
    %s245 = sphi 0, %s243
    %s246 = sphi 0, %s245
    %s260 = sphi 0, %s246
    %s264 = sphi 0, %s264
    %s266 = sphi 0, %s264
    %s267 = sphi 0, %s266
    %s281 = sphi 0, %s267
    %s285 = sphi 0, %s285
    %s287 = sphi 0, %s285
    %s288 = sphi 0, %s287
    %s302 = sphi 0, %s288
    %s306 = sphi 0, %s306
    %s308 = sphi 0, %s306
    %s309 = sphi 0, %s308
    %s323 = sphi 0, %s309
    %s327 = sphi 0, %s327
    %s329 = sphi 0, %s327
    %s330 = sphi 0, %s329
    %s344 = sphi 0, %s330
    %s348 = sphi 0, %s348
    %s350 = sphi 0, %s348
    %s351 = sphi 0, %s350
    %s365 = sphi 0, %s351
    %s369 = sphi 0, %s369
    %s371 = sphi 0, %s369
    %s372 = sphi 0, %s371
    %s386 = sphi 0, %s372
    %s390 = sphi 0, %s390
    %s392 = sphi 0, %s390
    %s393 = sphi 0, %s392
    %s407 = sphi 0, %s393
    %s411 = sphi 0, %s411
    %s413 = sphi 0, %s411
    %s414 = sphi 0, %s413
    %s428 = sphi 0, %s414
    %s432 = sphi 0, %s432
    %s434 = sphi 0, %s432
    %s435 = sphi 0, %s434
    %s449 = sphi 0, %s435
    %s453 = sphi 0, %s453
    %s455 = sphi 0, %s453
    %s456 = sphi 0, %s455
    %s470 = sphi 0, %s456
    %s474 = sphi 0, %s474
    %s476 = sphi 0, %s474
    %s477 = sphi 0, %s476
    %s491 = sphi 0, %s477
    %s495 = sphi 0, %s495
    %s497 = sphi 0, %s495
    %s498 = sphi 0, %s497
    %s512 = sphi 0, %s498
    %s516 = sphi 0, %s516
    %s518 = sphi 0, %s516
    %s519 = sphi 0, %s518
    %s533 = sphi 0, %s519
    %s537 = sphi 0, %s537
    %s539 = sphi 0, %s537
    %s540 = sphi 0, %s539
    %s554 = sphi 0, %s540
    %s558 = sphi 0, %s558
    %s560 = sphi 0, %s558
    %s561 = sphi 0, %s560
    %s575 = sphi 0, %s561
    %s579 = sphi 0, %s579
    %s581 = sphi 0, %s579
    %s582 = sphi 0, %s581
    %s596 = sphi 0, %s582
    %s600 = sphi 0, %s600
    %s602 = sphi 0, %s600
    %s603 = sphi 0, %s602
    %s617 = sphi 0, %s603
    %s621 = sphi 0, %s621
    %s623 = sphi 0, %s621
    %s624 = sphi 0, %s623
    %s638 = sphi 0, %s624
    %s642 = sphi 0, %s642
    %s644 = sphi 0, %s642
    %s645 = sphi 0, %s644
    %s659 = sphi 0, %s645
    %s663 = sphi 0, %s663
    %s665 = sphi 0, %s663
    %s666 = sphi 0, %s665
    %s680 = sphi 0, %s666
    %s684 = sphi 0, %s684
    %s686 = sphi 0, %s684
    %s687 = sphi 0, %s686
    %s701 = sphi 0, %s687
    %s705 = sphi 0, %s705
    %s707 = sphi 0, %s705
    %s708 = sphi 0, %s707
    %s722 = sphi 0, %s708
    %s726 = sphi 0, %s726
    %s728 = sphi 0, %s726
    %s729 = sphi 0, %s728
    %s743 = sphi 0, %s729
    %s747 = sphi 0, %s747
    %s749 = sphi 0, %s747
    %s750 = sphi 0, %s749
    %s764 = sphi 0, %s750
    %s768 = sphi 0, %s768
    %s770 = sphi 0, %s768
    %s771 = sphi 0, %s770
    %s785 = sphi 0, %s771
    %s789 = sphi 0, %s789
    %s791 = sphi 0, %s789
    %s792 = sphi 0, %s791
    %s806 = sphi 0, %s792
    %s810 = sphi 0, %s810
    %s812 = sphi 0, %s810
    %s813 = sphi 0, %s812
    %s827 = sphi 0, %s813
    %s831 = sphi 0, %s831
    %s833 = sphi 0, %s831
    %s834 = sphi 0, %s833
    %s848 = sphi 0, %s834
    %s852 = sphi 0, %s852
    %s854 = sphi 0, %s852
    %s855 = sphi 0, %s854
    %s869 = sphi 0, %s855
    %s873 = sphi 0, %s873
    %s875 = sphi 0, %s873
    %s876 = sphi 0, %s875
    %s890 = sphi 0, %s876
    %s896 = sphi 0, %s898
    %s899 = sphi 0, %s896
    %s900 = sphi 0, %s899
    %s916 = sphi 0, %s900
  $region4: #{_lambda_.1} parent=0 // loop_header_branch
    %86 = sbr.rel (%p84) target = $region8
  $region5: #{_lambda_.1} parent=0 // loop_body
    %s88 = ssub.s32 %s83, 1
    %s89 = ssub.s32 %s83, 2
    %s90 = sadd.s32 %s83, 1
    %s91 = ssub.s32 %s83, %s90
    %p92 = scmp.eq.s32.totalorder %s91, 0
    %s94 = sadd.s32 %s93, 1
    %s95 = scalar_select %p92, %s93, %s94
    %p98 = pneg %p92
    %p99 = scmp.eq.s32.totalorder %s83, 1
    %p100 = por %p98, %p99
    %p101 = scmp.ne.s32.totalorder %s93, %s96
    %p102 = scmp.eq.s32.totalorder %s83, 0
    %p103 = por %p101, %p102
    %p104 = scmp.ne.s32.totalorder %s93, %s96
    %p105 = scmp.eq.s32.totalorder %s88, 1
    %p106 = por %p104, %p105
    %p107 = scmp.ne.s32.totalorder %s96, %s97
    %p108 = scmp.eq.s32.totalorder %s88, 0
    %p109 = por %p107, %p108
    %p110 = scmp.ne.s32.totalorder %s96, %s97
    %p111 = scmp.eq.s32.totalorder %s89, 1
    %p112 = por %p110, %p111
    %p114 = scmp.ne.s32.totalorder %s97, %s113
    %p115 = scmp.eq.s32.totalorder %s89, 0
    %p116 = por %p114, %p115
    %s118 = sadd.s32 %s117, 1
    %p121 = scmp.eq.s32.totalorder %s83, 1
    %p122 = scmp.ne.s32.totalorder %s117, %s119
    %p123 = scmp.eq.s32.totalorder %s83, 0
    %p124 = por %p122, %p123
    %p125 = scmp.ne.s32.totalorder %s117, %s119
    %p126 = scmp.eq.s32.totalorder %s88, 1
    %p127 = por %p125, %p126
    %p128 = scmp.ne.s32.totalorder %s119, %s120
    %p129 = scmp.eq.s32.totalorder %s88, 0
    %p130 = por %p128, %p129
    %p131 = scmp.ne.s32.totalorder %s119, %s120
    %p132 = scmp.eq.s32.totalorder %s89, 1
    %p133 = por %p131, %p132
    %p135 = scmp.ne.s32.totalorder %s120, %s134
    %p136 = scmp.eq.s32.totalorder %s89, 0
    %p137 = por %p135, %p136
    %s139 = sadd.s32 %s138, 1
    %p142 = scmp.eq.s32.totalorder %s83, 1
    %p143 = scmp.ne.s32.totalorder %s138, %s140
    %p144 = scmp.eq.s32.totalorder %s83, 0
    %p145 = por %p143, %p144
    %p146 = scmp.ne.s32.totalorder %s138, %s140
    %p147 = scmp.eq.s32.totalorder %s88, 1
    %p148 = por %p146, %p147
    %p149 = scmp.ne.s32.totalorder %s140, %s141
    %p150 = scmp.eq.s32.totalorder %s88, 0
    %p151 = por %p149, %p150
    %p152 = scmp.ne.s32.totalorder %s140, %s141
    %p153 = scmp.eq.s32.totalorder %s89, 1
    %p154 = por %p152, %p153
    %p156 = scmp.ne.s32.totalorder %s141, %s155
    %p157 = scmp.eq.s32.totalorder %s89, 0
    %p158 = por %p156, %p157
    %s160 = sadd.s32 %s159, 1
    %p163 = scmp.eq.s32.totalorder %s83, 1
    %p164 = scmp.ne.s32.totalorder %s159, %s161
    %p165 = scmp.eq.s32.totalorder %s83, 0
    %p166 = por %p164, %p165
    %p167 = scmp.ne.s32.totalorder %s159, %s161
    %p168 = scmp.eq.s32.totalorder %s88, 1
    %p169 = por %p167, %p168
    %p170 = scmp.ne.s32.totalorder %s161, %s162
    %p171 = scmp.eq.s32.totalorder %s88, 0
    %p172 = por %p170, %p171
    %p173 = scmp.ne.s32.totalorder %s161, %s162
    %p174 = scmp.eq.s32.totalorder %s89, 1
    %p175 = por %p173, %p174
    %p177 = scmp.ne.s32.totalorder %s162, %s176
    %p178 = scmp.eq.s32.totalorder %s89, 0
    %p179 = por %p177, %p178
    %s181 = sadd.s32 %s180, 1
    %p184 = scmp.eq.s32.totalorder %s83, 1
    %p185 = scmp.ne.s32.totalorder %s180, %s182
    %p186 = scmp.eq.s32.totalorder %s83, 0
    %p187 = por %p185, %p186
    %p188 = scmp.ne.s32.totalorder %s180, %s182
    %p189 = scmp.eq.s32.totalorder %s88, 1
    %p190 = por %p188, %p189
    %p191 = scmp.ne.s32.totalorder %s182, %s183
    %p192 = scmp.eq.s32.totalorder %s88, 0
    %p193 = por %p191, %p192
    %p194 = scmp.ne.s32.totalorder %s182, %s183
    %p195 = scmp.eq.s32.totalorder %s89, 1
    %p196 = por %p194, %p195
    %p198 = scmp.ne.s32.totalorder %s183, %s197
    %p199 = scmp.eq.s32.totalorder %s89, 0
    %p200 = por %p198, %p199
    %s202 = sadd.s32 %s201, 1
    %p205 = scmp.eq.s32.totalorder %s83, 1
    %p206 = scmp.ne.s32.totalorder %s201, %s203
    %p207 = scmp.eq.s32.totalorder %s83, 0
    %p208 = por %p206, %p207
    %p209 = scmp.ne.s32.totalorder %s201, %s203
    %p210 = scmp.eq.s32.totalorder %s88, 1
    %p211 = por %p209, %p210
    %p212 = scmp.ne.s32.totalorder %s203, %s204
    %p213 = scmp.eq.s32.totalorder %s88, 0
    %p214 = por %p212, %p213
    %p215 = scmp.ne.s32.totalorder %s203, %s204
    %p216 = scmp.eq.s32.totalorder %s89, 1
    %p217 = por %p215, %p216
    %p219 = scmp.ne.s32.totalorder %s204, %s218
    %p220 = scmp.eq.s32.totalorder %s89, 0
    %p221 = por %p219, %p220
    %s223 = sadd.s32 %s222, 1
    %p226 = scmp.eq.s32.totalorder %s83, 1
    %p227 = scmp.ne.s32.totalorder %s222, %s224
    %p228 = scmp.eq.s32.totalorder %s83, 0
    %p229 = por %p227, %p228
    %p230 = scmp.ne.s32.totalorder %s222, %s224
    %p231 = scmp.eq.s32.totalorder %s88, 1
    %p232 = por %p230, %p231
    %p233 = scmp.ne.s32.totalorder %s224, %s225
    %p234 = scmp.eq.s32.totalorder %s88, 0
    %p235 = por %p233, %p234
    %p236 = scmp.ne.s32.totalorder %s224, %s225
    %p237 = scmp.eq.s32.totalorder %s89, 1
    %p238 = por %p236, %p237
    %p240 = scmp.ne.s32.totalorder %s225, %s239
    %p241 = scmp.eq.s32.totalorder %s89, 0
    %p242 = por %p240, %p241
    %s244 = sadd.s32 %s243, 1
    %p247 = scmp.eq.s32.totalorder %s83, 1
    %p248 = scmp.ne.s32.totalorder %s243, %s245
    %p249 = scmp.eq.s32.totalorder %s83, 0
    %p250 = por %p248, %p249
    %p251 = scmp.ne.s32.totalorder %s243, %s245
    %p252 = scmp.eq.s32.totalorder %s88, 1
    %p253 = por %p251, %p252
    %p254 = scmp.ne.s32.totalorder %s245, %s246
    %p255 = scmp.eq.s32.totalorder %s88, 0
    %p256 = por %p254, %p255
    %p257 = scmp.ne.s32.totalorder %s245, %s246
    %p258 = scmp.eq.s32.totalorder %s89, 1
    %p259 = por %p257, %p258
    %p261 = scmp.ne.s32.totalorder %s246, %s260
    %p262 = scmp.eq.s32.totalorder %s89, 0
    %p263 = por %p261, %p262
    %s265 = sadd.s32 %s264, 1
    %p268 = scmp.eq.s32.totalorder %s83, 1
    %p269 = scmp.ne.s32.totalorder %s264, %s266
    %p270 = scmp.eq.s32.totalorder %s83, 0
    %p271 = por %p269, %p270
    %p272 = scmp.ne.s32.totalorder %s264, %s266
    %p273 = scmp.eq.s32.totalorder %s88, 1
    %p274 = por %p272, %p273
    %p275 = scmp.ne.s32.totalorder %s266, %s267
    %p276 = scmp.eq.s32.totalorder %s88, 0
    %p277 = por %p275, %p276
    %p278 = scmp.ne.s32.totalorder %s266, %s267
    %p279 = scmp.eq.s32.totalorder %s89, 1
    %p280 = por %p278, %p279
    %p282 = scmp.ne.s32.totalorder %s267, %s281
    %p283 = scmp.eq.s32.totalorder %s89, 0
    %p284 = por %p282, %p283
    %s286 = sadd.s32 %s285, 1
    %p289 = scmp.eq.s32.totalorder %s83, 1
    %p290 = scmp.ne.s32.totalorder %s285, %s287
    %p291 = scmp.eq.s32.totalorder %s83, 0
    %p292 = por %p290, %p291
    %p293 = scmp.ne.s32.totalorder %s285, %s287
    %p294 = scmp.eq.s32.totalorder %s88, 1
    %p295 = por %p293, %p294
    %p296 = scmp.ne.s32.totalorder %s287, %s288
    %p297 = scmp.eq.s32.totalorder %s88, 0
    %p298 = por %p296, %p297
    %p299 = scmp.ne.s32.totalorder %s287, %s288
    %p300 = scmp.eq.s32.totalorder %s89, 1
    %p301 = por %p299, %p300
    %p303 = scmp.ne.s32.totalorder %s288, %s302
    %p304 = scmp.eq.s32.totalorder %s89, 0
    %p305 = por %p303, %p304
    %s307 = sadd.s32 %s306, 1
    %p310 = scmp.eq.s32.totalorder %s83, 1
    %p311 = scmp.ne.s32.totalorder %s306, %s308
    %p312 = scmp.eq.s32.totalorder %s83, 0
    %p313 = por %p311, %p312
    %p314 = scmp.ne.s32.totalorder %s306, %s308
    %p315 = scmp.eq.s32.totalorder %s88, 1
    %p316 = por %p314, %p315
    %p317 = scmp.ne.s32.totalorder %s308, %s309
    %p318 = scmp.eq.s32.totalorder %s88, 0
    %p319 = por %p317, %p318
    %p320 = scmp.ne.s32.totalorder %s308, %s309
    %p321 = scmp.eq.s32.totalorder %s89, 1
    %p322 = por %p320, %p321
    %p324 = scmp.ne.s32.totalorder %s309, %s323
    %p325 = scmp.eq.s32.totalorder %s89, 0
    %p326 = por %p324, %p325
    %s328 = sadd.s32 %s327, 1
    %p331 = scmp.eq.s32.totalorder %s83, 1
    %p332 = scmp.ne.s32.totalorder %s327, %s329
    %p333 = scmp.eq.s32.totalorder %s83, 0
    %p334 = por %p332, %p333
    %p335 = scmp.ne.s32.totalorder %s327, %s329
    %p336 = scmp.eq.s32.totalorder %s88, 1
    %p337 = por %p335, %p336
    %p338 = scmp.ne.s32.totalorder %s329, %s330
    %p339 = scmp.eq.s32.totalorder %s88, 0
    %p340 = por %p338, %p339
    %p341 = scmp.ne.s32.totalorder %s329, %s330
    %p342 = scmp.eq.s32.totalorder %s89, 1
    %p343 = por %p341, %p342
    %p345 = scmp.ne.s32.totalorder %s330, %s344
    %p346 = scmp.eq.s32.totalorder %s89, 0
    %p347 = por %p345, %p346
    %s349 = sadd.s32 %s348, 1
    %p352 = scmp.eq.s32.totalorder %s83, 1
    %p353 = scmp.ne.s32.totalorder %s348, %s350
    %p354 = scmp.eq.s32.totalorder %s83, 0
    %p355 = por %p353, %p354
    %p356 = scmp.ne.s32.totalorder %s348, %s350
    %p357 = scmp.eq.s32.totalorder %s88, 1
    %p358 = por %p356, %p357
    %p359 = scmp.ne.s32.totalorder %s350, %s351
    %p360 = scmp.eq.s32.totalorder %s88, 0
    %p361 = por %p359, %p360
    %p362 = scmp.ne.s32.totalorder %s350, %s351
    %p363 = scmp.eq.s32.totalorder %s89, 1
    %p364 = por %p362, %p363
    %p366 = scmp.ne.s32.totalorder %s351, %s365
    %p367 = scmp.eq.s32.totalorder %s89, 0
    %p368 = por %p366, %p367
    %s370 = sadd.s32 %s369, 1
    %p373 = scmp.eq.s32.totalorder %s83, 1
    %p374 = scmp.ne.s32.totalorder %s369, %s371
    %p375 = scmp.eq.s32.totalorder %s83, 0
    %p376 = por %p374, %p375
    %p377 = scmp.ne.s32.totalorder %s369, %s371
    %p378 = scmp.eq.s32.totalorder %s88, 1
    %p379 = por %p377, %p378
    %p380 = scmp.ne.s32.totalorder %s371, %s372
    %p381 = scmp.eq.s32.totalorder %s88, 0
    %p382 = por %p380, %p381
    %p383 = scmp.ne.s32.totalorder %s371, %s372
    %p384 = scmp.eq.s32.totalorder %s89, 1
    %p385 = por %p383, %p384
    %p387 = scmp.ne.s32.totalorder %s372, %s386
    %p388 = scmp.eq.s32.totalorder %s89, 0
    %p389 = por %p387, %p388
    %s391 = sadd.s32 %s390, 1
    %p394 = scmp.eq.s32.totalorder %s83, 1
    %p395 = scmp.ne.s32.totalorder %s390, %s392
    %p396 = scmp.eq.s32.totalorder %s83, 0
    %p397 = por %p395, %p396
    %p398 = scmp.ne.s32.totalorder %s390, %s392
    %p399 = scmp.eq.s32.totalorder %s88, 1
    %p400 = por %p398, %p399
    %p401 = scmp.ne.s32.totalorder %s392, %s393
    %p402 = scmp.eq.s32.totalorder %s88, 0
    %p403 = por %p401, %p402
    %p404 = scmp.ne.s32.totalorder %s392, %s393
    %p405 = scmp.eq.s32.totalorder %s89, 1
    %p406 = por %p404, %p405
    %p408 = scmp.ne.s32.totalorder %s393, %s407
    %p409 = scmp.eq.s32.totalorder %s89, 0
    %p410 = por %p408, %p409
    %s412 = sadd.s32 %s411, 1
    %p415 = scmp.eq.s32.totalorder %s83, 1
    %p416 = scmp.ne.s32.totalorder %s411, %s413
    %p417 = scmp.eq.s32.totalorder %s83, 0
    %p418 = por %p416, %p417
    %p419 = scmp.ne.s32.totalorder %s411, %s413
    %p420 = scmp.eq.s32.totalorder %s88, 1
    %p421 = por %p419, %p420
    %p422 = scmp.ne.s32.totalorder %s413, %s414
    %p423 = scmp.eq.s32.totalorder %s88, 0
    %p424 = por %p422, %p423
    %p425 = scmp.ne.s32.totalorder %s413, %s414
    %p426 = scmp.eq.s32.totalorder %s89, 1
    %p427 = por %p425, %p426
    %p429 = scmp.ne.s32.totalorder %s414, %s428
    %p430 = scmp.eq.s32.totalorder %s89, 0
    %p431 = por %p429, %p430
    %s433 = sadd.s32 %s432, 1
    %p436 = scmp.eq.s32.totalorder %s83, 1
    %p437 = scmp.ne.s32.totalorder %s432, %s434
    %p438 = scmp.eq.s32.totalorder %s83, 0
    %p439 = por %p437, %p438
    %p440 = scmp.ne.s32.totalorder %s432, %s434
    %p441 = scmp.eq.s32.totalorder %s88, 1
    %p442 = por %p440, %p441
    %p443 = scmp.ne.s32.totalorder %s434, %s435
    %p444 = scmp.eq.s32.totalorder %s88, 0
    %p445 = por %p443, %p444
    %p446 = scmp.ne.s32.totalorder %s434, %s435
    %p447 = scmp.eq.s32.totalorder %s89, 1
    %p448 = por %p446, %p447
    %p450 = scmp.ne.s32.totalorder %s435, %s449
    %p451 = scmp.eq.s32.totalorder %s89, 0
    %p452 = por %p450, %p451
    %s454 = sadd.s32 %s453, 1
    %p457 = scmp.eq.s32.totalorder %s83, 1
    %p458 = scmp.ne.s32.totalorder %s453, %s455
    %p459 = scmp.eq.s32.totalorder %s83, 0
    %p460 = por %p458, %p459
    %p461 = scmp.ne.s32.totalorder %s453, %s455
    %p462 = scmp.eq.s32.totalorder %s88, 1
    %p463 = por %p461, %p462
    %p464 = scmp.ne.s32.totalorder %s455, %s456
    %p465 = scmp.eq.s32.totalorder %s88, 0
    %p466 = por %p464, %p465
    %p467 = scmp.ne.s32.totalorder %s455, %s456
    %p468 = scmp.eq.s32.totalorder %s89, 1
    %p469 = por %p467, %p468
    %p471 = scmp.ne.s32.totalorder %s456, %s470
    %p472 = scmp.eq.s32.totalorder %s89, 0
    %p473 = por %p471, %p472
    %s475 = sadd.s32 %s474, 1
    %p478 = scmp.eq.s32.totalorder %s83, 1
    %p479 = scmp.ne.s32.totalorder %s474, %s476
    %p480 = scmp.eq.s32.totalorder %s83, 0
    %p481 = por %p479, %p480
    %p482 = scmp.ne.s32.totalorder %s474, %s476
    %p483 = scmp.eq.s32.totalorder %s88, 1
    %p484 = por %p482, %p483
    %p485 = scmp.ne.s32.totalorder %s476, %s477
    %p486 = scmp.eq.s32.totalorder %s88, 0
    %p487 = por %p485, %p486
    %p488 = scmp.ne.s32.totalorder %s476, %s477
    %p489 = scmp.eq.s32.totalorder %s89, 1
    %p490 = por %p488, %p489
    %p492 = scmp.ne.s32.totalorder %s477, %s491
    %p493 = scmp.eq.s32.totalorder %s89, 0
    %p494 = por %p492, %p493
    %s496 = sadd.s32 %s495, 1
    %p499 = scmp.eq.s32.totalorder %s83, 1
    %p500 = scmp.ne.s32.totalorder %s495, %s497
    %p501 = scmp.eq.s32.totalorder %s83, 0
    %p502 = por %p500, %p501
    %p503 = scmp.ne.s32.totalorder %s495, %s497
    %p504 = scmp.eq.s32.totalorder %s88, 1
    %p505 = por %p503, %p504
    %p506 = scmp.ne.s32.totalorder %s497, %s498
    %p507 = scmp.eq.s32.totalorder %s88, 0
    %p508 = por %p506, %p507
    %p509 = scmp.ne.s32.totalorder %s497, %s498
    %p510 = scmp.eq.s32.totalorder %s89, 1
    %p511 = por %p509, %p510
    %p513 = scmp.ne.s32.totalorder %s498, %s512
    %p514 = scmp.eq.s32.totalorder %s89, 0
    %p515 = por %p513, %p514
    %s517 = sadd.s32 %s516, 1
    %p520 = scmp.eq.s32.totalorder %s83, 1
    %p521 = scmp.ne.s32.totalorder %s516, %s518
    %p522 = scmp.eq.s32.totalorder %s83, 0
    %p523 = por %p521, %p522
    %p524 = scmp.ne.s32.totalorder %s516, %s518
    %p525 = scmp.eq.s32.totalorder %s88, 1
    %p526 = por %p524, %p525
    %p527 = scmp.ne.s32.totalorder %s518, %s519
    %p528 = scmp.eq.s32.totalorder %s88, 0
    %p529 = por %p527, %p528
    %p530 = scmp.ne.s32.totalorder %s518, %s519
    %p531 = scmp.eq.s32.totalorder %s89, 1
    %p532 = por %p530, %p531
    %p534 = scmp.ne.s32.totalorder %s519, %s533
    %p535 = scmp.eq.s32.totalorder %s89, 0
    %p536 = por %p534, %p535
    %s538 = sadd.s32 %s537, 1
    %p541 = scmp.eq.s32.totalorder %s83, 1
    %p542 = scmp.ne.s32.totalorder %s537, %s539
    %p543 = scmp.eq.s32.totalorder %s83, 0
    %p544 = por %p542, %p543
    %p545 = scmp.ne.s32.totalorder %s537, %s539
    %p546 = scmp.eq.s32.totalorder %s88, 1
    %p547 = por %p545, %p546
    %p548 = scmp.ne.s32.totalorder %s539, %s540
    %p549 = scmp.eq.s32.totalorder %s88, 0
    %p550 = por %p548, %p549
    %p551 = scmp.ne.s32.totalorder %s539, %s540
    %p552 = scmp.eq.s32.totalorder %s89, 1
    %p553 = por %p551, %p552
    %p555 = scmp.ne.s32.totalorder %s540, %s554
    %p556 = scmp.eq.s32.totalorder %s89, 0
    %p557 = por %p555, %p556
    %s559 = sadd.s32 %s558, 1
    %p562 = scmp.eq.s32.totalorder %s83, 1
    %p563 = scmp.ne.s32.totalorder %s558, %s560
    %p564 = scmp.eq.s32.totalorder %s83, 0
    %p565 = por %p563, %p564
    %p566 = scmp.ne.s32.totalorder %s558, %s560
    %p567 = scmp.eq.s32.totalorder %s88, 1
    %p568 = por %p566, %p567
    %p569 = scmp.ne.s32.totalorder %s560, %s561
    %p570 = scmp.eq.s32.totalorder %s88, 0
    %p571 = por %p569, %p570
    %p572 = scmp.ne.s32.totalorder %s560, %s561
    %p573 = scmp.eq.s32.totalorder %s89, 1
    %p574 = por %p572, %p573
    %p576 = scmp.ne.s32.totalorder %s561, %s575
    %p577 = scmp.eq.s32.totalorder %s89, 0
    %p578 = por %p576, %p577
    %s580 = sadd.s32 %s579, 1
    %p583 = scmp.eq.s32.totalorder %s83, 1
    %p584 = scmp.ne.s32.totalorder %s579, %s581
    %p585 = scmp.eq.s32.totalorder %s83, 0
    %p586 = por %p584, %p585
    %p587 = scmp.ne.s32.totalorder %s579, %s581
    %p588 = scmp.eq.s32.totalorder %s88, 1
    %p589 = por %p587, %p588
    %p590 = scmp.ne.s32.totalorder %s581, %s582
    %p591 = scmp.eq.s32.totalorder %s88, 0
    %p592 = por %p590, %p591
    %p593 = scmp.ne.s32.totalorder %s581, %s582
    %p594 = scmp.eq.s32.totalorder %s89, 1
    %p595 = por %p593, %p594
    %p597 = scmp.ne.s32.totalorder %s582, %s596
    %p598 = scmp.eq.s32.totalorder %s89, 0
    %p599 = por %p597, %p598
    %s601 = sadd.s32 %s600, 1
    %p604 = scmp.eq.s32.totalorder %s83, 1
    %p605 = scmp.ne.s32.totalorder %s600, %s602
    %p606 = scmp.eq.s32.totalorder %s83, 0
    %p607 = por %p605, %p606
    %p608 = scmp.ne.s32.totalorder %s600, %s602
    %p609 = scmp.eq.s32.totalorder %s88, 1
    %p610 = por %p608, %p609
    %p611 = scmp.ne.s32.totalorder %s602, %s603
    %p612 = scmp.eq.s32.totalorder %s88, 0
    %p613 = por %p611, %p612
    %p614 = scmp.ne.s32.totalorder %s602, %s603
    %p615 = scmp.eq.s32.totalorder %s89, 1
    %p616 = por %p614, %p615
    %p618 = scmp.ne.s32.totalorder %s603, %s617
    %p619 = scmp.eq.s32.totalorder %s89, 0
    %p620 = por %p618, %p619
    %s622 = sadd.s32 %s621, 1
    %p625 = scmp.eq.s32.totalorder %s83, 1
    %p626 = scmp.ne.s32.totalorder %s621, %s623
    %p627 = scmp.eq.s32.totalorder %s83, 0
    %p628 = por %p626, %p627
    %p629 = scmp.ne.s32.totalorder %s621, %s623
    %p630 = scmp.eq.s32.totalorder %s88, 1
    %p631 = por %p629, %p630
    %p632 = scmp.ne.s32.totalorder %s623, %s624
    %p633 = scmp.eq.s32.totalorder %s88, 0
    %p634 = por %p632, %p633
    %p635 = scmp.ne.s32.totalorder %s623, %s624
    %p636 = scmp.eq.s32.totalorder %s89, 1
    %p637 = por %p635, %p636
    %p639 = scmp.ne.s32.totalorder %s624, %s638
    %p640 = scmp.eq.s32.totalorder %s89, 0
    %p641 = por %p639, %p640
    %s643 = sadd.s32 %s642, 1
    %p646 = scmp.eq.s32.totalorder %s83, 1
    %p647 = scmp.ne.s32.totalorder %s642, %s644
    %p648 = scmp.eq.s32.totalorder %s83, 0
    %p649 = por %p647, %p648
    %p650 = scmp.ne.s32.totalorder %s642, %s644
    %p651 = scmp.eq.s32.totalorder %s88, 1
    %p652 = por %p650, %p651
    %p653 = scmp.ne.s32.totalorder %s644, %s645
    %p654 = scmp.eq.s32.totalorder %s88, 0
    %p655 = por %p653, %p654
    %p656 = scmp.ne.s32.totalorder %s644, %s645
    %p657 = scmp.eq.s32.totalorder %s89, 1
    %p658 = por %p656, %p657
    %p660 = scmp.ne.s32.totalorder %s645, %s659
    %p661 = scmp.eq.s32.totalorder %s89, 0
    %p662 = por %p660, %p661
    %s664 = sadd.s32 %s663, 1
    %p667 = scmp.eq.s32.totalorder %s83, 1
    %p668 = scmp.ne.s32.totalorder %s663, %s665
    %p669 = scmp.eq.s32.totalorder %s83, 0
    %p670 = por %p668, %p669
    %p671 = scmp.ne.s32.totalorder %s663, %s665
    %p672 = scmp.eq.s32.totalorder %s88, 1
    %p673 = por %p671, %p672
    %p674 = scmp.ne.s32.totalorder %s665, %s666
    %p675 = scmp.eq.s32.totalorder %s88, 0
    %p676 = por %p674, %p675
    %p677 = scmp.ne.s32.totalorder %s665, %s666
    %p678 = scmp.eq.s32.totalorder %s89, 1
    %p679 = por %p677, %p678
    %p681 = scmp.ne.s32.totalorder %s666, %s680
    %p682 = scmp.eq.s32.totalorder %s89, 0
    %p683 = por %p681, %p682
    %s685 = sadd.s32 %s684, 1
    %p688 = scmp.eq.s32.totalorder %s83, 1
    %p689 = scmp.ne.s32.totalorder %s684, %s686
    %p690 = scmp.eq.s32.totalorder %s83, 0
    %p691 = por %p689, %p690
    %p692 = scmp.ne.s32.totalorder %s684, %s686
    %p693 = scmp.eq.s32.totalorder %s88, 1
    %p694 = por %p692, %p693
    %p695 = scmp.ne.s32.totalorder %s686, %s687
    %p696 = scmp.eq.s32.totalorder %s88, 0
    %p697 = por %p695, %p696
    %p698 = scmp.ne.s32.totalorder %s686, %s687
    %p699 = scmp.eq.s32.totalorder %s89, 1
    %p700 = por %p698, %p699
    %p702 = scmp.ne.s32.totalorder %s687, %s701
    %p703 = scmp.eq.s32.totalorder %s89, 0
    %p704 = por %p702, %p703
    %s706 = sadd.s32 %s705, 1
    %p709 = scmp.eq.s32.totalorder %s83, 1
    %p710 = scmp.ne.s32.totalorder %s705, %s707
    %p711 = scmp.eq.s32.totalorder %s83, 0
    %p712 = por %p710, %p711
    %p713 = scmp.ne.s32.totalorder %s705, %s707
    %p714 = scmp.eq.s32.totalorder %s88, 1
    %p715 = por %p713, %p714
    %p716 = scmp.ne.s32.totalorder %s707, %s708
    %p717 = scmp.eq.s32.totalorder %s88, 0
    %p718 = por %p716, %p717
    %p719 = scmp.ne.s32.totalorder %s707, %s708
    %p720 = scmp.eq.s32.totalorder %s89, 1
    %p721 = por %p719, %p720
    %p723 = scmp.ne.s32.totalorder %s708, %s722
    %p724 = scmp.eq.s32.totalorder %s89, 0
    %p725 = por %p723, %p724
    %s727 = sadd.s32 %s726, 1
    %p730 = scmp.eq.s32.totalorder %s83, 1
    %p731 = scmp.ne.s32.totalorder %s726, %s728
    %p732 = scmp.eq.s32.totalorder %s83, 0
    %p733 = por %p731, %p732
    %p734 = scmp.ne.s32.totalorder %s726, %s728
    %p735 = scmp.eq.s32.totalorder %s88, 1
    %p736 = por %p734, %p735
    %p737 = scmp.ne.s32.totalorder %s728, %s729
    %p738 = scmp.eq.s32.totalorder %s88, 0
    %p739 = por %p737, %p738
    %p740 = scmp.ne.s32.totalorder %s728, %s729
    %p741 = scmp.eq.s32.totalorder %s89, 1
    %p742 = por %p740, %p741
    %p744 = scmp.ne.s32.totalorder %s729, %s743
    %p745 = scmp.eq.s32.totalorder %s89, 0
    %p746 = por %p744, %p745
    %s748 = sadd.s32 %s747, 1
    %p751 = scmp.eq.s32.totalorder %s83, 1
    %p752 = scmp.ne.s32.totalorder %s747, %s749
    %p753 = scmp.eq.s32.totalorder %s83, 0
    %p754 = por %p752, %p753
    %p755 = scmp.ne.s32.totalorder %s747, %s749
    %p756 = scmp.eq.s32.totalorder %s88, 1
    %p757 = por %p755, %p756
    %p758 = scmp.ne.s32.totalorder %s749, %s750
    %p759 = scmp.eq.s32.totalorder %s88, 0
    %p760 = por %p758, %p759
    %p761 = scmp.ne.s32.totalorder %s749, %s750
    %p762 = scmp.eq.s32.totalorder %s89, 1
    %p763 = por %p761, %p762
    %p765 = scmp.ne.s32.totalorder %s750, %s764
    %p766 = scmp.eq.s32.totalorder %s89, 0
    %p767 = por %p765, %p766
    %s769 = sadd.s32 %s768, 1
    %p772 = scmp.eq.s32.totalorder %s83, 1
    %p773 = scmp.ne.s32.totalorder %s768, %s770
    %p774 = scmp.eq.s32.totalorder %s83, 0
    %p775 = por %p773, %p774
    %p776 = scmp.ne.s32.totalorder %s768, %s770
    %p777 = scmp.eq.s32.totalorder %s88, 1
    %p778 = por %p776, %p777
    %p779 = scmp.ne.s32.totalorder %s770, %s771
    %p780 = scmp.eq.s32.totalorder %s88, 0
    %p781 = por %p779, %p780
    %p782 = scmp.ne.s32.totalorder %s770, %s771
    %p783 = scmp.eq.s32.totalorder %s89, 1
    %p784 = por %p782, %p783
    %p786 = scmp.ne.s32.totalorder %s771, %s785
    %p787 = scmp.eq.s32.totalorder %s89, 0
    %p788 = por %p786, %p787
    %s790 = sadd.s32 %s789, 1
    %p793 = scmp.eq.s32.totalorder %s83, 1
    %p794 = scmp.ne.s32.totalorder %s789, %s791
    %p795 = scmp.eq.s32.totalorder %s83, 0
    %p796 = por %p794, %p795
    %p797 = scmp.ne.s32.totalorder %s789, %s791
    %p798 = scmp.eq.s32.totalorder %s88, 1
    %p799 = por %p797, %p798
    %p800 = scmp.ne.s32.totalorder %s791, %s792
    %p801 = scmp.eq.s32.totalorder %s88, 0
    %p802 = por %p800, %p801
    %p803 = scmp.ne.s32.totalorder %s791, %s792
    %p804 = scmp.eq.s32.totalorder %s89, 1
    %p805 = por %p803, %p804
    %p807 = scmp.ne.s32.totalorder %s792, %s806
    %p808 = scmp.eq.s32.totalorder %s89, 0
    %p809 = por %p807, %p808
    %s811 = sadd.s32 %s810, 1
    %p814 = scmp.eq.s32.totalorder %s83, 1
    %p815 = scmp.ne.s32.totalorder %s810, %s812
    %p816 = scmp.eq.s32.totalorder %s83, 0
    %p817 = por %p815, %p816
    %p818 = scmp.ne.s32.totalorder %s810, %s812
    %p819 = scmp.eq.s32.totalorder %s88, 1
    %p820 = por %p818, %p819
    %p821 = scmp.ne.s32.totalorder %s812, %s813
    %p822 = scmp.eq.s32.totalorder %s88, 0
    %p823 = por %p821, %p822
    %p824 = scmp.ne.s32.totalorder %s812, %s813
    %p825 = scmp.eq.s32.totalorder %s89, 1
    %p826 = por %p824, %p825
    %p828 = scmp.ne.s32.totalorder %s813, %s827
    %p829 = scmp.eq.s32.totalorder %s89, 0
    %p830 = por %p828, %p829
    %s832 = sadd.s32 %s831, 1
    %p835 = scmp.eq.s32.totalorder %s83, 1
    %p836 = scmp.ne.s32.totalorder %s831, %s833
    %p837 = scmp.eq.s32.totalorder %s83, 0
    %p838 = por %p836, %p837
    %p839 = scmp.ne.s32.totalorder %s831, %s833
    %p840 = scmp.eq.s32.totalorder %s88, 1
    %p841 = por %p839, %p840
    %p842 = scmp.ne.s32.totalorder %s833, %s834
    %p843 = scmp.eq.s32.totalorder %s88, 0
    %p844 = por %p842, %p843
    %p845 = scmp.ne.s32.totalorder %s833, %s834
    %p846 = scmp.eq.s32.totalorder %s89, 1
    %p847 = por %p845, %p846
    %p849 = scmp.ne.s32.totalorder %s834, %s848
    %p850 = scmp.eq.s32.totalorder %s89, 0
    %p851 = por %p849, %p850
    %s853 = sadd.s32 %s852, 1
    %p856 = scmp.eq.s32.totalorder %s83, 1
    %p857 = scmp.ne.s32.totalorder %s852, %s854
    %p858 = scmp.eq.s32.totalorder %s83, 0
    %p859 = por %p857, %p858
    %p860 = scmp.ne.s32.totalorder %s852, %s854
    %p861 = scmp.eq.s32.totalorder %s88, 1
    %p862 = por %p860, %p861
    %p863 = scmp.ne.s32.totalorder %s854, %s855
    %p864 = scmp.eq.s32.totalorder %s88, 0
    %p865 = por %p863, %p864
    %p866 = scmp.ne.s32.totalorder %s854, %s855
    %p867 = scmp.eq.s32.totalorder %s89, 1
    %p868 = por %p866, %p867
    %p870 = scmp.ne.s32.totalorder %s855, %s869
    %p871 = scmp.eq.s32.totalorder %s89, 0
    %p872 = por %p870, %p871
    %s874 = sadd.s32 %s873, 1
    %p877 = scmp.eq.s32.totalorder %s83, 1
    %p878 = scmp.ne.s32.totalorder %s873, %s875
    %p879 = scmp.eq.s32.totalorder %s83, 0
    %p880 = por %p878, %p879
    %p881 = scmp.ne.s32.totalorder %s873, %s875
    %p882 = scmp.eq.s32.totalorder %s88, 1
    %p883 = por %p881, %p882
    %p884 = scmp.ne.s32.totalorder %s875, %s876
    %p885 = scmp.eq.s32.totalorder %s88, 0
    %p886 = por %p884, %p885
    %p887 = scmp.ne.s32.totalorder %s875, %s876
    %p888 = scmp.eq.s32.totalorder %s89, 1
    %p889 = por %p887, %p888
    %p891 = scmp.ne.s32.totalorder %s876, %s890
    %p892 = scmp.eq.s32.totalorder %s89, 0
    %p893 = por %p891, %p892
    %s894 = ssub.s32 %s83, %s90
    %p895 = scmp.eq.s32.totalorder %s894, 0
    %s897 = sadd.s32 %s896, 1
    %s898 = scalar_select %p895, %s896, %s897
    %p901 = pneg %p895
    %p902 = scmp.eq.s32.totalorder %s83, 1
    %p903 = por %p901, %p902
    %p904 = scmp.ne.s32.totalorder %s896, %s899
    %p905 = scmp.eq.s32.totalorder %s83, 0
    %p906 = por %p904, %p905
    %p907 = scmp.ne.s32.totalorder %s896, %s899
    %p908 = scmp.eq.s32.totalorder %s88, 1
    %p909 = por %p907, %p908
    %p910 = scmp.ne.s32.totalorder %s899, %s900
    %p911 = scmp.eq.s32.totalorder %s88, 0
    %p912 = por %p910, %p911
    %p913 = scmp.ne.s32.totalorder %s899, %s900
    %p914 = scmp.eq.s32.totalorder %s89, 1
    %p915 = por %p913, %p914
    %p917 = scmp.ne.s32.totalorder %s900, %s916
    %p918 = scmp.eq.s32.totalorder %s89, 0
    %p919 = por %p917, %p918
    %p920 = scmp.le.s32.totalorder 1, %s83
    %p921 = scmp.lt.s32.totalorder %s83, 3
    %p922 = pnand %p920, %p921
    %p923 = pneg %p922
    // Predicated region
    $region9: #{_lambda_.1} parent=5 // pred_check
      _
    $region10: #{_lambda_.1} parent=5 // pred_check_branch
      %925 = sbr.rel (%p922) target = $region12
    $region11: #{_lambda_.1} parent=5 // pred_region
      %s926 = ssub.s32 %s83, 1
      // Predicated region
      $region13: #{_lambda_.1} parent=11 // pred_check
        %p927 = pneg %p130
      $region14: #{_lambda_.1} parent=11 // pred_check_branch
        %929 = sbr.rel (%p927) target = $region16
      $region15: #{_lambda_.1} parent=11 // pred_region
        _
      $region16: #{_lambda_.1} parent=11 // pred_fallthru
        _
      // Predicated region
      $region17: #{_lambda_.1} parent=11 // pred_check
        %p930 = pneg %p151
      $region18: #{_lambda_.1} parent=11 // pred_check_branch
        %932 = sbr.rel (%p930) target = $region20
      $region19: #{_lambda_.1} parent=11 // pred_region
        _
      $region20: #{_lambda_.1} parent=11 // pred_fallthru
        _
      // Predicated region
      $region21: #{_lambda_.1} parent=11 // pred_check
        %p933 = pneg %p172
      $region22: #{_lambda_.1} parent=11 // pred_check_branch
        %935 = sbr.rel (%p933) target = $region24
      $region23: #{_lambda_.1} parent=11 // pred_region
        _
      $region24: #{_lambda_.1} parent=11 // pred_fallthru
        _
      // Predicated region
      $region25: #{_lambda_.1} parent=11 // pred_check
        %p936 = pneg %p193
      $region26: #{_lambda_.1} parent=11 // pred_check_branch
        %938 = sbr.rel (%p936) target = $region28
      $region27: #{_lambda_.1} parent=11 // pred_region
        _
      $region28: #{_lambda_.1} parent=11 // pred_fallthru
        _
      // Predicated region
      $region29: #{_lambda_.1} parent=11 // pred_check
        %p939 = pneg %p214
      $region30: #{_lambda_.1} parent=11 // pred_check_branch
        %941 = sbr.rel (%p939) target = $region32
      $region31: #{_lambda_.1} parent=11 // pred_region
        _
      $region32: #{_lambda_.1} parent=11 // pred_fallthru
        _
      // Predicated region
      $region33: #{_lambda_.1} parent=11 // pred_check
        %p942 = pneg %p235
      $region34: #{_lambda_.1} parent=11 // pred_check_branch
        %944 = sbr.rel (%p942) target = $region36
      $region35: #{_lambda_.1} parent=11 // pred_region
        _
      $region36: #{_lambda_.1} parent=11 // pred_fallthru
        _
      // Predicated region
      $region37: #{_lambda_.1} parent=11 // pred_check
        %p945 = pneg %p256
      $region38: #{_lambda_.1} parent=11 // pred_check_branch
        %947 = sbr.rel (%p945) target = $region40
      $region39: #{_lambda_.1} parent=11 // pred_region
        _
      $region40: #{_lambda_.1} parent=11 // pred_fallthru
        _
      // Predicated region
      $region41: #{_lambda_.1} parent=11 // pred_check
        %p948 = pneg %p277
      $region42: #{_lambda_.1} parent=11 // pred_check_branch
        %950 = sbr.rel (%p948) target = $region44
      $region43: #{_lambda_.1} parent=11 // pred_region
        _
      $region44: #{_lambda_.1} parent=11 // pred_fallthru
        _
      // Predicated region
      $region45: #{_lambda_.1} parent=11 // pred_check
        %p951 = pneg %p298
      $region46: #{_lambda_.1} parent=11 // pred_check_branch
        %953 = sbr.rel (%p951) target = $region48
      $region47: #{_lambda_.1} parent=11 // pred_region
        _
      $region48: #{_lambda_.1} parent=11 // pred_fallthru
        _
      // Predicated region
      $region49: #{_lambda_.1} parent=11 // pred_check
        %p954 = pneg %p319
      $region50: #{_lambda_.1} parent=11 // pred_check_branch
        %956 = sbr.rel (%p954) target = $region52
      $region51: #{_lambda_.1} parent=11 // pred_region
        _
      $region52: #{_lambda_.1} parent=11 // pred_fallthru
        _
      // Predicated region
      $region53: #{_lambda_.1} parent=11 // pred_check
        %p957 = pneg %p340
      $region54: #{_lambda_.1} parent=11 // pred_check_branch
        %959 = sbr.rel (%p957) target = $region56
      $region55: #{_lambda_.1} parent=11 // pred_region
        _
      $region56: #{_lambda_.1} parent=11 // pred_fallthru
        _
      // Predicated region
      $region57: #{_lambda_.1} parent=11 // pred_check
        %p960 = pneg %p361
      $region58: #{_lambda_.1} parent=11 // pred_check_branch
        %962 = sbr.rel (%p960) target = $region60
      $region59: #{_lambda_.1} parent=11 // pred_region
        _
      $region60: #{_lambda_.1} parent=11 // pred_fallthru
        _
      // Predicated region
      $region61: #{_lambda_.1} parent=11 // pred_check
        %p963 = pneg %p382
      $region62: #{_lambda_.1} parent=11 // pred_check_branch
        %965 = sbr.rel (%p963) target = $region64
      $region63: #{_lambda_.1} parent=11 // pred_region
        _
      $region64: #{_lambda_.1} parent=11 // pred_fallthru
        _
      // Predicated region
      $region65: #{_lambda_.1} parent=11 // pred_check
        %p966 = pneg %p403
      $region66: #{_lambda_.1} parent=11 // pred_check_branch
        %968 = sbr.rel (%p966) target = $region68
      $region67: #{_lambda_.1} parent=11 // pred_region
        _
      $region68: #{_lambda_.1} parent=11 // pred_fallthru
        _
      // Predicated region
      $region69: #{_lambda_.1} parent=11 // pred_check
        %p969 = pneg %p424
      $region70: #{_lambda_.1} parent=11 // pred_check_branch
        %971 = sbr.rel (%p969) target = $region72
      $region71: #{_lambda_.1} parent=11 // pred_region
        _
      $region72: #{_lambda_.1} parent=11 // pred_fallthru
        _
      // Predicated region
      $region73: #{_lambda_.1} parent=11 // pred_check
        %p972 = pneg %p445
      $region74: #{_lambda_.1} parent=11 // pred_check_branch
        %974 = sbr.rel (%p972) target = $region76
      $region75: #{_lambda_.1} parent=11 // pred_region
        _
      $region76: #{_lambda_.1} parent=11 // pred_fallthru
        _
      // Predicated region
      $region77: #{_lambda_.1} parent=11 // pred_check
        %p975 = pneg %p466
      $region78: #{_lambda_.1} parent=11 // pred_check_branch
        %977 = sbr.rel (%p975) target = $region80
      $region79: #{_lambda_.1} parent=11 // pred_region
        _
      $region80: #{_lambda_.1} parent=11 // pred_fallthru
        _
      // Predicated region
      $region81: #{_lambda_.1} parent=11 // pred_check
        %p978 = pneg %p487
      $region82: #{_lambda_.1} parent=11 // pred_check_branch
        %980 = sbr.rel (%p978) target = $region84
      $region83: #{_lambda_.1} parent=11 // pred_region
        _
      $region84: #{_lambda_.1} parent=11 // pred_fallthru
        _
      // Predicated region
      $region85: #{_lambda_.1} parent=11 // pred_check
        %p981 = pneg %p508
      $region86: #{_lambda_.1} parent=11 // pred_check_branch
        %983 = sbr.rel (%p981) target = $region88
      $region87: #{_lambda_.1} parent=11 // pred_region
        _
      $region88: #{_lambda_.1} parent=11 // pred_fallthru
        _
      // Predicated region
      $region89: #{_lambda_.1} parent=11 // pred_check
        %p984 = pneg %p529
      $region90: #{_lambda_.1} parent=11 // pred_check_branch
        %986 = sbr.rel (%p984) target = $region92
      $region91: #{_lambda_.1} parent=11 // pred_region
        _
      $region92: #{_lambda_.1} parent=11 // pred_fallthru
        _
      // Predicated region
      $region93: #{_lambda_.1} parent=11 // pred_check
        %p987 = pneg %p550
      $region94: #{_lambda_.1} parent=11 // pred_check_branch
        %989 = sbr.rel (%p987) target = $region96
      $region95: #{_lambda_.1} parent=11 // pred_region
        _
      $region96: #{_lambda_.1} parent=11 // pred_fallthru
        _
      // Predicated region
      $region97: #{_lambda_.1} parent=11 // pred_check
        %p990 = pneg %p571
      $region98: #{_lambda_.1} parent=11 // pred_check_branch
        %992 = sbr.rel (%p990) target = $region100
      $region99: #{_lambda_.1} parent=11 // pred_region
        _
      $region100: #{_lambda_.1} parent=11 // pred_fallthru
        _
      // Predicated region
      $region101: #{_lambda_.1} parent=11 // pred_check
        %p993 = pneg %p592
      $region102: #{_lambda_.1} parent=11 // pred_check_branch
        %995 = sbr.rel (%p993) target = $region104
      $region103: #{_lambda_.1} parent=11 // pred_region
        _
      $region104: #{_lambda_.1} parent=11 // pred_fallthru
        _
      // Predicated region
      $region105: #{_lambda_.1} parent=11 // pred_check
        %p996 = pneg %p613
      $region106: #{_lambda_.1} parent=11 // pred_check_branch
        %998 = sbr.rel (%p996) target = $region108
      $region107: #{_lambda_.1} parent=11 // pred_region
        _
      $region108: #{_lambda_.1} parent=11 // pred_fallthru
        _
      // Predicated region
      $region109: #{_lambda_.1} parent=11 // pred_check
        %p999 = pneg %p634
      $region110: #{_lambda_.1} parent=11 // pred_check_branch
        %1001 = sbr.rel (%p999) target = $region112
      $region111: #{_lambda_.1} parent=11 // pred_region
        _
      $region112: #{_lambda_.1} parent=11 // pred_fallthru
        _
      // Predicated region
      $region113: #{_lambda_.1} parent=11 // pred_check
        %p1002 = pneg %p655
      $region114: #{_lambda_.1} parent=11 // pred_check_branch
        %1004 = sbr.rel (%p1002) target = $region116
      $region115: #{_lambda_.1} parent=11 // pred_region
        _
      $region116: #{_lambda_.1} parent=11 // pred_fallthru
        _
      // Predicated region
      $region117: #{_lambda_.1} parent=11 // pred_check
        %p1005 = pneg %p676
      $region118: #{_lambda_.1} parent=11 // pred_check_branch
        %1007 = sbr.rel (%p1005) target = $region120
      $region119: #{_lambda_.1} parent=11 // pred_region
        _
      $region120: #{_lambda_.1} parent=11 // pred_fallthru
        _
      // Predicated region
      $region121: #{_lambda_.1} parent=11 // pred_check
        %p1008 = pneg %p697
      $region122: #{_lambda_.1} parent=11 // pred_check_branch
        %1010 = sbr.rel (%p1008) target = $region124
      $region123: #{_lambda_.1} parent=11 // pred_region
        _
      $region124: #{_lambda_.1} parent=11 // pred_fallthru
        _
      // Predicated region
      $region125: #{_lambda_.1} parent=11 // pred_check
        %p1011 = pneg %p718
      $region126: #{_lambda_.1} parent=11 // pred_check_branch
        %1013 = sbr.rel (%p1011) target = $region128
      $region127: #{_lambda_.1} parent=11 // pred_region
        _
      $region128: #{_lambda_.1} parent=11 // pred_fallthru
        _
      // Predicated region
      $region129: #{_lambda_.1} parent=11 // pred_check
        %p1014 = pneg %p739
      $region130: #{_lambda_.1} parent=11 // pred_check_branch
        %1016 = sbr.rel (%p1014) target = $region132
      $region131: #{_lambda_.1} parent=11 // pred_region
        _
      $region132: #{_lambda_.1} parent=11 // pred_fallthru
        _
      // Predicated region
      $region133: #{_lambda_.1} parent=11 // pred_check
        %p1017 = pneg %p760
      $region134: #{_lambda_.1} parent=11 // pred_check_branch
        %1019 = sbr.rel (%p1017) target = $region136
      $region135: #{_lambda_.1} parent=11 // pred_region
        _
      $region136: #{_lambda_.1} parent=11 // pred_fallthru
        _
      // Predicated region
      $region137: #{_lambda_.1} parent=11 // pred_check
        %p1020 = pneg %p781
      $region138: #{_lambda_.1} parent=11 // pred_check_branch
        %1022 = sbr.rel (%p1020) target = $region140
      $region139: #{_lambda_.1} parent=11 // pred_region
        _
      $region140: #{_lambda_.1} parent=11 // pred_fallthru
        _
      // Predicated region
      $region141: #{_lambda_.1} parent=11 // pred_check
        %p1023 = pneg %p802
      $region142: #{_lambda_.1} parent=11 // pred_check_branch
        %1025 = sbr.rel (%p1023) target = $region144
      $region143: #{_lambda_.1} parent=11 // pred_region
        _
      $region144: #{_lambda_.1} parent=11 // pred_fallthru
        _
      // Predicated region
      $region145: #{_lambda_.1} parent=11 // pred_check
        %p1026 = pneg %p823
      $region146: #{_lambda_.1} parent=11 // pred_check_branch
        %1028 = sbr.rel (%p1026) target = $region148
      $region147: #{_lambda_.1} parent=11 // pred_region
        _
      $region148: #{_lambda_.1} parent=11 // pred_fallthru
        _
      // Predicated region
      $region149: #{_lambda_.1} parent=11 // pred_check
        %p1029 = pneg %p844
      $region150: #{_lambda_.1} parent=11 // pred_check_branch
        %1031 = sbr.rel (%p1029) target = $region152
      $region151: #{_lambda_.1} parent=11 // pred_region
        _
      $region152: #{_lambda_.1} parent=11 // pred_fallthru
        _
      // Predicated region
      $region153: #{_lambda_.1} parent=11 // pred_check
        %p1032 = pneg %p865
      $region154: #{_lambda_.1} parent=11 // pred_check_branch
        %1034 = sbr.rel (%p1032) target = $region156
      $region155: #{_lambda_.1} parent=11 // pred_region
        _
      $region156: #{_lambda_.1} parent=11 // pred_fallthru
        _
      // Predicated region
      $region157: #{_lambda_.1} parent=11 // pred_check
        %p1035 = pneg %p886
      $region158: #{_lambda_.1} parent=11 // pred_check_branch
        %1037 = sbr.rel (%p1035) target = $region160
      $region159: #{_lambda_.1} parent=11 // pred_region
        _
      $region160: #{_lambda_.1} parent=11 // pred_fallthru
        _
    $region12: #{_lambda_.1} parent=5 // pred_fallthru
      _
    %p1038 = scmp.lt.s32.totalorder %s83, 2
    // Predicated region
    $region161: #{_lambda_.1} parent=5 // pred_check
      %p1039 = pneg %p1038
    $region162: #{_lambda_.1} parent=5 // pred_check_branch
      %1041 = sbr.rel (%p1039) target = $region164
    $region163: #{_lambda_.1} parent=5 // pred_region
      // Predicated region
      $region165: #{_lambda_.1} parent=163 // pred_check
        %p1042 = pneg %p103
      $region166: #{_lambda_.1} parent=163 // pred_check_branch
        %1044 = sbr.rel (%p1042) target = $region168
      $region167: #{_lambda_.1} parent=163 // pred_region
        %p1045 = scmp.lt.s32.totalorder %s83, 1
        %s1046 = scalar_select %p1045, %s83, 1
        %s1047 = smul.addr %s1046, 64
        %s1048 = smul.addr %s1047, 4
        %s1049 = scalar_lea.vmem %s1, %s1048
      $region168: #{_lambda_.1} parent=163 // pred_fallthru
        _
    $region164: #{_lambda_.1} parent=5 // pred_fallthru
      _
    %p1050 = scmp.le.s32.totalorder 1, %s83
    %p1051 = scmp.lt.s32.totalorder %s83, 3
    %p1052 = pnand %p1050, %p1051
    %p1053 = pneg %p1052
    // Predicated region
    $region169: #{_lambda_.1} parent=5 // pred_check
      _
    $region170: #{_lambda_.1} parent=5 // pred_check_branch
      %1055 = sbr.rel (%p1052) target = $region172
    $region171: #{_lambda_.1} parent=5 // pred_region
      %s1056 = ssub.s32 %s83, 1
      %p1057 = scmp.lt.s32.totalorder %s88, 1
      %s1058 = scalar_select %p1057, %s88, 1
      %s1059 = smul.addr %s1058, 64
      %s1060 = smul.addr %s1059, 4
      %s1061 = scalar_lea.vmem %s1, %s1060
      %p1062 = pneg %p109
      %p1063 = pneg %p106
      %p1064 = pneg %p130
      %p1065 = pneg %p127
      %p1066 = pneg %p151
      %p1067 = pneg %p148
      %p1068 = pneg %p172
      %p1069 = pneg %p169
      %p1070 = pneg %p193
      %p1071 = pneg %p190
      %p1072 = pneg %p214
      %p1073 = pneg %p211
      %p1074 = pneg %p235
      %p1075 = pneg %p232
      %p1076 = pneg %p256
      %p1077 = pneg %p253
      %p1078 = pneg %p277
      %p1079 = pneg %p274
      %p1080 = pneg %p298
      %p1081 = pneg %p295
      %p1082 = pneg %p319
      %p1083 = pneg %p316
      %p1084 = pneg %p340
      %p1085 = pneg %p337
      %p1086 = pneg %p361
      %p1087 = pneg %p358
      %p1088 = pneg %p382
      %p1089 = pneg %p379
      %p1090 = pneg %p403
      %p1091 = pneg %p400
      %p1092 = pneg %p424
      %p1093 = pneg %p421
      %p1094 = pneg %p445
      %p1095 = pneg %p442
      %p1096 = pneg %p466
      %p1097 = pneg %p463
      %p1098 = pneg %p487
      %p1099 = pneg %p484
      %p1100 = pneg %p508
      %p1101 = pneg %p505
      %p1102 = pneg %p529
      %p1103 = pneg %p526
      %p1104 = pneg %p550
      %p1105 = pneg %p547
      %p1106 = pneg %p571
      %p1107 = pneg %p568
      %p1108 = pneg %p592
      %p1109 = pneg %p589
      %p1110 = pneg %p613
      %p1111 = pneg %p610
      %p1112 = pneg %p634
      %p1113 = pneg %p631
      %p1114 = pneg %p655
      %p1115 = pneg %p652
      %p1116 = pneg %p676
      %p1117 = pneg %p673
      %p1118 = pneg %p697
      %p1119 = pneg %p694
      %p1120 = pneg %p718
      %p1121 = pneg %p715
      %p1122 = pneg %p739
      %p1123 = pneg %p736
      %p1124 = pneg %p760
      %p1125 = pneg %p757
      %p1126 = pneg %p781
      %p1127 = pneg %p778
      %p1128 = pneg %p802
      %p1129 = pneg %p799
      %p1130 = pneg %p823
      %p1131 = pneg %p820
      %p1132 = pneg %p844
      %p1133 = pneg %p841
      %p1134 = pneg %p865
      %p1135 = pneg %p862
      %p1136 = pneg %p886
      %p1137 = pneg %p883
      %p1138 = pneg %p912
      %p1139 = pneg %p909
      %p1140 = scmp.lt.s32.totalorder %s88, 1
      %s1141 = scalar_select %p1140, %s88, 1
      %s1142 = smul.addr %s1141, 4
      %s1143 = smul.addr %s1142, 8
      %s1144 = scalar_lea.vmem %s77, %s1143
      %p1145 = scmp.lt.s32.totalorder %s88, 1
      %s1146 = scalar_select %p1145, %s88, 1
      %s1147 = smul.addr %s1146, 64
      %s1148 = smul.addr %s1147, 4
      %s1149 = scalar_lea.vmem %s1, %s1148
      %p1150 = scmp.lt.s32.totalorder %s88, 1
      %s1151 = scalar_select %p1150, %s88, 1
      %s1152 = smul.addr %s1151, 4
      %s1153 = smul.addr %s1152, 8
      %s1154 = scalar_lea.vmem %s77, %s1153
      %v1156 = vld [vmem:[%s1149] sm:$0xff]
      %v1157 = vld [vmem:[%s1149 + $0x8] sm:$0xff]
      %v1158 = vld [vmem:[%s1149 + $0x10] sm:$0xff]
      %v1159 = vld [vmem:[%s1149 + $0x18] sm:$0xff]
      %v1160 = vld [vmem:[%s1149 + $0x20] sm:$0xff]
      %v1161 = vld [vmem:[%s1149 + $0x28] sm:$0xff]
      %v1162 = vld [vmem:[%s1149 + $0x30] sm:$0xff]
      %v1163 = vld [vmem:[%s1149 + $0x38] sm:$0xff]
      %v1164 = vld [vmem:[%s1149 + $0x40] sm:$0xff]
      %v1165 = vld [vmem:[%s1149 + $0x48] sm:$0xff]
      %v1166 = vld [vmem:[%s1149 + $0x50] sm:$0xff]
      %v1167 = vld [vmem:[%s1149 + $0x58] sm:$0xff]
      %v1168 = vld [vmem:[%s1149 + $0x60] sm:$0xff]
      %v1169 = vld [vmem:[%s1149 + $0x68] sm:$0xff]
      %v1170 = vld [vmem:[%s1149 + $0x70] sm:$0xff]
      %v1171 = vld [vmem:[%s1149 + $0x78] sm:$0xff]
      %v1172 = vld [vmem:[%s1149 + $0x80] sm:$0xff]
      %v1173 = vld [vmem:[%s1149 + $0x88] sm:$0xff]
      %v1174 = vld [vmem:[%s1149 + $0x90] sm:$0xff]
      %v1175 = vld [vmem:[%s1149 + $0x98] sm:$0xff]
      %v1176 = vld [vmem:[%s1149 + $0xa0] sm:$0xff]
      %v1177 = vld [vmem:[%s1149 + $0xa8] sm:$0xff]
      %v1178 = vld [vmem:[%s1149 + $0xb0] sm:$0xff]
      %v1179 = vld [vmem:[%s1149 + $0xb8] sm:$0xff]
      %v1180 = vld [vmem:[%s1149 + $0xc0] sm:$0xff]
      %v1181 = vld [vmem:[%s1149 + $0xc8] sm:$0xff]
      %v1182 = vld [vmem:[%s1149 + $0xd0] sm:$0xff]
      %v1183 = vld [vmem:[%s1149 + $0xd8] sm:$0xff]
      %v1184 = vld [vmem:[%s1149 + $0xe0] sm:$0xff]
      %v1185 = vld [vmem:[%s1149 + $0xe8] sm:$0xff]
      %v1186 = vld [vmem:[%s1149 + $0xf0] sm:$0xff]
      %v1187 = vld [vmem:[%s1149 + $0xf8] sm:$0xff]
      %v1188 = vld [vmem:[%s3] sm:$0xf]
      %v1189 = vld [vmem:[%s3 + $0x4] sm:$0xf]
      %v1190 = vld [vmem:[%s3 + $0x8] sm:$0xf]
      %v1191 = vld [vmem:[%s3 + $0xc] sm:$0xf]
      %v1192 = vld [vmem:[%s3 + $0x10] sm:$0xf]
      %v1193 = vld [vmem:[%s3 + $0x14] sm:$0xf]
      %v1194 = vld [vmem:[%s3 + $0x18] sm:$0xf]
      %v1195 = vld [vmem:[%s3 + $0x1c] sm:$0xf]
      %v1196 = vld [vmem:[%s3 + $0x20] sm:$0xf]
      %v1197 = vld [vmem:[%s3 + $0x24] sm:$0xf]
      %v1198 = vld [vmem:[%s3 + $0x28] sm:$0xf]
      %v1199 = vld [vmem:[%s3 + $0x2c] sm:$0xf]
      %v1200 = vld [vmem:[%s3 + $0x30] sm:$0xf]
      %v1201 = vld [vmem:[%s3 + $0x34] sm:$0xf]
      %v1202 = vld [vmem:[%s3 + $0x38] sm:$0xf]
      %v1203 = vld [vmem:[%s3 + $0x3c] sm:$0xf]
      %v1204 = vld [vmem:[%s3 + $0x40] sm:$0xf]
      %v1205 = vld [vmem:[%s3 + $0x44] sm:$0xf]
      %v1206 = vld [vmem:[%s5] sm:$0x1]
      %v1208 = vperm.slane %v1206, 0
      %v1242 = vunpack.c.l.b16 %v1156
      %v1243 = vunpack.c.h.b16 %v1156
      %v1244 = vunpack.c.l.b16 %v1157
      %v1245 = vunpack.c.h.b16 %v1157
      %v1246 = vunpack.c.l.b16 %v1158
      %v1247 = vunpack.c.h.b16 %v1158
      %v1248 = vunpack.c.l.b16 %v1159
      %v1249 = vunpack.c.h.b16 %v1159
      %v1250 = vunpack.c.l.b16 %v1160
      %v1251 = vunpack.c.h.b16 %v1160
      %v1252 = vunpack.c.l.b16 %v1161
      %v1253 = vunpack.c.h.b16 %v1161
      %v1254 = vunpack.c.l.b16 %v1162
      %v1255 = vunpack.c.h.b16 %v1162
      %v1256 = vunpack.c.l.b16 %v1163
      %v1257 = vunpack.c.h.b16 %v1163
      %v1258 = vunpack.c.l.b16 %v1164
      %v1259 = vunpack.c.h.b16 %v1164
      %v1260 = vunpack.c.l.b16 %v1165
      %v1261 = vunpack.c.h.b16 %v1165
      %v1262 = vunpack.c.l.b16 %v1166
      %v1263 = vunpack.c.h.b16 %v1166
      %v1264 = vunpack.c.l.b16 %v1167
      %v1265 = vunpack.c.h.b16 %v1167
      %v1266 = vunpack.c.l.b16 %v1168
      %v1267 = vunpack.c.h.b16 %v1168
      %v1268 = vunpack.c.l.b16 %v1169
      %v1269 = vunpack.c.h.b16 %v1169
      %v1270 = vunpack.c.l.b16 %v1170
      %v1271 = vunpack.c.h.b16 %v1170
      %v1272 = vunpack.c.l.b16 %v1171
      %v1273 = vunpack.c.h.b16 %v1171
      %v1274 = vunpack.c.l.b16 %v1172
      %v1275 = vunpack.c.h.b16 %v1172
      %v1276 = vunpack.c.l.b16 %v1173
      %v1277 = vunpack.c.h.b16 %v1173
      %v1278 = vunpack.c.l.b16 %v1174
      %v1279 = vunpack.c.h.b16 %v1174
      %v1280 = vunpack.c.l.b16 %v1175
      %v1281 = vunpack.c.h.b16 %v1175
      %v1282 = vunpack.c.l.b16 %v1176
      %v1283 = vunpack.c.h.b16 %v1176
      %v1284 = vunpack.c.l.b16 %v1177
      %v1285 = vunpack.c.h.b16 %v1177
      %v1286 = vunpack.c.l.b16 %v1178
      %v1287 = vunpack.c.h.b16 %v1178
      %v1288 = vunpack.c.l.b16 %v1179
      %v1289 = vunpack.c.h.b16 %v1179
      %v1290 = vunpack.c.l.b16 %v1180
      %v1291 = vunpack.c.h.b16 %v1180
      %v1292 = vunpack.c.l.b16 %v1181
      %v1293 = vunpack.c.h.b16 %v1181
      %v1294 = vunpack.c.l.b16 %v1182
      %v1295 = vunpack.c.h.b16 %v1182
      %v1296 = vunpack.c.l.b16 %v1183
      %v1297 = vunpack.c.h.b16 %v1183
      %v1298 = vunpack.c.l.b16 %v1184
      %v1299 = vunpack.c.h.b16 %v1184
      %v1300 = vunpack.c.l.b16 %v1185
      %v1301 = vunpack.c.h.b16 %v1185
      %v1302 = vunpack.c.l.b16 %v1186
      %v1303 = vunpack.c.h.b16 %v1186
      %v1304 = vunpack.c.l.b16 %v1187
      %v1305 = vunpack.c.h.b16 %v1187
      %v1306 = vpack.c.b16 %v1244, %v1242
      %v1307 = vpack.c.b16 %v1245, %v1243
      %v1308 = vpack.c.b16 %v1248, %v1246
      %v1309 = vpack.c.b16 %v1249, %v1247
      %v1310 = vpack.c.b16 %v1252, %v1250
      %v1311 = vpack.c.b16 %v1253, %v1251
      %v1312 = vpack.c.b16 %v1256, %v1254
      %v1313 = vpack.c.b16 %v1257, %v1255
      %v1314 = vpack.c.b16 %v1260, %v1258
      %v1315 = vpack.c.b16 %v1261, %v1259
      %v1316 = vpack.c.b16 %v1264, %v1262
      %v1317 = vpack.c.b16 %v1265, %v1263
      %v1318 = vpack.c.b16 %v1268, %v1266
      %v1319 = vpack.c.b16 %v1269, %v1267
      %v1320 = vpack.c.b16 %v1272, %v1270
      %v1321 = vpack.c.b16 %v1273, %v1271
      %v1322 = vpack.c.b16 %v1276, %v1274
      %v1323 = vpack.c.b16 %v1277, %v1275
      %v1324 = vpack.c.b16 %v1280, %v1278
      %v1325 = vpack.c.b16 %v1281, %v1279
      %v1326 = vpack.c.b16 %v1284, %v1282
      %v1327 = vpack.c.b16 %v1285, %v1283
      %v1328 = vpack.c.b16 %v1288, %v1286
      %v1329 = vpack.c.b16 %v1289, %v1287
      %v1330 = vpack.c.b16 %v1292, %v1290
      %v1331 = vpack.c.b16 %v1293, %v1291
      %v1332 = vpack.c.b16 %v1296, %v1294
      %v1333 = vpack.c.b16 %v1297, %v1295
      %v1334 = vpack.c.b16 %v1300, %v1298
      %v1335 = vpack.c.b16 %v1301, %v1299
      %v1336 = vpack.c.b16 %v1304, %v1302
      %v1337 = vpack.c.b16 %v1305, %v1303
      %v1372 = vunpack.c.l.b16 %v1188
      %v1373 = vunpack.c.l.b16 %v1189
      %v1374 = vunpack.c.l.b16 %v1190
      %v1375 = vunpack.c.l.b16 %v1191
      %v1376 = vunpack.c.l.b16 %v1192
      %v1377 = vunpack.c.l.b16 %v1193
      %v1378 = vunpack.c.l.b16 %v1194
      %v1379 = vunpack.c.l.b16 %v1195
      %v1380 = vunpack.c.l.b16 %v1196
      %v1381 = vunpack.c.l.b16 %v1197
      %v1382 = vunpack.c.l.b16 %v1198
      %v1383 = vunpack.c.l.b16 %v1199
      %v1384 = vunpack.c.l.b16 %v1200
      %v1385 = vunpack.c.l.b16 %v1201
      %v1386 = vunpack.c.l.b16 %v1202
      %v1387 = vunpack.c.l.b16 %v1203
      %v1388 = vunpack.c.l.b16 %v1204
      %v1389 = vunpack.c.l.b16 %v1205
      %v1390 = vpack.c.b16 %v1373, %v1372
      %v1391 = vpack.c.b16 %v1375, %v1374
      %v1392 = vpack.c.b16 %v1377, %v1376
      %v1393 = vpack.c.b16 %v1379, %v1378
      %v1394 = vpack.c.b16 %v1381, %v1380
      %v1395 = vpack.c.b16 %v1383, %v1382
      %v1396 = vpack.c.b16 %v1385, %v1384
      %v1397 = vpack.c.b16 %v1387, %v1386
      %v1398 = vpack.c.b16 %v1389, %v1388
      %vm1408 = vcmask 130048
      %v1410 = vsel %vm1408, %v1307, 0
      %v1413 = vsel %vm1408, %v1309, 0
      %v1416 = vsel %vm1408, %v1311, 0
      %v1419 = vsel %vm1408, %v1313, 0
      %v1422 = vsel %vm1408, %v1315, 0
      %v1425 = vsel %vm1408, %v1317, 0
      %v1428 = vsel %vm1408, %v1319, 0
      %v1431 = vsel %vm1408, %v1321, 0
      %v1434 = vsel %vm1408, %v1323, 0
      %v1437 = vsel %vm1408, %v1325, 0
      %v1440 = vsel %vm1408, %v1327, 0
      %v1443 = vsel %vm1408, %v1329, 0
      %v1446 = vsel %vm1408, %v1331, 0
      %v1449 = vsel %vm1408, %v1333, 0
      %v1452 = vsel %vm1408, %v1335, 0
      %v1455 = vsel %vm1408, %v1337, 0
      %1457 = vmatpush.bf16.msra.mxu0 %v1397
      %1458 = vmatpush.bf16.msra.mxu0 %v1396
      %1459 = vmatpush.bf16.msra.mxu0 %v1395
      %1460 = vmatpush.bf16.msra.mxu0 %v1394
      %1461 = vmatpush.bf16.msra.mxu0 %v1393
      %1462 = vmatpush.bf16.msra.mxu0 %v1392
      %1463 = vmatpush.bf16.msra.mxu0 %v1391
      %1464 = vmatpush.bf16.msra.mxu0 %v1390
      %1465 = vmatmul.bf16.gmra.mxu0 %v1306
      %v1466 = vpop.f32.mrf.mxu0
      %v1467 = vadd.f32 %v1208, %v1466
      %v1468 = vpop.f32.mrf.mxu0
      %v1469 = vadd.f32 %v1208, %v1468
      %1470 = vmatmul.bf16.gmra.mxu0 %v1308
      %v1471 = vpop.f32.mrf.mxu0
      %v1472 = vadd.f32 %v1208, %v1471
      %v1473 = vpop.f32.mrf.mxu0
      %v1474 = vadd.f32 %v1208, %v1473
      %1475 = vmatmul.bf16.gmra.mxu0 %v1310
      %v1476 = vpop.f32.mrf.mxu0
      %v1477 = vadd.f32 %v1208, %v1476
      %v1478 = vpop.f32.mrf.mxu0
      %v1479 = vadd.f32 %v1208, %v1478
      %1480 = vmatmul.bf16.gmra.mxu0 %v1312
      %v1481 = vpop.f32.mrf.mxu0
      %v1482 = vadd.f32 %v1208, %v1481
      %v1483 = vpop.f32.mrf.mxu0
      %v1484 = vadd.f32 %v1208, %v1483
      %1485 = vmatmul.bf16.gmra.mxu0 %v1314
      %v1486 = vpop.f32.mrf.mxu0
      %v1487 = vadd.f32 %v1208, %v1486
      %v1488 = vpop.f32.mrf.mxu0
      %v1489 = vadd.f32 %v1208, %v1488
      %1490 = vmatmul.bf16.gmra.mxu0 %v1316
      %v1491 = vpop.f32.mrf.mxu0
      %v1492 = vadd.f32 %v1208, %v1491
      %v1493 = vpop.f32.mrf.mxu0
      %v1494 = vadd.f32 %v1208, %v1493
      %1495 = vmatmul.bf16.gmra.mxu0 %v1318
      %v1496 = vpop.f32.mrf.mxu0
      %v1497 = vadd.f32 %v1208, %v1496
      %v1498 = vpop.f32.mrf.mxu0
      %v1499 = vadd.f32 %v1208, %v1498
      %1500 = vmatmul.bf16.gmra.mxu0 %v1320
      %v1501 = vpop.f32.mrf.mxu0
      %v1502 = vadd.f32 %v1208, %v1501
      %v1503 = vpop.f32.mrf.mxu0
      %v1504 = vadd.f32 %v1208, %v1503
      %1505 = vmatmul.bf16.gmra.mxu0 %v1322
      %v1506 = vpop.f32.mrf.mxu0
      %v1507 = vadd.f32 %v1208, %v1506
      %v1508 = vpop.f32.mrf.mxu0
      %v1509 = vadd.f32 %v1208, %v1508
      %1510 = vmatmul.bf16.gmra.mxu0 %v1324
      %v1511 = vpop.f32.mrf.mxu0
      %v1512 = vadd.f32 %v1208, %v1511
      %v1513 = vpop.f32.mrf.mxu0
      %v1514 = vadd.f32 %v1208, %v1513
      %1515 = vmatmul.bf16.gmra.mxu0 %v1326
      %v1516 = vpop.f32.mrf.mxu0
      %v1517 = vadd.f32 %v1208, %v1516
      %v1518 = vpop.f32.mrf.mxu0
      %v1519 = vadd.f32 %v1208, %v1518
      %1520 = vmatmul.bf16.gmra.mxu0 %v1328
      %v1521 = vpop.f32.mrf.mxu0
      %v1522 = vadd.f32 %v1208, %v1521
      %v1523 = vpop.f32.mrf.mxu0
      %v1524 = vadd.f32 %v1208, %v1523
      %1525 = vmatmul.bf16.gmra.mxu0 %v1330
      %v1526 = vpop.f32.mrf.mxu0
      %v1527 = vadd.f32 %v1208, %v1526
      %v1528 = vpop.f32.mrf.mxu0
      %v1529 = vadd.f32 %v1208, %v1528
      %1530 = vmatmul.bf16.gmra.mxu0 %v1332
      %v1531 = vpop.f32.mrf.mxu0
      %v1532 = vadd.f32 %v1208, %v1531
      %v1533 = vpop.f32.mrf.mxu0
      %v1534 = vadd.f32 %v1208, %v1533
      %1535 = vmatmul.bf16.gmra.mxu0 %v1334
      %v1536 = vpop.f32.mrf.mxu0
      %v1537 = vadd.f32 %v1208, %v1536
      %v1538 = vpop.f32.mrf.mxu0
      %v1539 = vadd.f32 %v1208, %v1538
      %1540 = vmatmul.bf16.gmra.mxu0 %v1336
      %v1541 = vpop.f32.mrf.mxu0
      %v1542 = vadd.f32 %v1208, %v1541
      %v1543 = vpop.f32.mrf.mxu0
      %v1544 = vadd.f32 %v1208, %v1543
      %1545 = vdwg.mxu0
      %1546 = vmatpush.bf16.msra.mxu0 0
      %1547 = vmatpush.bf16.msra.mxu0 0
      %1548 = vmatpush.bf16.msra.mxu0 0
      %1549 = vmatpush.bf16.msra.mxu0 0
      %1550 = vmatpush.bf16.msra.mxu0 0
      %1551 = vmatpush.bf16.msra.mxu0 0
      %1552 = vmatpush.bf16.msra.mxu0 0
      %1553 = vmatpush.bf16.msra.mxu0 %v1398
      %1554 = vmatmul.bf16.gmra.mxu0 %v1410
      %v1555 = vpop.f32.mrf.mxu0
      %v1556 = vadd.f32 %v1467, %v1555
      %v1557 = vpop.f32.mrf.mxu0
      %v1558 = vadd.f32 %v1469, %v1557
      %1559 = vmatmul.bf16.gmra.mxu0 %v1413
      %v1560 = vpop.f32.mrf.mxu0
      %v1561 = vadd.f32 %v1472, %v1560
      %v1562 = vpop.f32.mrf.mxu0
      %v1563 = vadd.f32 %v1474, %v1562
      %1564 = vmatmul.bf16.gmra.mxu0 %v1416
      %v1565 = vpop.f32.mrf.mxu0
      %v1566 = vadd.f32 %v1477, %v1565
      %v1567 = vpop.f32.mrf.mxu0
      %v1568 = vadd.f32 %v1479, %v1567
      %1569 = vmatmul.bf16.gmra.mxu0 %v1419
      %v1570 = vpop.f32.mrf.mxu0
      %v1571 = vadd.f32 %v1482, %v1570
      %v1572 = vpop.f32.mrf.mxu0
      %v1573 = vadd.f32 %v1484, %v1572
      %1574 = vmatmul.bf16.gmra.mxu0 %v1422
      %v1575 = vpop.f32.mrf.mxu0
      %v1576 = vadd.f32 %v1487, %v1575
      %v1577 = vpop.f32.mrf.mxu0
      %v1578 = vadd.f32 %v1489, %v1577
      %1579 = vmatmul.bf16.gmra.mxu0 %v1425
      %v1580 = vpop.f32.mrf.mxu0
      %v1581 = vadd.f32 %v1492, %v1580
      %v1582 = vpop.f32.mrf.mxu0
      %v1583 = vadd.f32 %v1494, %v1582
      %1584 = vmatmul.bf16.gmra.mxu0 %v1428
      %v1585 = vpop.f32.mrf.mxu0
      %v1586 = vadd.f32 %v1497, %v1585
      %v1587 = vpop.f32.mrf.mxu0
      %v1588 = vadd.f32 %v1499, %v1587
      %1589 = vmatmul.bf16.gmra.mxu0 %v1431
      %v1590 = vpop.f32.mrf.mxu0
      %v1591 = vadd.f32 %v1502, %v1590
      %v1592 = vpop.f32.mrf.mxu0
      %v1593 = vadd.f32 %v1504, %v1592
      %1594 = vmatmul.bf16.gmra.mxu0 %v1434
      %v1595 = vpop.f32.mrf.mxu0
      %v1596 = vadd.f32 %v1507, %v1595
      %v1597 = vpop.f32.mrf.mxu0
      %v1598 = vadd.f32 %v1509, %v1597
      %1599 = vmatmul.bf16.gmra.mxu0 %v1437
      %v1600 = vpop.f32.mrf.mxu0
      %v1601 = vadd.f32 %v1512, %v1600
      %v1602 = vpop.f32.mrf.mxu0
      %v1603 = vadd.f32 %v1514, %v1602
      %1604 = vmatmul.bf16.gmra.mxu0 %v1440
      %v1605 = vpop.f32.mrf.mxu0
      %v1606 = vadd.f32 %v1517, %v1605
      %v1607 = vpop.f32.mrf.mxu0
      %v1608 = vadd.f32 %v1519, %v1607
      %1609 = vmatmul.bf16.gmra.mxu0 %v1443
      %v1610 = vpop.f32.mrf.mxu0
      %v1611 = vadd.f32 %v1522, %v1610
      %v1612 = vpop.f32.mrf.mxu0
      %v1613 = vadd.f32 %v1524, %v1612
      %1614 = vmatmul.bf16.gmra.mxu0 %v1446
      %v1615 = vpop.f32.mrf.mxu0
      %v1616 = vadd.f32 %v1527, %v1615
      %v1617 = vpop.f32.mrf.mxu0
      %v1618 = vadd.f32 %v1529, %v1617
      %1619 = vmatmul.bf16.gmra.mxu0 %v1449
      %v1620 = vpop.f32.mrf.mxu0
      %v1621 = vadd.f32 %v1532, %v1620
      %v1622 = vpop.f32.mrf.mxu0
      %v1623 = vadd.f32 %v1534, %v1622
      %1624 = vmatmul.bf16.gmra.mxu0 %v1452
      %v1625 = vpop.f32.mrf.mxu0
      %v1626 = vadd.f32 %v1537, %v1625
      %v1627 = vpop.f32.mrf.mxu0
      %v1628 = vadd.f32 %v1539, %v1627
      %1629 = vmatmul.bf16.gmra.mxu0 %v1455
      %v1630 = vpop.f32.mrf.mxu0
      %v1631 = vadd.f32 %v1542, %v1630
      %v1632 = vpop.f32.mrf.mxu0
      %v1633 = vadd.f32 %v1544, %v1632
      %1634 = vdwg.mxu0
      %v1635 = vmax.f32 %v1556, 0.0
      %v1636 = vmax.f32 %v1558, 0.0
      %v1637 = vmax.f32 %v1561, 0.0
      %v1638 = vmax.f32 %v1563, 0.0
      %v1639 = vmax.f32 %v1566, 0.0
      %v1640 = vmax.f32 %v1568, 0.0
      %v1641 = vmax.f32 %v1571, 0.0
      %v1642 = vmax.f32 %v1573, 0.0
      %v1643 = vmax.f32 %v1576, 0.0
      %v1644 = vmax.f32 %v1578, 0.0
      %v1645 = vmax.f32 %v1581, 0.0
      %v1646 = vmax.f32 %v1583, 0.0
      %v1647 = vmax.f32 %v1586, 0.0
      %v1648 = vmax.f32 %v1588, 0.0
      %v1649 = vmax.f32 %v1591, 0.0
      %v1650 = vmax.f32 %v1593, 0.0
      %v1651 = vmax.f32 %v1596, 0.0
      %v1652 = vmax.f32 %v1598, 0.0
      %v1653 = vmax.f32 %v1601, 0.0
      %v1654 = vmax.f32 %v1603, 0.0
      %v1655 = vmax.f32 %v1606, 0.0
      %v1656 = vmax.f32 %v1608, 0.0
      %v1657 = vmax.f32 %v1611, 0.0
      %v1658 = vmax.f32 %v1613, 0.0
      %v1659 = vmax.f32 %v1616, 0.0
      %v1660 = vmax.f32 %v1618, 0.0
      %v1661 = vmax.f32 %v1621, 0.0
      %v1662 = vmax.f32 %v1623, 0.0
      %v1663 = vmax.f32 %v1626, 0.0
      %v1664 = vmax.f32 %v1628, 0.0
      %v1665 = vmax.f32 %v1631, 0.0
      %v1666 = vmax.f32 %v1633, 0.0
      %v1667 = vmax.f32 %v1635, %v1643
      %v1668 = vmax.f32 %v1636, %v1644
      %v1669 = vmax.f32 %v1637, %v1645
      %v1670 = vmax.f32 %v1638, %v1646
      %v1671 = vmax.f32 %v1639, %v1647
      %v1672 = vmax.f32 %v1640, %v1648
      %v1673 = vmax.f32 %v1641, %v1649
      %v1674 = vmax.f32 %v1642, %v1650
      %v1675 = vmax.f32 %v1651, %v1659
      %v1676 = vmax.f32 %v1652, %v1660
      %v1677 = vmax.f32 %v1653, %v1661
      %v1678 = vmax.f32 %v1654, %v1662
      %v1679 = vmax.f32 %v1655, %v1663
      %v1680 = vmax.f32 %v1656, %v1664
      %v1681 = vmax.f32 %v1657, %v1665
      %v1682 = vmax.f32 %v1658, %v1666
      %v1683 = vmax.f32 %v1667, %v1675
      %v1684 = vmax.f32 %v1668, %v1676
      %v1685 = vmax.f32 %v1669, %v1677
      %v1686 = vmax.f32 %v1670, %v1678
      %v1687 = vmax.f32 %v1671, %v1679
      %v1688 = vmax.f32 %v1672, %v1680
      %v1689 = vmax.f32 %v1673, %v1681
      %v1690 = vmax.f32 %v1674, %v1682
      %v1691 = vpack.c.bf16 %v1684, %v1683
      %v1692 = vpack.c.bf16 %v1686, %v1685
      %v1693 = vpack.c.bf16 %v1688, %v1687
      %v1694 = vpack.c.bf16 %v1690, %v1689
      %v1695 = vld [vmem:[%s13] sm:$0xf]
      %v1696 = vld [vmem:[%s13 + $0x4] sm:$0xf]
      %v1697 = vld [vmem:[%s13 + $0x8] sm:$0xf]
      %v1698 = vld [vmem:[%s13 + $0xc] sm:$0xf]
      %v1699 = vld [vmem:[%s15] sm:$0x1]
      %v1701 = vperm.slane %v1699, 0
      %v1707 = vunpack.c.l.b16 %v1695
      %v1708 = vunpack.c.l.b16 %v1696
      %v1709 = vunpack.c.l.b16 %v1697
      %v1710 = vunpack.c.l.b16 %v1698
      %v1711 = vpack.c.b16 %v1708, %v1707
      %v1712 = vpack.c.b16 %v1710, %v1709
      %vm1715 = vcmask 261120
      %v1717 = vsel %vm1715, %v1691, 0
      %v1720 = vsel %vm1715, %v1692, 0
      %v1723 = vsel %vm1715, %v1693, 0
      %v1726 = vsel %vm1715, %v1694, 0
      %1728 = vmatpush.bf16.msra.mxu0 0
      %1729 = vmatpush.bf16.msra.mxu0 0
      %1730 = vmatpush.bf16.msra.mxu0 0
      %1731 = vmatpush.bf16.msra.mxu0 0
      %1732 = vmatpush.bf16.msra.mxu0 0
      %1733 = vmatpush.bf16.msra.mxu0 0
      %1734 = vmatpush.bf16.msra.mxu0 %v1712
      %1735 = vmatpush.bf16.msra.mxu0 %v1711
      %1736 = vmatmul.bf16.gmra.mxu0 %v1717
      %v1737 = vpop.f32.mrf.mxu0
      %v1738 = vadd.f32 %v1701, %v1737
      %v1739 = vpop.f32.mrf.mxu0
      %v1740 = vadd.f32 %v1701, %v1739
      %1741 = vmatmul.bf16.gmra.mxu0 %v1720
      %v1742 = vpop.f32.mrf.mxu0
      %v1743 = vadd.f32 %v1701, %v1742
      %v1744 = vpop.f32.mrf.mxu0
      %v1745 = vadd.f32 %v1701, %v1744
      %1746 = vmatmul.bf16.gmra.mxu0 %v1723
      %v1747 = vpop.f32.mrf.mxu0
      %v1748 = vadd.f32 %v1701, %v1747
      %v1749 = vpop.f32.mrf.mxu0
      %v1750 = vadd.f32 %v1701, %v1749
      %1751 = vmatmul.bf16.gmra.mxu0 %v1726
      %v1752 = vpop.f32.mrf.mxu0
      %v1753 = vadd.f32 %v1701, %v1752
      %v1754 = vpop.f32.mrf.mxu0
      %v1755 = vadd.f32 %v1701, %v1754
      %1756 = vdwg.mxu0
      %v1757 = vmax.f32 %v1738, 0.0
      %v1758 = vmax.f32 %v1740, 0.0
      %v1759 = vmax.f32 %v1743, 0.0
      %v1760 = vmax.f32 %v1745, 0.0
      %v1761 = vmax.f32 %v1748, 0.0
      %v1762 = vmax.f32 %v1750, 0.0
      %v1763 = vmax.f32 %v1753, 0.0
      %v1764 = vmax.f32 %v1755, 0.0
      %v1765 = vpack.c.bf16 %v1758, %v1757
      %v1766 = vpack.c.bf16 %v1760, %v1759
      %v1767 = vpack.c.bf16 %v1762, %v1761
      %v1768 = vpack.c.bf16 %v1764, %v1763
      %v1769 = vld [vmem:[%s17] sm:$0xf]
      %v1770 = vld [vmem:[%s17 + $0x4] sm:$0xf]
      %v1771 = vld [vmem:[%s19] sm:$0x1]
      %v1773 = vperm.slane %v1771, 0
      %v1777 = vunpack.c.l.b16 %v1769
      %v1778 = vunpack.c.l.b16 %v1770
      %v1779 = vpack.c.b16 %v1778, %v1777
      %v1782 = vsel %vm1408, %v1765, 0
      %v1785 = vsel %vm1408, %v1766, 0
      %v1788 = vsel %vm1408, %v1767, 0
      %v1791 = vsel %vm1408, %v1768, 0
      %1793 = vmatpush.bf16.msra.mxu0 0
      %1794 = vmatpush.bf16.msra.mxu0 0
      %1795 = vmatpush.bf16.msra.mxu0 0
      %1796 = vmatpush.bf16.msra.mxu0 0
      %1797 = vmatpush.bf16.msra.mxu0 0
      %1798 = vmatpush.bf16.msra.mxu0 0
      %1799 = vmatpush.bf16.msra.mxu0 0
      %1800 = vmatpush.bf16.msra.mxu0 %v1779
      %1801 = vmatmul.bf16.gmra.mxu0 %v1782
      %v1802 = vpop.f32.mrf.mxu0
      %v1803 = vadd.f32 %v1773, %v1802
      %v1804 = vpop.f32.mrf.mxu0
      %v1805 = vadd.f32 %v1773, %v1804
      %1806 = vmatmul.bf16.gmra.mxu0 %v1785
      %v1807 = vpop.f32.mrf.mxu0
      %v1808 = vadd.f32 %v1773, %v1807
      %v1809 = vpop.f32.mrf.mxu0
      %v1810 = vadd.f32 %v1773, %v1809
      %1811 = vmatmul.bf16.gmra.mxu0 %v1788
      %v1812 = vpop.f32.mrf.mxu0
      %v1813 = vadd.f32 %v1773, %v1812
      %v1814 = vpop.f32.mrf.mxu0
      %v1815 = vadd.f32 %v1773, %v1814
      %1816 = vmatmul.bf16.gmra.mxu0 %v1791
      %v1817 = vpop.f32.mrf.mxu0
      %v1818 = vadd.f32 %v1773, %v1817
      %v1819 = vpop.f32.mrf.mxu0
      %v1820 = vadd.f32 %v1773, %v1819
      %1821 = vdwg.mxu0
      %v1822 = vmax.f32 %v1803, 0.0
      %v1823 = vmax.f32 %v1805, 0.0
      %v1824 = vmax.f32 %v1808, 0.0
      %v1825 = vmax.f32 %v1810, 0.0
      %v1826 = vmax.f32 %v1813, 0.0
      %v1827 = vmax.f32 %v1815, 0.0
      %v1828 = vmax.f32 %v1818, 0.0
      %v1829 = vmax.f32 %v1820, 0.0
      %v1830 = vld [vmem:[%s7] sm:$0xff]
      %v1831 = vld [vmem:[%s7 + $0x8] sm:$0xff]
      %v1832 = vld [vmem:[%s7 + $0x10] sm:$0xff]
      %v1833 = vld [vmem:[%s7 + $0x18] sm:$0xff]
      %v1834 = vld [vmem:[%s7 + $0x20] sm:$0xff]
      %v1835 = vld [vmem:[%s7 + $0x28] sm:$0xff]
      %v1836 = vld [vmem:[%s7 + $0x30] sm:$0xff]
      %v1837 = vld [vmem:[%s7 + $0x38] sm:$0xff]
      %v1838 = vld [vmem:[%s7 + $0x40] sm:$0xff]
      %v1839 = vld [vmem:[%s7 + $0x48] sm:$0xff]
      %v1840 = vld [vmem:[%s7 + $0x50] sm:$0xff]
      %v1841 = vld [vmem:[%s7 + $0x58] sm:$0xff]
      %v1842 = vld [vmem:[%s7 + $0x60] sm:$0xff]
      %v1843 = vld [vmem:[%s7 + $0x68] sm:$0xff]
      %v1844 = vld [vmem:[%s7 + $0x70] sm:$0xff]
      %v1845 = vld [vmem:[%s7 + $0x78] sm:$0xff]
      %v1846 = vld [vmem:[%s7 + $0x80] sm:$0xff]
      %v1847 = vld [vmem:[%s7 + $0x88] sm:$0xff]
      %v1848 = vld [vmem:[%s7 + $0x90] sm:$0xff]
      %v1849 = vld [vmem:[%s7 + $0x98] sm:$0xff]
      %v1850 = vld [vmem:[%s7 + $0xa0] sm:$0xff]
      %v1851 = vld [vmem:[%s7 + $0xa8] sm:$0xff]
      %v1852 = vld [vmem:[%s7 + $0xb0] sm:$0xff]
      %v1853 = vld [vmem:[%s7 + $0xb8] sm:$0xff]
      %v1854 = vld [vmem:[%s7 + $0xc0] sm:$0xff]
      %v1855 = vld [vmem:[%s7 + $0xc8] sm:$0xff]
      %v1856 = vld [vmem:[%s7 + $0xd0] sm:$0xff]
      %v1857 = vld [vmem:[%s7 + $0xd8] sm:$0xff]
      %v1858 = vld [vmem:[%s7 + $0xe0] sm:$0xff]
      %v1859 = vld [vmem:[%s7 + $0xe8] sm:$0xff]
      %v1860 = vld [vmem:[%s7 + $0xf0] sm:$0xff]
      %v1861 = vld [vmem:[%s7 + $0xf8] sm:$0xff]
      %v1862 = vld [vmem:[%s7 + $0x100] sm:$0xff]
      %v1863 = vld [vmem:[%s7 + $0x108] sm:$0xff]
      %v1864 = vld [vmem:[%s7 + $0x110] sm:$0xff]
      %v1865 = vld [vmem:[%s7 + $0x118] sm:$0xff]
      %v1866 = vld [vmem:[%s7 + $0x120] sm:$0xff]
      %v1867 = vld [vmem:[%s7 + $0x128] sm:$0xff]
      %v1868 = vld [vmem:[%s7 + $0x130] sm:$0xff]
      %v1869 = vld [vmem:[%s7 + $0x138] sm:$0xff]
      %v1870 = vld [vmem:[%s7 + $0x140] sm:$0xff]
      %v1871 = vld [vmem:[%s7 + $0x148] sm:$0xff]
      %v1872 = vld [vmem:[%s7 + $0x150] sm:$0xff]
      %v1873 = vld [vmem:[%s7 + $0x158] sm:$0xff]
      %v1874 = vld [vmem:[%s7 + $0x160] sm:$0xff]
      %v1875 = vld [vmem:[%s7 + $0x168] sm:$0xff]
      %v1876 = vld [vmem:[%s7 + $0x170] sm:$0xff]
      %v1877 = vld [vmem:[%s7 + $0x178] sm:$0xff]
      %v1878 = vld [vmem:[%s7 + $0x180] sm:$0xff]
      %v1879 = vld [vmem:[%s7 + $0x188] sm:$0xff]
      %v1880 = vld [vmem:[%s7 + $0x190] sm:$0xff]
      %v1881 = vld [vmem:[%s7 + $0x198] sm:$0xff]
      %v1882 = vld [vmem:[%s7 + $0x1a0] sm:$0xff]
      %v1883 = vld [vmem:[%s7 + $0x1a8] sm:$0xff]
      %v1884 = vld [vmem:[%s7 + $0x1b0] sm:$0xff]
      %v1885 = vld [vmem:[%s7 + $0x1b8] sm:$0xff]
      %v1886 = vld [vmem:[%s7 + $0x1c0] sm:$0xff]
      %v1887 = vld [vmem:[%s7 + $0x1c8] sm:$0xff]
      %v1888 = vld [vmem:[%s7 + $0x1d0] sm:$0xff]
      %v1889 = vld [vmem:[%s7 + $0x1d8] sm:$0xff]
      %v1890 = vld [vmem:[%s7 + $0x1e0] sm:$0xff]
      %v1891 = vld [vmem:[%s7 + $0x1e8] sm:$0xff]
      %v1892 = vld [vmem:[%s7 + $0x1f0] sm:$0xff]
      %v1893 = vld [vmem:[%s7 + $0x1f8] sm:$0xff]
      %v1894 = vld [vmem:[%s7 + $0x200] sm:$0xff]
      %v1895 = vld [vmem:[%s7 + $0x208] sm:$0xff]
      %v1896 = vld [vmem:[%s7 + $0x210] sm:$0xff]
      %v1897 = vld [vmem:[%s7 + $0x218] sm:$0xff]
      %v1898 = vld [vmem:[%s7 + $0x220] sm:$0xff]
      %v1899 = vld [vmem:[%s7 + $0x228] sm:$0xff]
      %v1900 = vld [vmem:[%s7 + $0x230] sm:$0xff]
      %v1901 = vld [vmem:[%s7 + $0x238] sm:$0xff]
      %1910 = vrot.lane.b32.xlu0 %v1822, 64
      %v1911 = vpop.permute.xlu0 %1910
      %1912 = vrot.lane.b32.xlu0 %v1823, 64
      %v1913 = vpop.permute.xlu0 %1912
      %1914 = vrot.lane.b32.xlu0 %v1824, 64
      %v1915 = vpop.permute.xlu0 %1914
      %1916 = vrot.lane.b32.xlu0 %v1825, 64
      %v1917 = vpop.permute.xlu0 %1916
      %1918 = vrot.lane.b32.xlu0 %v1826, 64
      %v1919 = vpop.permute.xlu0 %1918
      %1920 = vrot.lane.b32.xlu0 %v1827, 64
      %v1921 = vpop.permute.xlu0 %1920
      %1922 = vrot.lane.b32.xlu0 %v1828, 64
      %v1923 = vpop.permute.xlu0 %1922
      %1924 = vrot.lane.b32.xlu0 %v1829, 64
      %v1925 = vpop.permute.xlu0 %1924
      %vm1934 = vcmask 523264
      %v1936 = vsel %vm1934, %v1830, 0
      %v1939 = vsel %vm1934, %v1831, 0
      %v1942 = vsel %vm1934, %v1832, 0
      %v1945 = vsel %vm1934, %v1833, 0
      %v1948 = vsel %vm1934, %v1834, 0
      %v1951 = vsel %vm1934, %v1835, 0
      %v1954 = vsel %vm1934, %v1836, 0
      %v1957 = vsel %vm1934, %v1837, 0
      %v1960 = vsel %vm1934, %v1838, 0
      %v1963 = vsel %vm1934, %v1839, 0
      %v1966 = vsel %vm1934, %v1840, 0
      %v1969 = vsel %vm1934, %v1841, 0
      %v1972 = vsel %vm1934, %v1842, 0
      %v1975 = vsel %vm1934, %v1843, 0
      %v1978 = vsel %vm1934, %v1844, 0
      %v1981 = vsel %vm1934, %v1845, 0
      %v1984 = vsel %vm1934, %v1846, 0
      %v1987 = vsel %vm1934, %v1847, 0
      %v1990 = vsel %vm1934, %v1848, 0
      %v1993 = vsel %vm1934, %v1849, 0
      %v1996 = vsel %vm1934, %v1850, 0
      %v1999 = vsel %vm1934, %v1851, 0
      %v2002 = vsel %vm1934, %v1852, 0
      %v2005 = vsel %vm1934, %v1853, 0
      %v2008 = vsel %vm1934, %v1854, 0
      %v2011 = vsel %vm1934, %v1855, 0
      %v2014 = vsel %vm1934, %v1856, 0
      %v2017 = vsel %vm1934, %v1857, 0
      %v2020 = vsel %vm1934, %v1858, 0
      %v2023 = vsel %vm1934, %v1859, 0
      %v2026 = vsel %vm1934, %v1860, 0
      %v2029 = vsel %vm1934, %v1861, 0
      %v2032 = vsel %vm1934, %v1862, 0
      %v2035 = vsel %vm1934, %v1863, 0
      %v2038 = vsel %vm1934, %v1864, 0
      %v2041 = vsel %vm1934, %v1865, 0
      %v2044 = vsel %vm1934, %v1866, 0
      %v2047 = vsel %vm1934, %v1867, 0
      %v2050 = vsel %vm1934, %v1868, 0
      %v2053 = vsel %vm1934, %v1869, 0
      %v2056 = vsel %vm1934, %v1870, 0
      %v2059 = vsel %vm1934, %v1871, 0
      %v2062 = vsel %vm1934, %v1872, 0
      %v2065 = vsel %vm1934, %v1873, 0
      %v2068 = vsel %vm1934, %v1874, 0
      %v2071 = vsel %vm1934, %v1875, 0
      %v2074 = vsel %vm1934, %v1876, 0
      %v2077 = vsel %vm1934, %v1877, 0
      %v2080 = vsel %vm1934, %v1878, 0
      %v2083 = vsel %vm1934, %v1879, 0
      %v2086 = vsel %vm1934, %v1880, 0
      %v2089 = vsel %vm1934, %v1881, 0
      %v2092 = vsel %vm1934, %v1882, 0
      %v2095 = vsel %vm1934, %v1883, 0
      %v2098 = vsel %vm1934, %v1884, 0
      %v2101 = vsel %vm1934, %v1885, 0
      %v2104 = vsel %vm1934, %v1886, 0
      %v2107 = vsel %vm1934, %v1887, 0
      %v2110 = vsel %vm1934, %v1888, 0
      %v2113 = vsel %vm1934, %v1889, 0
      %v2116 = vsel %vm1934, %v1890, 0
      %v2119 = vsel %vm1934, %v1891, 0
      %v2122 = vsel %vm1934, %v1892, 0
      %v2125 = vsel %vm1934, %v1893, 0
      %v2128 = vsel %vm1934, %v1894, 0
      %v2131 = vsel %vm1934, %v1895, 0
      %v2134 = vsel %vm1934, %v1896, 0
      %v2137 = vsel %vm1934, %v1897, 0
      %v2140 = vsel %vm1934, %v1898, 0
      %v2143 = vsel %vm1934, %v1899, 0
      %v2146 = vsel %vm1934, %v1900, 0
      %v2149 = vsel %vm1934, %v1901, 0
      %2151 = vmatpush.msra.mxu0 0.0
      %2152 = vmatpush.msra.mxu0 0.0
      %2153 = vmatpush.msra.mxu0 0.0
      %2154 = vmatpush.msra.mxu0 0.0
      %2155 = vmatpush.msra.mxu0 0.0
      %2156 = vmatpush.msra.mxu0 0.0
      %2157 = vmatpush.msra.mxu0 0.0
      %2158 = vmatpush.msra.mxu0 0.0
      %2159 = vmatpush.msra.mxu0 %v1925
      %2160 = vmatpush.msra.mxu0 %v1923
      %2161 = vmatpush.msra.mxu0 %v1921
      %2162 = vmatpush.msra.mxu0 %v1919
      %2163 = vmatpush.msra.mxu0 %v1917
      %2164 = vmatpush.msra.mxu0 %v1915
      %2165 = vmatpush.msra.mxu0 %v1913
      %2166 = vmatpush.msra.mxu0 %v1911
      %2167 = vmatmul.f32.gmra.mxu0 %v1936
      %v2168 = vpop.f32.mrf.mxu0
      %v2169 = vadd.f32 0.0, %v2168
      %2170 = vmatmul.f32.gmra.mxu0 %v1939
      %v2171 = vpop.f32.mrf.mxu0
      %v2172 = vadd.f32 0.0, %v2171
      %2173 = vmatmul.f32.gmra.mxu0 %v1942
      %v2174 = vpop.f32.mrf.mxu0
      %v2175 = vadd.f32 0.0, %v2174
      %2176 = vmatmul.f32.gmra.mxu0 %v1945
      %v2177 = vpop.f32.mrf.mxu0
      %v2178 = vadd.f32 0.0, %v2177
      %2179 = vmatmul.f32.gmra.mxu0 %v1948
      %v2180 = vpop.f32.mrf.mxu0
      %v2181 = vadd.f32 0.0, %v2180
      %2182 = vmatmul.f32.gmra.mxu0 %v1951
      %v2183 = vpop.f32.mrf.mxu0
      %v2184 = vadd.f32 0.0, %v2183
      %2185 = vmatmul.f32.gmra.mxu0 %v1954
      %v2186 = vpop.f32.mrf.mxu0
      %v2187 = vadd.f32 0.0, %v2186
      %2188 = vmatmul.f32.gmra.mxu0 %v1957
      %v2189 = vpop.f32.mrf.mxu0
      %v2190 = vadd.f32 0.0, %v2189
      %2191 = vmatmul.f32.gmra.mxu0 %v1960
      %v2192 = vpop.f32.mrf.mxu0
      %v2193 = vadd.f32 0.0, %v2192
      %2194 = vmatmul.f32.gmra.mxu0 %v1963
      %v2195 = vpop.f32.mrf.mxu0
      %v2196 = vadd.f32 0.0, %v2195
      %2197 = vmatmul.f32.gmra.mxu0 %v1966
      %v2198 = vpop.f32.mrf.mxu0
      %v2199 = vadd.f32 0.0, %v2198
      %2200 = vmatmul.f32.gmra.mxu0 %v1969
      %v2201 = vpop.f32.mrf.mxu0
      %v2202 = vadd.f32 0.0, %v2201
      %2203 = vmatmul.f32.gmra.mxu0 %v1972
      %v2204 = vpop.f32.mrf.mxu0
      %v2205 = vadd.f32 0.0, %v2204
      %2206 = vmatmul.f32.gmra.mxu0 %v1975
      %v2207 = vpop.f32.mrf.mxu0
      %v2208 = vadd.f32 0.0, %v2207
      %2209 = vmatmul.f32.gmra.mxu0 %v1978
      %v2210 = vpop.f32.mrf.mxu0
      %v2211 = vadd.f32 0.0, %v2210
      %2212 = vmatmul.f32.gmra.mxu0 %v1981
      %v2213 = vpop.f32.mrf.mxu0
      %v2214 = vadd.f32 0.0, %v2213
      %2215 = vmatmul.f32.gmra.mxu0 %v1984
      %v2216 = vpop.f32.mrf.mxu0
      %v2217 = vadd.f32 0.0, %v2216
      %2218 = vmatmul.f32.gmra.mxu0 %v1987
      %v2219 = vpop.f32.mrf.mxu0
      %v2220 = vadd.f32 0.0, %v2219
      %2221 = vmatmul.f32.gmra.mxu0 %v1990
      %v2222 = vpop.f32.mrf.mxu0
      %v2223 = vadd.f32 0.0, %v2222
      %2224 = vmatmul.f32.gmra.mxu0 %v1993
      %v2225 = vpop.f32.mrf.mxu0
      %v2226 = vadd.f32 0.0, %v2225
      %2227 = vmatmul.f32.gmra.mxu0 %v1996
      %v2228 = vpop.f32.mrf.mxu0
      %v2229 = vadd.f32 0.0, %v2228
      %2230 = vmatmul.f32.gmra.mxu0 %v1999
      %v2231 = vpop.f32.mrf.mxu0
      %v2232 = vadd.f32 0.0, %v2231
      %2233 = vmatmul.f32.gmra.mxu0 %v2002
      %v2234 = vpop.f32.mrf.mxu0
      %v2235 = vadd.f32 0.0, %v2234
      %2236 = vmatmul.f32.gmra.mxu0 %v2005
      %v2237 = vpop.f32.mrf.mxu0
      %v2238 = vadd.f32 0.0, %v2237
      %2239 = vmatmul.f32.gmra.mxu0 %v2008
      %v2240 = vpop.f32.mrf.mxu0
      %v2241 = vadd.f32 0.0, %v2240
      %2242 = vmatmul.f32.gmra.mxu0 %v2011
      %v2243 = vpop.f32.mrf.mxu0
      %v2244 = vadd.f32 0.0, %v2243
      %2245 = vmatmul.f32.gmra.mxu0 %v2014
      %v2246 = vpop.f32.mrf.mxu0
      %v2247 = vadd.f32 0.0, %v2246
      %2248 = vmatmul.f32.gmra.mxu0 %v2017
      %v2249 = vpop.f32.mrf.mxu0
      %v2250 = vadd.f32 0.0, %v2249
      %2251 = vmatmul.f32.gmra.mxu0 %v2020
      %v2252 = vpop.f32.mrf.mxu0
      %v2253 = vadd.f32 0.0, %v2252
      %2254 = vmatmul.f32.gmra.mxu0 %v2023
      %v2255 = vpop.f32.mrf.mxu0
      %v2256 = vadd.f32 0.0, %v2255
      %2257 = vmatmul.f32.gmra.mxu0 %v2026
      %v2258 = vpop.f32.mrf.mxu0
      %v2259 = vadd.f32 0.0, %v2258
      %2260 = vmatmul.f32.gmra.mxu0 %v2029
      %v2261 = vpop.f32.mrf.mxu0
      %v2262 = vadd.f32 0.0, %v2261
      %2263 = vmatmul.f32.gmra.mxu0 %v2032
      %v2264 = vpop.f32.mrf.mxu0
      %v2265 = vadd.f32 0.0, %v2264
      %2266 = vmatmul.f32.gmra.mxu0 %v2035
      %v2267 = vpop.f32.mrf.mxu0
      %v2268 = vadd.f32 0.0, %v2267
      %2269 = vmatmul.f32.gmra.mxu0 %v2038
      %v2270 = vpop.f32.mrf.mxu0
      %v2271 = vadd.f32 0.0, %v2270
      %2272 = vmatmul.f32.gmra.mxu0 %v2041
      %v2273 = vpop.f32.mrf.mxu0
      %v2274 = vadd.f32 0.0, %v2273
      %2275 = vmatmul.f32.gmra.mxu0 %v2044
      %v2276 = vpop.f32.mrf.mxu0
      %v2277 = vadd.f32 0.0, %v2276
      %2278 = vmatmul.f32.gmra.mxu0 %v2047
      %v2279 = vpop.f32.mrf.mxu0
      %v2280 = vadd.f32 0.0, %v2279
      %2281 = vmatmul.f32.gmra.mxu0 %v2050
      %v2282 = vpop.f32.mrf.mxu0
      %v2283 = vadd.f32 0.0, %v2282
      %2284 = vmatmul.f32.gmra.mxu0 %v2053
      %v2285 = vpop.f32.mrf.mxu0
      %v2286 = vadd.f32 0.0, %v2285
      %2287 = vmatmul.f32.gmra.mxu0 %v2056
      %v2288 = vpop.f32.mrf.mxu0
      %v2289 = vadd.f32 0.0, %v2288
      %2290 = vmatmul.f32.gmra.mxu0 %v2059
      %v2291 = vpop.f32.mrf.mxu0
      %v2292 = vadd.f32 0.0, %v2291
      %2293 = vmatmul.f32.gmra.mxu0 %v2062
      %v2294 = vpop.f32.mrf.mxu0
      %v2295 = vadd.f32 0.0, %v2294
      %2296 = vmatmul.f32.gmra.mxu0 %v2065
      %v2297 = vpop.f32.mrf.mxu0
      %v2298 = vadd.f32 0.0, %v2297
      %2299 = vmatmul.f32.gmra.mxu0 %v2068
      %v2300 = vpop.f32.mrf.mxu0
      %v2301 = vadd.f32 0.0, %v2300
      %2302 = vmatmul.f32.gmra.mxu0 %v2071
      %v2303 = vpop.f32.mrf.mxu0
      %v2304 = vadd.f32 0.0, %v2303
      %2305 = vmatmul.f32.gmra.mxu0 %v2074
      %v2306 = vpop.f32.mrf.mxu0
      %v2307 = vadd.f32 0.0, %v2306
      %2308 = vmatmul.f32.gmra.mxu0 %v2077
      %v2309 = vpop.f32.mrf.mxu0
      %v2310 = vadd.f32 0.0, %v2309
      %2311 = vmatmul.f32.gmra.mxu0 %v2080
      %v2312 = vpop.f32.mrf.mxu0
      %v2313 = vadd.f32 0.0, %v2312
      %2314 = vmatmul.f32.gmra.mxu0 %v2083
      %v2315 = vpop.f32.mrf.mxu0
      %v2316 = vadd.f32 0.0, %v2315
      %2317 = vmatmul.f32.gmra.mxu0 %v2086
      %v2318 = vpop.f32.mrf.mxu0
      %v2319 = vadd.f32 0.0, %v2318
      %2320 = vmatmul.f32.gmra.mxu0 %v2089
      %v2321 = vpop.f32.mrf.mxu0
      %v2322 = vadd.f32 0.0, %v2321
      %2323 = vmatmul.f32.gmra.mxu0 %v2092
      %v2324 = vpop.f32.mrf.mxu0
      %v2325 = vadd.f32 0.0, %v2324
      %2326 = vmatmul.f32.gmra.mxu0 %v2095
      %v2327 = vpop.f32.mrf.mxu0
      %v2328 = vadd.f32 0.0, %v2327
      %2329 = vmatmul.f32.gmra.mxu0 %v2098
      %v2330 = vpop.f32.mrf.mxu0
      %v2331 = vadd.f32 0.0, %v2330
      %2332 = vmatmul.f32.gmra.mxu0 %v2101
      %v2333 = vpop.f32.mrf.mxu0
      %v2334 = vadd.f32 0.0, %v2333
      %2335 = vmatmul.f32.gmra.mxu0 %v2104
      %v2336 = vpop.f32.mrf.mxu0
      %v2337 = vadd.f32 0.0, %v2336
      %2338 = vmatmul.f32.gmra.mxu0 %v2107
      %v2339 = vpop.f32.mrf.mxu0
      %v2340 = vadd.f32 0.0, %v2339
      %2341 = vmatmul.f32.gmra.mxu0 %v2110
      %v2342 = vpop.f32.mrf.mxu0
      %v2343 = vadd.f32 0.0, %v2342
      %2344 = vmatmul.f32.gmra.mxu0 %v2113
      %v2345 = vpop.f32.mrf.mxu0
      %v2346 = vadd.f32 0.0, %v2345
      %2347 = vmatmul.f32.gmra.mxu0 %v2116
      %v2348 = vpop.f32.mrf.mxu0
      %v2349 = vadd.f32 0.0, %v2348
      %2350 = vmatmul.f32.gmra.mxu0 %v2119
      %v2351 = vpop.f32.mrf.mxu0
      %v2352 = vadd.f32 0.0, %v2351
      %2353 = vmatmul.f32.gmra.mxu0 %v2122
      %v2354 = vpop.f32.mrf.mxu0
      %v2355 = vadd.f32 0.0, %v2354
      %2356 = vmatmul.f32.gmra.mxu0 %v2125
      %v2357 = vpop.f32.mrf.mxu0
      %v2358 = vadd.f32 0.0, %v2357
      %2359 = vmatmul.f32.gmra.mxu0 %v2128
      %v2360 = vpop.f32.mrf.mxu0
      %v2361 = vadd.f32 0.0, %v2360
      %2362 = vmatmul.f32.gmra.mxu0 %v2131
      %v2363 = vpop.f32.mrf.mxu0
      %v2364 = vadd.f32 0.0, %v2363
      %2365 = vmatmul.f32.gmra.mxu0 %v2134
      %v2366 = vpop.f32.mrf.mxu0
      %v2367 = vadd.f32 0.0, %v2366
      %2368 = vmatmul.f32.gmra.mxu0 %v2137
      %v2369 = vpop.f32.mrf.mxu0
      %v2370 = vadd.f32 0.0, %v2369
      %2371 = vmatmul.f32.gmra.mxu0 %v2140
      %v2372 = vpop.f32.mrf.mxu0
      %v2373 = vadd.f32 0.0, %v2372
      %2374 = vmatmul.f32.gmra.mxu0 %v2143
      %v2375 = vpop.f32.mrf.mxu0
      %v2376 = vadd.f32 0.0, %v2375
      %2377 = vmatmul.f32.gmra.mxu0 %v2146
      %v2378 = vpop.f32.mrf.mxu0
      %v2379 = vadd.f32 0.0, %v2378
      %2380 = vmatmul.f32.gmra.mxu0 %v2149
      %v2381 = vpop.f32.mrf.mxu0
      %v2382 = vadd.f32 0.0, %v2381
      %2383 = vdwg.mxu0
      %v2384 = vld [vmem:[%s21] sm:$0x1]
      %v2385 = vld [vmem:[%s21 + $0x1] sm:$0x1]
      %v2386 = vld [vmem:[%s21 + $0x2] sm:$0x1]
      %v2387 = vld [vmem:[%s21 + $0x3] sm:$0x1]
      %v2388 = vld [vmem:[%s21 + $0x4] sm:$0x1]
      %v2389 = vld [vmem:[%s21 + $0x5] sm:$0x1]
      %v2390 = vld [vmem:[%s21 + $0x6] sm:$0x1]
      %v2391 = vld [vmem:[%s21 + $0x7] sm:$0x1]
      %v2392 = vld [vmem:[%s21 + $0x8] sm:$0x1]
      %v2394 = vperm.slane %v2384, 0
      %v2396 = vmul.f32 %v2169, %v2394
      %v2397 = vmul.f32 %v2172, %v2394
      %v2398 = vmul.f32 %v2175, %v2394
      %v2399 = vmul.f32 %v2178, %v2394
      %v2400 = vmul.f32 %v2181, %v2394
      %v2401 = vmul.f32 %v2184, %v2394
      %v2402 = vmul.f32 %v2187, %v2394
      %v2403 = vmul.f32 %v2190, %v2394
      %v2405 = vperm.slane %v2385, 0
      %v2407 = vmul.f32 %v2193, %v2405
      %v2408 = vmul.f32 %v2196, %v2405
      %v2409 = vmul.f32 %v2199, %v2405
      %v2410 = vmul.f32 %v2202, %v2405
      %v2411 = vmul.f32 %v2205, %v2405
      %v2412 = vmul.f32 %v2208, %v2405
      %v2413 = vmul.f32 %v2211, %v2405
      %v2414 = vmul.f32 %v2214, %v2405
      %v2415 = vadd.f32 %v2396, %v2407
      %v2416 = vadd.f32 %v2397, %v2408
      %v2417 = vadd.f32 %v2398, %v2409
      %v2418 = vadd.f32 %v2399, %v2410
      %v2419 = vadd.f32 %v2400, %v2411
      %v2420 = vadd.f32 %v2401, %v2412
      %v2421 = vadd.f32 %v2402, %v2413
      %v2422 = vadd.f32 %v2403, %v2414
      %v2424 = vperm.slane %v2386, 0
      %v2426 = vmul.f32 %v2217, %v2424
      %v2427 = vmul.f32 %v2220, %v2424
      %v2428 = vmul.f32 %v2223, %v2424
      %v2429 = vmul.f32 %v2226, %v2424
      %v2430 = vmul.f32 %v2229, %v2424
      %v2431 = vmul.f32 %v2232, %v2424
      %v2432 = vmul.f32 %v2235, %v2424
      %v2433 = vmul.f32 %v2238, %v2424
      %v2434 = vadd.f32 %v2415, %v2426
      %v2435 = vadd.f32 %v2416, %v2427
      %v2436 = vadd.f32 %v2417, %v2428
      %v2437 = vadd.f32 %v2418, %v2429
      %v2438 = vadd.f32 %v2419, %v2430
      %v2439 = vadd.f32 %v2420, %v2431
      %v2440 = vadd.f32 %v2421, %v2432
      %v2441 = vadd.f32 %v2422, %v2433
      %v2443 = vperm.slane %v2387, 0
      %v2445 = vmul.f32 %v2241, %v2443
      %v2446 = vmul.f32 %v2244, %v2443
      %v2447 = vmul.f32 %v2247, %v2443
      %v2448 = vmul.f32 %v2250, %v2443
      %v2449 = vmul.f32 %v2253, %v2443
      %v2450 = vmul.f32 %v2256, %v2443
      %v2451 = vmul.f32 %v2259, %v2443
      %v2452 = vmul.f32 %v2262, %v2443
      %v2453 = vadd.f32 %v2434, %v2445
      %v2454 = vadd.f32 %v2435, %v2446
      %v2455 = vadd.f32 %v2436, %v2447
      %v2456 = vadd.f32 %v2437, %v2448
      %v2457 = vadd.f32 %v2438, %v2449
      %v2458 = vadd.f32 %v2439, %v2450
      %v2459 = vadd.f32 %v2440, %v2451
      %v2460 = vadd.f32 %v2441, %v2452
      %v2462 = vperm.slane %v2388, 0
      %v2464 = vmul.f32 %v2265, %v2462
      %v2465 = vmul.f32 %v2268, %v2462
      %v2466 = vmul.f32 %v2271, %v2462
      %v2467 = vmul.f32 %v2274, %v2462
      %v2468 = vmul.f32 %v2277, %v2462
      %v2469 = vmul.f32 %v2280, %v2462
      %v2470 = vmul.f32 %v2283, %v2462
      %v2471 = vmul.f32 %v2286, %v2462
      %v2472 = vadd.f32 %v2453, %v2464
      %v2473 = vadd.f32 %v2454, %v2465
      %v2474 = vadd.f32 %v2455, %v2466
      %v2475 = vadd.f32 %v2456, %v2467
      %v2476 = vadd.f32 %v2457, %v2468
      %v2477 = vadd.f32 %v2458, %v2469
      %v2478 = vadd.f32 %v2459, %v2470
      %v2479 = vadd.f32 %v2460, %v2471
      %v2481 = vperm.slane %v2389, 0
      %v2483 = vmul.f32 %v2289, %v2481
      %v2484 = vmul.f32 %v2292, %v2481
      %v2485 = vmul.f32 %v2295, %v2481
      %v2486 = vmul.f32 %v2298, %v2481
      %v2487 = vmul.f32 %v2301, %v2481
      %v2488 = vmul.f32 %v2304, %v2481
      %v2489 = vmul.f32 %v2307, %v2481
      %v2490 = vmul.f32 %v2310, %v2481
      %v2491 = vadd.f32 %v2472, %v2483
      %v2492 = vadd.f32 %v2473, %v2484
      %v2493 = vadd.f32 %v2474, %v2485
      %v2494 = vadd.f32 %v2475, %v2486
      %v2495 = vadd.f32 %v2476, %v2487
      %v2496 = vadd.f32 %v2477, %v2488
      %v2497 = vadd.f32 %v2478, %v2489
      %v2498 = vadd.f32 %v2479, %v2490
      %v2500 = vperm.slane %v2390, 0
      %v2502 = vmul.f32 %v2313, %v2500
      %v2503 = vmul.f32 %v2316, %v2500
      %v2504 = vmul.f32 %v2319, %v2500
      %v2505 = vmul.f32 %v2322, %v2500
      %v2506 = vmul.f32 %v2325, %v2500
      %v2507 = vmul.f32 %v2328, %v2500
      %v2508 = vmul.f32 %v2331, %v2500
      %v2509 = vmul.f32 %v2334, %v2500
      %v2510 = vadd.f32 %v2491, %v2502
      %v2511 = vadd.f32 %v2492, %v2503
      %v2512 = vadd.f32 %v2493, %v2504
      %v2513 = vadd.f32 %v2494, %v2505
      %v2514 = vadd.f32 %v2495, %v2506
      %v2515 = vadd.f32 %v2496, %v2507
      %v2516 = vadd.f32 %v2497, %v2508
      %v2517 = vadd.f32 %v2498, %v2509
      %v2519 = vperm.slane %v2391, 0
      %v2521 = vmul.f32 %v2337, %v2519
      %v2522 = vmul.f32 %v2340, %v2519
      %v2523 = vmul.f32 %v2343, %v2519
      %v2524 = vmul.f32 %v2346, %v2519
      %v2525 = vmul.f32 %v2349, %v2519
      %v2526 = vmul.f32 %v2352, %v2519
      %v2527 = vmul.f32 %v2355, %v2519
      %v2528 = vmul.f32 %v2358, %v2519
      %v2529 = vadd.f32 %v2510, %v2521
      %v2530 = vadd.f32 %v2511, %v2522
      %v2531 = vadd.f32 %v2512, %v2523
      %v2532 = vadd.f32 %v2513, %v2524
      %v2533 = vadd.f32 %v2514, %v2525
      %v2534 = vadd.f32 %v2515, %v2526
      %v2535 = vadd.f32 %v2516, %v2527
      %v2536 = vadd.f32 %v2517, %v2528
      %v2538 = vperm.slane %v2392, 0
      %v2540 = vmul.f32 %v2361, %v2538
      %v2541 = vmul.f32 %v2364, %v2538
      %v2542 = vmul.f32 %v2367, %v2538
      %v2543 = vmul.f32 %v2370, %v2538
      %v2544 = vmul.f32 %v2373, %v2538
      %v2545 = vmul.f32 %v2376, %v2538
      %v2546 = vmul.f32 %v2379, %v2538
      %v2547 = vmul.f32 %v2382, %v2538
      %v2548 = vadd.f32 %v2529, %v2540
      %v2549 = vadd.f32 %v2530, %v2541
      %v2550 = vadd.f32 %v2531, %v2542
      %v2551 = vadd.f32 %v2532, %v2543
      %v2552 = vadd.f32 %v2533, %v2544
      %v2553 = vadd.f32 %v2534, %v2545
      %v2554 = vadd.f32 %v2535, %v2546
      %v2555 = vadd.f32 %v2536, %v2547
      %v2556 = vld [vmem:[%s23] sm:$0x1]
      %v2558 = vperm.slane %v2556, 0
      %v2560 = vadd.f32 %v2548, %v2558
      %v2561 = vadd.f32 %v2549, %v2558
      %v2562 = vadd.f32 %v2550, %v2558
      %v2563 = vadd.f32 %v2551, %v2558
      %v2564 = vadd.f32 %v2552, %v2558
      %v2565 = vadd.f32 %v2553, %v2558
      %v2566 = vadd.f32 %v2554, %v2558
      %v2567 = vadd.f32 %v2555, %v2558
      %v2568 = vmax.f32 %v2560, 0.0
      %v2569 = vmax.f32 %v2561, 0.0
      %v2570 = vmax.f32 %v2562, 0.0
      %v2571 = vmax.f32 %v2563, 0.0
      %v2572 = vmax.f32 %v2564, 0.0
      %v2573 = vmax.f32 %v2565, 0.0
      %v2574 = vmax.f32 %v2566, 0.0
      %v2575 = vmax.f32 %v2567, 0.0
      %v2576 = vpack.c.bf16 %v2569, %v2568
      %v2577 = vpack.c.bf16 %v2571, %v2570
      %v2578 = vpack.c.bf16 %v2573, %v2572
      %v2579 = vpack.c.bf16 %v2575, %v2574
      %v2580 = vld [vmem:[%s25] sm:$0xf]
      %v2581 = vld [vmem:[%s25 + $0x4] sm:$0xf]
      %v2582 = vld [vmem:[%s25 + $0x8] sm:$0xf]
      %v2583 = vld [vmem:[%s25 + $0xc] sm:$0xf]
      %v2584 = vld [vmem:[%s25 + $0x10] sm:$0xf]
      %v2585 = vld [vmem:[%s25 + $0x14] sm:$0xf]
      %v2586 = vld [vmem:[%s25 + $0x18] sm:$0xf]
      %v2587 = vld [vmem:[%s25 + $0x1c] sm:$0xf]
      %v2588 = vld [vmem:[%s27] sm:$0x1]
      %v2590 = vperm.slane %v2588, 0
      %v2600 = vunpack.c.l.b16 %v2580
      %v2601 = vunpack.c.l.b16 %v2581
      %v2602 = vunpack.c.l.b16 %v2582
      %v2603 = vunpack.c.l.b16 %v2583
      %v2604 = vunpack.c.l.b16 %v2584
      %v2605 = vunpack.c.l.b16 %v2585
      %v2606 = vunpack.c.l.b16 %v2586
      %v2607 = vunpack.c.l.b16 %v2587
      %v2608 = vpack.c.b16 %v2601, %v2600
      %v2609 = vpack.c.b16 %v2603, %v2602
      %v2610 = vpack.c.b16 %v2605, %v2604
      %v2611 = vpack.c.b16 %v2607, %v2606
      %v2617 = vsel %vm1934, %v2576, 0
      %v2620 = vsel %vm1934, %v2577, 0
      %v2623 = vsel %vm1934, %v2578, 0
      %v2626 = vsel %vm1934, %v2579, 0
      %2628 = vmatpush.bf16.msra.mxu0 0
      %2629 = vmatpush.bf16.msra.mxu0 0
      %2630 = vmatpush.bf16.msra.mxu0 0
      %2631 = vmatpush.bf16.msra.mxu0 0
      %2632 = vmatpush.bf16.msra.mxu0 %v2611
      %2633 = vmatpush.bf16.msra.mxu0 %v2610
      %2634 = vmatpush.bf16.msra.mxu0 %v2609
      %2635 = vmatpush.bf16.msra.mxu0 %v2608
      %2636 = vmatmul.bf16.gmra.mxu0 %v2617
      %v2637 = vpop.f32.mrf.mxu0
      %v2638 = vadd.f32 %v2590, %v2637
      %v2639 = vpop.f32.mrf.mxu0
      %v2640 = vadd.f32 %v2590, %v2639
      %2641 = vmatmul.bf16.gmra.mxu0 %v2620
      %v2642 = vpop.f32.mrf.mxu0
      %v2643 = vadd.f32 %v2590, %v2642
      %v2644 = vpop.f32.mrf.mxu0
      %v2645 = vadd.f32 %v2590, %v2644
      %2646 = vmatmul.bf16.gmra.mxu0 %v2623
      %v2647 = vpop.f32.mrf.mxu0
      %v2648 = vadd.f32 %v2590, %v2647
      %v2649 = vpop.f32.mrf.mxu0
      %v2650 = vadd.f32 %v2590, %v2649
      %2651 = vmatmul.bf16.gmra.mxu0 %v2626
      %v2652 = vpop.f32.mrf.mxu0
      %v2653 = vadd.f32 %v2590, %v2652
      %v2654 = vpop.f32.mrf.mxu0
      %v2655 = vadd.f32 %v2590, %v2654
      %2656 = vdwg.mxu0
      %v2657 = vmax.f32 %v2638, 0.0
      %v2658 = vmax.f32 %v2640, 0.0
      %v2659 = vmax.f32 %v2643, 0.0
      %v2660 = vmax.f32 %v2645, 0.0
      %v2661 = vmax.f32 %v2648, 0.0
      %v2662 = vmax.f32 %v2650, 0.0
      %v2663 = vmax.f32 %v2653, 0.0
      %v2664 = vmax.f32 %v2655, 0.0
      %2673 = vrot.lane.b32.xlu0 %v2657, 64
      %v2674 = vpop.permute.xlu0 %2673
      %2675 = vrot.lane.b32.xlu0 %v2658, 64
      %v2676 = vpop.permute.xlu0 %2675
      %2677 = vrot.lane.b32.xlu0 %v2659, 64
      %v2678 = vpop.permute.xlu0 %2677
      %2679 = vrot.lane.b32.xlu0 %v2660, 64
      %v2680 = vpop.permute.xlu0 %2679
      %2681 = vrot.lane.b32.xlu0 %v2661, 64
      %v2682 = vpop.permute.xlu0 %2681
      %2683 = vrot.lane.b32.xlu0 %v2662, 64
      %v2684 = vpop.permute.xlu0 %2683
      %2685 = vrot.lane.b32.xlu0 %v2663, 64
      %v2686 = vpop.permute.xlu0 %2685
      %2687 = vrot.lane.b32.xlu0 %v2664, 64
      %v2688 = vpop.permute.xlu0 %2687
      %v2697 = vsel %vm1934, %v1822, %v2674
      %v2698 = vsel %vm1934, %v1823, %v2676
      %v2699 = vsel %vm1934, %v1824, %v2678
      %v2700 = vsel %vm1934, %v1825, %v2680
      %v2701 = vsel %vm1934, %v1826, %v2682
      %v2702 = vsel %vm1934, %v1827, %v2684
      %v2703 = vsel %vm1934, %v1828, %v2686
      %v2704 = vsel %vm1934, %v1829, %v2688
      %v2705 = vpack.c.bf16 %v2698, %v2697
      %v2706 = vpack.c.bf16 %v2700, %v2699
      %v2707 = vpack.c.bf16 %v2702, %v2701
      %v2708 = vpack.c.bf16 %v2704, %v2703
      %v2709 = vld [vmem:[%s29] sm:$0xf]
      %v2710 = vld [vmem:[%s29 + $0x4] sm:$0xf]
      %v2711 = vld [vmem:[%s29 + $0x8] sm:$0xf]
      %v2712 = vld [vmem:[%s29 + $0xc] sm:$0xf]
      %v2713 = vld [vmem:[%s29 + $0x10] sm:$0xf]
      %v2714 = vld [vmem:[%s29 + $0x14] sm:$0xf]
      %v2715 = vld [vmem:[%s29 + $0x18] sm:$0xf]
      %v2716 = vld [vmem:[%s29 + $0x1c] sm:$0xf]
      %v2717 = vld [vmem:[%s29 + $0x20] sm:$0xf]
      %v2718 = vld [vmem:[%s29 + $0x24] sm:$0xf]
      %v2719 = vld [vmem:[%s29 + $0x28] sm:$0xf]
      %v2720 = vld [vmem:[%s29 + $0x2c] sm:$0xf]
      %v2721 = vld [vmem:[%s29 + $0x30] sm:$0xf]
      %v2722 = vld [vmem:[%s29 + $0x34] sm:$0xf]
      %v2723 = vld [vmem:[%s29 + $0x38] sm:$0xf]
      %v2724 = vld [vmem:[%s29 + $0x3c] sm:$0xf]
      %v2725 = vld [vmem:[%s31] sm:$0x1]
      %v2727 = vperm.slane %v2725, 0
      %v2745 = vunpack.c.l.b16 %v2709
      %v2746 = vunpack.c.l.b16 %v2710
      %v2747 = vunpack.c.l.b16 %v2711
      %v2748 = vunpack.c.l.b16 %v2712
      %v2749 = vunpack.c.l.b16 %v2713
      %v2750 = vunpack.c.l.b16 %v2714
      %v2751 = vunpack.c.l.b16 %v2715
      %v2752 = vunpack.c.l.b16 %v2716
      %v2753 = vunpack.c.l.b16 %v2717
      %v2754 = vunpack.c.l.b16 %v2718
      %v2755 = vunpack.c.l.b16 %v2719
      %v2756 = vunpack.c.l.b16 %v2720
      %v2757 = vunpack.c.l.b16 %v2721
      %v2758 = vunpack.c.l.b16 %v2722
      %v2759 = vunpack.c.l.b16 %v2723
      %v2760 = vunpack.c.l.b16 %v2724
      %v2761 = vpack.c.b16 %v2746, %v2745
      %v2762 = vpack.c.b16 %v2748, %v2747
      %v2763 = vpack.c.b16 %v2750, %v2749
      %v2764 = vpack.c.b16 %v2752, %v2751
      %v2765 = vpack.c.b16 %v2754, %v2753
      %v2766 = vpack.c.b16 %v2756, %v2755
      %v2767 = vpack.c.b16 %v2758, %v2757
      %v2768 = vpack.c.b16 %v2760, %v2759
      %2777 = vmatpush.bf16.msra.mxu0 %v2768
      %2778 = vmatpush.bf16.msra.mxu0 %v2767
      %2779 = vmatpush.bf16.msra.mxu0 %v2766
      %2780 = vmatpush.bf16.msra.mxu0 %v2765
      %2781 = vmatpush.bf16.msra.mxu0 %v2764
      %2782 = vmatpush.bf16.msra.mxu0 %v2763
      %2783 = vmatpush.bf16.msra.mxu0 %v2762
      %2784 = vmatpush.bf16.msra.mxu0 %v2761
      %2785 = vmatmul.bf16.gmra.mxu0 %v2705
      %v2786 = vpop.f32.mrf.mxu0
      %v2787 = vadd.f32 %v2727, %v2786
      %v2788 = vpop.f32.mrf.mxu0
      %v2789 = vadd.f32 %v2727, %v2788
      %2790 = vmatmul.bf16.gmra.mxu0 %v2706
      %v2791 = vpop.f32.mrf.mxu0
      %v2792 = vadd.f32 %v2727, %v2791
      %v2793 = vpop.f32.mrf.mxu0
      %v2794 = vadd.f32 %v2727, %v2793
      %2795 = vmatmul.bf16.gmra.mxu0 %v2707
      %v2796 = vpop.f32.mrf.mxu0
      %v2797 = vadd.f32 %v2727, %v2796
      %v2798 = vpop.f32.mrf.mxu0
      %v2799 = vadd.f32 %v2727, %v2798
      %2800 = vmatmul.bf16.gmra.mxu0 %v2708
      %v2801 = vpop.f32.mrf.mxu0
      %v2802 = vadd.f32 %v2727, %v2801
      %v2803 = vpop.f32.mrf.mxu0
      %v2804 = vadd.f32 %v2727, %v2803
      %2805 = vdwg.mxu0
      %v2806 = vmax.f32 %v2787, 0.0
      %v2807 = vmax.f32 %v2789, 0.0
      %v2808 = vmax.f32 %v2792, 0.0
      %v2809 = vmax.f32 %v2794, 0.0
      %v2810 = vmax.f32 %v2797, 0.0
      %v2811 = vmax.f32 %v2799, 0.0
      %v2812 = vmax.f32 %v2802, 0.0
      %v2813 = vmax.f32 %v2804, 0.0
      %v2814 = vpack.c.bf16 %v2807, %v2806
      %v2815 = vpack.c.bf16 %v2809, %v2808
      %v2816 = vpack.c.bf16 %v2811, %v2810
      %v2817 = vpack.c.bf16 %v2813, %v2812
      %v2818 = vld [vmem:[%s33] sm:$0xf]
      %v2819 = vld [vmem:[%s33 + $0x4] sm:$0xf]
      %v2820 = vld [vmem:[%s35] sm:$0x1]
      %v2822 = vperm.slane %v2820, 0
      %v2826 = vunpack.c.l.b16 %v2818
      %v2827 = vunpack.c.l.b16 %v2819
      %v2828 = vpack.c.b16 %v2827, %v2826
      %v2831 = vsel %vm1408, %v2814, 0
      %v2834 = vsel %vm1408, %v2815, 0
      %v2837 = vsel %vm1408, %v2816, 0
      %v2840 = vsel %vm1408, %v2817, 0
      %2842 = vmatpush.bf16.msra.mxu0 0
      %2843 = vmatpush.bf16.msra.mxu0 0
      %2844 = vmatpush.bf16.msra.mxu0 0
      %2845 = vmatpush.bf16.msra.mxu0 0
      %2846 = vmatpush.bf16.msra.mxu0 0
      %2847 = vmatpush.bf16.msra.mxu0 0
      %2848 = vmatpush.bf16.msra.mxu0 0
      %2849 = vmatpush.bf16.msra.mxu0 %v2828
      %2850 = vmatmul.bf16.gmra.mxu0 %v2831
      %v2851 = vpop.f32.mrf.mxu0
      %v2852 = vadd.f32 %v2822, %v2851
      %v2853 = vpop.f32.mrf.mxu0
      %v2854 = vadd.f32 %v2822, %v2853
      %2855 = vmatmul.bf16.gmra.mxu0 %v2834
      %v2856 = vpop.f32.mrf.mxu0
      %v2857 = vadd.f32 %v2822, %v2856
      %v2858 = vpop.f32.mrf.mxu0
      %v2859 = vadd.f32 %v2822, %v2858
      %2860 = vmatmul.bf16.gmra.mxu0 %v2837
      %v2861 = vpop.f32.mrf.mxu0
      %v2862 = vadd.f32 %v2822, %v2861
      %v2863 = vpop.f32.mrf.mxu0
      %v2864 = vadd.f32 %v2822, %v2863
      %2865 = vmatmul.bf16.gmra.mxu0 %v2840
      %v2866 = vpop.f32.mrf.mxu0
      %v2867 = vadd.f32 %v2822, %v2866
      %v2868 = vpop.f32.mrf.mxu0
      %v2869 = vadd.f32 %v2822, %v2868
      %2870 = vdwg.mxu0
      %v2871 = vmax.f32 %v2852, 0.0
      %v2872 = vmax.f32 %v2854, 0.0
      %v2873 = vmax.f32 %v2857, 0.0
      %v2874 = vmax.f32 %v2859, 0.0
      %v2875 = vmax.f32 %v2862, 0.0
      %v2876 = vmax.f32 %v2864, 0.0
      %v2877 = vmax.f32 %v2867, 0.0
      %v2878 = vmax.f32 %v2869, 0.0
      %2887 = vrot.lane.b32.xlu0 %v2871, 64
      %v2888 = vpop.permute.xlu0 %2887
      %2889 = vrot.lane.b32.xlu0 %v2872, 64
      %v2890 = vpop.permute.xlu0 %2889
      %2891 = vrot.lane.b32.xlu0 %v2873, 64
      %v2892 = vpop.permute.xlu0 %2891
      %2893 = vrot.lane.b32.xlu0 %v2874, 64
      %v2894 = vpop.permute.xlu0 %2893
      %2895 = vrot.lane.b32.xlu0 %v2875, 64
      %v2896 = vpop.permute.xlu0 %2895
      %2897 = vrot.lane.b32.xlu0 %v2876, 64
      %v2898 = vpop.permute.xlu0 %2897
      %2899 = vrot.lane.b32.xlu0 %v2877, 64
      %v2900 = vpop.permute.xlu0 %2899
      %2901 = vrot.lane.b32.xlu0 %v2878, 64
      %v2902 = vpop.permute.xlu0 %2901
      %2911 = vmatpush.msra.mxu0 0.0
      %2912 = vmatpush.msra.mxu0 0.0
      %2913 = vmatpush.msra.mxu0 0.0
      %2914 = vmatpush.msra.mxu0 0.0
      %2915 = vmatpush.msra.mxu0 0.0
      %2916 = vmatpush.msra.mxu0 0.0
      %2917 = vmatpush.msra.mxu0 0.0
      %2918 = vmatpush.msra.mxu0 0.0
      %2919 = vmatpush.msra.mxu0 %v2902
      %2920 = vmatpush.msra.mxu0 %v2900
      %2921 = vmatpush.msra.mxu0 %v2898
      %2922 = vmatpush.msra.mxu0 %v2896
      %2923 = vmatpush.msra.mxu0 %v2894
      %2924 = vmatpush.msra.mxu0 %v2892
      %2925 = vmatpush.msra.mxu0 %v2890
      %2926 = vmatpush.msra.mxu0 %v2888
      %2927 = vmatmul.f32.gmra.mxu0 %v1936
      %v2928 = vpop.f32.mrf.mxu0
      %v2929 = vadd.f32 0.0, %v2928
      %2930 = vmatmul.f32.gmra.mxu0 %v1939
      %v2931 = vpop.f32.mrf.mxu0
      %v2932 = vadd.f32 0.0, %v2931
      %2933 = vmatmul.f32.gmra.mxu0 %v1942
      %v2934 = vpop.f32.mrf.mxu0
      %v2935 = vadd.f32 0.0, %v2934
      %2936 = vmatmul.f32.gmra.mxu0 %v1945
      %v2937 = vpop.f32.mrf.mxu0
      %v2938 = vadd.f32 0.0, %v2937
      %2939 = vmatmul.f32.gmra.mxu0 %v1948
      %v2940 = vpop.f32.mrf.mxu0
      %v2941 = vadd.f32 0.0, %v2940
      %2942 = vmatmul.f32.gmra.mxu0 %v1951
      %v2943 = vpop.f32.mrf.mxu0
      %v2944 = vadd.f32 0.0, %v2943
      %2945 = vmatmul.f32.gmra.mxu0 %v1954
      %v2946 = vpop.f32.mrf.mxu0
      %v2947 = vadd.f32 0.0, %v2946
      %2948 = vmatmul.f32.gmra.mxu0 %v1957
      %v2949 = vpop.f32.mrf.mxu0
      %v2950 = vadd.f32 0.0, %v2949
      %2951 = vmatmul.f32.gmra.mxu0 %v1960
      %v2952 = vpop.f32.mrf.mxu0
      %v2953 = vadd.f32 0.0, %v2952
      %2954 = vmatmul.f32.gmra.mxu0 %v1963
      %v2955 = vpop.f32.mrf.mxu0
      %v2956 = vadd.f32 0.0, %v2955
      %2957 = vmatmul.f32.gmra.mxu0 %v1966
      %v2958 = vpop.f32.mrf.mxu0
      %v2959 = vadd.f32 0.0, %v2958
      %2960 = vmatmul.f32.gmra.mxu0 %v1969
      %v2961 = vpop.f32.mrf.mxu0
      %v2962 = vadd.f32 0.0, %v2961
      %2963 = vmatmul.f32.gmra.mxu0 %v1972
      %v2964 = vpop.f32.mrf.mxu0
      %v2965 = vadd.f32 0.0, %v2964
      %2966 = vmatmul.f32.gmra.mxu0 %v1975
      %v2967 = vpop.f32.mrf.mxu0
      %v2968 = vadd.f32 0.0, %v2967
      %2969 = vmatmul.f32.gmra.mxu0 %v1978
      %v2970 = vpop.f32.mrf.mxu0
      %v2971 = vadd.f32 0.0, %v2970
      %2972 = vmatmul.f32.gmra.mxu0 %v1981
      %v2973 = vpop.f32.mrf.mxu0
      %v2974 = vadd.f32 0.0, %v2973
      %2975 = vmatmul.f32.gmra.mxu0 %v1984
      %v2976 = vpop.f32.mrf.mxu0
      %v2977 = vadd.f32 0.0, %v2976
      %2978 = vmatmul.f32.gmra.mxu0 %v1987
      %v2979 = vpop.f32.mrf.mxu0
      %v2980 = vadd.f32 0.0, %v2979
      %2981 = vmatmul.f32.gmra.mxu0 %v1990
      %v2982 = vpop.f32.mrf.mxu0
      %v2983 = vadd.f32 0.0, %v2982
      %2984 = vmatmul.f32.gmra.mxu0 %v1993
      %v2985 = vpop.f32.mrf.mxu0
      %v2986 = vadd.f32 0.0, %v2985
      %2987 = vmatmul.f32.gmra.mxu0 %v1996
      %v2988 = vpop.f32.mrf.mxu0
      %v2989 = vadd.f32 0.0, %v2988
      %2990 = vmatmul.f32.gmra.mxu0 %v1999
      %v2991 = vpop.f32.mrf.mxu0
      %v2992 = vadd.f32 0.0, %v2991
      %2993 = vmatmul.f32.gmra.mxu0 %v2002
      %v2994 = vpop.f32.mrf.mxu0
      %v2995 = vadd.f32 0.0, %v2994
      %2996 = vmatmul.f32.gmra.mxu0 %v2005
      %v2997 = vpop.f32.mrf.mxu0
      %v2998 = vadd.f32 0.0, %v2997
      %2999 = vmatmul.f32.gmra.mxu0 %v2008
      %v3000 = vpop.f32.mrf.mxu0
      %v3001 = vadd.f32 0.0, %v3000
      %3002 = vmatmul.f32.gmra.mxu0 %v2011
      %v3003 = vpop.f32.mrf.mxu0
      %v3004 = vadd.f32 0.0, %v3003
      %3005 = vmatmul.f32.gmra.mxu0 %v2014
      %v3006 = vpop.f32.mrf.mxu0
      %v3007 = vadd.f32 0.0, %v3006
      %3008 = vmatmul.f32.gmra.mxu0 %v2017
      %v3009 = vpop.f32.mrf.mxu0
      %v3010 = vadd.f32 0.0, %v3009
      %3011 = vmatmul.f32.gmra.mxu0 %v2020
      %v3012 = vpop.f32.mrf.mxu0
      %v3013 = vadd.f32 0.0, %v3012
      %3014 = vmatmul.f32.gmra.mxu0 %v2023
      %v3015 = vpop.f32.mrf.mxu0
      %v3016 = vadd.f32 0.0, %v3015
      %3017 = vmatmul.f32.gmra.mxu0 %v2026
      %v3018 = vpop.f32.mrf.mxu0
      %v3019 = vadd.f32 0.0, %v3018
      %3020 = vmatmul.f32.gmra.mxu0 %v2029
      %v3021 = vpop.f32.mrf.mxu0
      %v3022 = vadd.f32 0.0, %v3021
      %3023 = vmatmul.f32.gmra.mxu0 %v2032
      %v3024 = vpop.f32.mrf.mxu0
      %v3025 = vadd.f32 0.0, %v3024
      %3026 = vmatmul.f32.gmra.mxu0 %v2035
      %v3027 = vpop.f32.mrf.mxu0
      %v3028 = vadd.f32 0.0, %v3027
      %3029 = vmatmul.f32.gmra.mxu0 %v2038
      %v3030 = vpop.f32.mrf.mxu0
      %v3031 = vadd.f32 0.0, %v3030
      %3032 = vmatmul.f32.gmra.mxu0 %v2041
      %v3033 = vpop.f32.mrf.mxu0
      %v3034 = vadd.f32 0.0, %v3033
      %3035 = vmatmul.f32.gmra.mxu0 %v2044
      %v3036 = vpop.f32.mrf.mxu0
      %v3037 = vadd.f32 0.0, %v3036
      %3038 = vmatmul.f32.gmra.mxu0 %v2047
      %v3039 = vpop.f32.mrf.mxu0
      %v3040 = vadd.f32 0.0, %v3039
      %3041 = vmatmul.f32.gmra.mxu0 %v2050
      %v3042 = vpop.f32.mrf.mxu0
      %v3043 = vadd.f32 0.0, %v3042
      %3044 = vmatmul.f32.gmra.mxu0 %v2053
      %v3045 = vpop.f32.mrf.mxu0
      %v3046 = vadd.f32 0.0, %v3045
      %3047 = vmatmul.f32.gmra.mxu0 %v2056
      %v3048 = vpop.f32.mrf.mxu0
      %v3049 = vadd.f32 0.0, %v3048
      %3050 = vmatmul.f32.gmra.mxu0 %v2059
      %v3051 = vpop.f32.mrf.mxu0
      %v3052 = vadd.f32 0.0, %v3051
      %3053 = vmatmul.f32.gmra.mxu0 %v2062
      %v3054 = vpop.f32.mrf.mxu0
      %v3055 = vadd.f32 0.0, %v3054
      %3056 = vmatmul.f32.gmra.mxu0 %v2065
      %v3057 = vpop.f32.mrf.mxu0
      %v3058 = vadd.f32 0.0, %v3057
      %3059 = vmatmul.f32.gmra.mxu0 %v2068
      %v3060 = vpop.f32.mrf.mxu0
      %v3061 = vadd.f32 0.0, %v3060
      %3062 = vmatmul.f32.gmra.mxu0 %v2071
      %v3063 = vpop.f32.mrf.mxu0
      %v3064 = vadd.f32 0.0, %v3063
      %3065 = vmatmul.f32.gmra.mxu0 %v2074
      %v3066 = vpop.f32.mrf.mxu0
      %v3067 = vadd.f32 0.0, %v3066
      %3068 = vmatmul.f32.gmra.mxu0 %v2077
      %v3069 = vpop.f32.mrf.mxu0
      %v3070 = vadd.f32 0.0, %v3069
      %3071 = vmatmul.f32.gmra.mxu0 %v2080
      %v3072 = vpop.f32.mrf.mxu0
      %v3073 = vadd.f32 0.0, %v3072
      %3074 = vmatmul.f32.gmra.mxu0 %v2083
      %v3075 = vpop.f32.mrf.mxu0
      %v3076 = vadd.f32 0.0, %v3075
      %3077 = vmatmul.f32.gmra.mxu0 %v2086
      %v3078 = vpop.f32.mrf.mxu0
      %v3079 = vadd.f32 0.0, %v3078
      %3080 = vmatmul.f32.gmra.mxu0 %v2089
      %v3081 = vpop.f32.mrf.mxu0
      %v3082 = vadd.f32 0.0, %v3081
      %3083 = vmatmul.f32.gmra.mxu0 %v2092
      %v3084 = vpop.f32.mrf.mxu0
      %v3085 = vadd.f32 0.0, %v3084
      %3086 = vmatmul.f32.gmra.mxu0 %v2095
      %v3087 = vpop.f32.mrf.mxu0
      %v3088 = vadd.f32 0.0, %v3087
      %3089 = vmatmul.f32.gmra.mxu0 %v2098
      %v3090 = vpop.f32.mrf.mxu0
      %v3091 = vadd.f32 0.0, %v3090
      %3092 = vmatmul.f32.gmra.mxu0 %v2101
      %v3093 = vpop.f32.mrf.mxu0
      %v3094 = vadd.f32 0.0, %v3093
      %3095 = vmatmul.f32.gmra.mxu0 %v2104
      %v3096 = vpop.f32.mrf.mxu0
      %v3097 = vadd.f32 0.0, %v3096
      %3098 = vmatmul.f32.gmra.mxu0 %v2107
      %v3099 = vpop.f32.mrf.mxu0
      %v3100 = vadd.f32 0.0, %v3099
      %3101 = vmatmul.f32.gmra.mxu0 %v2110
      %v3102 = vpop.f32.mrf.mxu0
      %v3103 = vadd.f32 0.0, %v3102
      %3104 = vmatmul.f32.gmra.mxu0 %v2113
      %v3105 = vpop.f32.mrf.mxu0
      %v3106 = vadd.f32 0.0, %v3105
      %3107 = vmatmul.f32.gmra.mxu0 %v2116
      %v3108 = vpop.f32.mrf.mxu0
      %v3109 = vadd.f32 0.0, %v3108
      %3110 = vmatmul.f32.gmra.mxu0 %v2119
      %v3111 = vpop.f32.mrf.mxu0
      %v3112 = vadd.f32 0.0, %v3111
      %3113 = vmatmul.f32.gmra.mxu0 %v2122
      %v3114 = vpop.f32.mrf.mxu0
      %v3115 = vadd.f32 0.0, %v3114
      %3116 = vmatmul.f32.gmra.mxu0 %v2125
      %v3117 = vpop.f32.mrf.mxu0
      %v3118 = vadd.f32 0.0, %v3117
      %3119 = vmatmul.f32.gmra.mxu0 %v2128
      %v3120 = vpop.f32.mrf.mxu0
      %v3121 = vadd.f32 0.0, %v3120
      %3122 = vmatmul.f32.gmra.mxu0 %v2131
      %v3123 = vpop.f32.mrf.mxu0
      %v3124 = vadd.f32 0.0, %v3123
      %3125 = vmatmul.f32.gmra.mxu0 %v2134
      %v3126 = vpop.f32.mrf.mxu0
      %v3127 = vadd.f32 0.0, %v3126
      %3128 = vmatmul.f32.gmra.mxu0 %v2137
      %v3129 = vpop.f32.mrf.mxu0
      %v3130 = vadd.f32 0.0, %v3129
      %3131 = vmatmul.f32.gmra.mxu0 %v2140
      %v3132 = vpop.f32.mrf.mxu0
      %v3133 = vadd.f32 0.0, %v3132
      %3134 = vmatmul.f32.gmra.mxu0 %v2143
      %v3135 = vpop.f32.mrf.mxu0
      %v3136 = vadd.f32 0.0, %v3135
      %3137 = vmatmul.f32.gmra.mxu0 %v2146
      %v3138 = vpop.f32.mrf.mxu0
      %v3139 = vadd.f32 0.0, %v3138
      %3140 = vmatmul.f32.gmra.mxu0 %v2149
      %v3141 = vpop.f32.mrf.mxu0
      %v3142 = vadd.f32 0.0, %v3141
      %3143 = vdwg.mxu0
      %v3144 = vld [vmem:[%s37] sm:$0x1]
      %v3145 = vld [vmem:[%s37 + $0x1] sm:$0x1]
      %v3146 = vld [vmem:[%s37 + $0x2] sm:$0x1]
      %v3147 = vld [vmem:[%s37 + $0x3] sm:$0x1]
      %v3148 = vld [vmem:[%s37 + $0x4] sm:$0x1]
      %v3149 = vld [vmem:[%s37 + $0x5] sm:$0x1]
      %v3150 = vld [vmem:[%s37 + $0x6] sm:$0x1]
      %v3151 = vld [vmem:[%s37 + $0x7] sm:$0x1]
      %v3152 = vld [vmem:[%s37 + $0x8] sm:$0x1]
      %v3154 = vperm.slane %v3144, 0
      %v3156 = vmul.f32 %v2929, %v3154
      %v3157 = vmul.f32 %v2932, %v3154
      %v3158 = vmul.f32 %v2935, %v3154
      %v3159 = vmul.f32 %v2938, %v3154
      %v3160 = vmul.f32 %v2941, %v3154
      %v3161 = vmul.f32 %v2944, %v3154
      %v3162 = vmul.f32 %v2947, %v3154
      %v3163 = vmul.f32 %v2950, %v3154
      %v3165 = vperm.slane %v3145, 0
      %v3167 = vmul.f32 %v2953, %v3165
      %v3168 = vmul.f32 %v2956, %v3165
      %v3169 = vmul.f32 %v2959, %v3165
      %v3170 = vmul.f32 %v2962, %v3165
      %v3171 = vmul.f32 %v2965, %v3165
      %v3172 = vmul.f32 %v2968, %v3165
      %v3173 = vmul.f32 %v2971, %v3165
      %v3174 = vmul.f32 %v2974, %v3165
      %v3175 = vadd.f32 %v3156, %v3167
      %v3176 = vadd.f32 %v3157, %v3168
      %v3177 = vadd.f32 %v3158, %v3169
      %v3178 = vadd.f32 %v3159, %v3170
      %v3179 = vadd.f32 %v3160, %v3171
      %v3180 = vadd.f32 %v3161, %v3172
      %v3181 = vadd.f32 %v3162, %v3173
      %v3182 = vadd.f32 %v3163, %v3174
      %v3184 = vperm.slane %v3146, 0
      %v3186 = vmul.f32 %v2977, %v3184
      %v3187 = vmul.f32 %v2980, %v3184
      %v3188 = vmul.f32 %v2983, %v3184
      %v3189 = vmul.f32 %v2986, %v3184
      %v3190 = vmul.f32 %v2989, %v3184
      %v3191 = vmul.f32 %v2992, %v3184
      %v3192 = vmul.f32 %v2995, %v3184
      %v3193 = vmul.f32 %v2998, %v3184
      %v3194 = vadd.f32 %v3175, %v3186
      %v3195 = vadd.f32 %v3176, %v3187
      %v3196 = vadd.f32 %v3177, %v3188
      %v3197 = vadd.f32 %v3178, %v3189
      %v3198 = vadd.f32 %v3179, %v3190
      %v3199 = vadd.f32 %v3180, %v3191
      %v3200 = vadd.f32 %v3181, %v3192
      %v3201 = vadd.f32 %v3182, %v3193
      %v3203 = vperm.slane %v3147, 0
      %v3205 = vmul.f32 %v3001, %v3203
      %v3206 = vmul.f32 %v3004, %v3203
      %v3207 = vmul.f32 %v3007, %v3203
      %v3208 = vmul.f32 %v3010, %v3203
      %v3209 = vmul.f32 %v3013, %v3203
      %v3210 = vmul.f32 %v3016, %v3203
      %v3211 = vmul.f32 %v3019, %v3203
      %v3212 = vmul.f32 %v3022, %v3203
      %v3213 = vadd.f32 %v3194, %v3205
      %v3214 = vadd.f32 %v3195, %v3206
      %v3215 = vadd.f32 %v3196, %v3207
      %v3216 = vadd.f32 %v3197, %v3208
      %v3217 = vadd.f32 %v3198, %v3209
      %v3218 = vadd.f32 %v3199, %v3210
      %v3219 = vadd.f32 %v3200, %v3211
      %v3220 = vadd.f32 %v3201, %v3212
      %v3222 = vperm.slane %v3148, 0
      %v3224 = vmul.f32 %v3025, %v3222
      %v3225 = vmul.f32 %v3028, %v3222
      %v3226 = vmul.f32 %v3031, %v3222
      %v3227 = vmul.f32 %v3034, %v3222
      %v3228 = vmul.f32 %v3037, %v3222
      %v3229 = vmul.f32 %v3040, %v3222
      %v3230 = vmul.f32 %v3043, %v3222
      %v3231 = vmul.f32 %v3046, %v3222
      %v3232 = vadd.f32 %v3213, %v3224
      %v3233 = vadd.f32 %v3214, %v3225
      %v3234 = vadd.f32 %v3215, %v3226
      %v3235 = vadd.f32 %v3216, %v3227
      %v3236 = vadd.f32 %v3217, %v3228
      %v3237 = vadd.f32 %v3218, %v3229
      %v3238 = vadd.f32 %v3219, %v3230
      %v3239 = vadd.f32 %v3220, %v3231
      %v3241 = vperm.slane %v3149, 0
      %v3243 = vmul.f32 %v3049, %v3241
      %v3244 = vmul.f32 %v3052, %v3241
      %v3245 = vmul.f32 %v3055, %v3241
      %v3246 = vmul.f32 %v3058, %v3241
      %v3247 = vmul.f32 %v3061, %v3241
      %v3248 = vmul.f32 %v3064, %v3241
      %v3249 = vmul.f32 %v3067, %v3241
      %v3250 = vmul.f32 %v3070, %v3241
      %v3251 = vadd.f32 %v3232, %v3243
      %v3252 = vadd.f32 %v3233, %v3244
      %v3253 = vadd.f32 %v3234, %v3245
      %v3254 = vadd.f32 %v3235, %v3246
      %v3255 = vadd.f32 %v3236, %v3247
      %v3256 = vadd.f32 %v3237, %v3248
      %v3257 = vadd.f32 %v3238, %v3249
      %v3258 = vadd.f32 %v3239, %v3250
      %v3260 = vperm.slane %v3150, 0
      %v3262 = vmul.f32 %v3073, %v3260
      %v3263 = vmul.f32 %v3076, %v3260
      %v3264 = vmul.f32 %v3079, %v3260
      %v3265 = vmul.f32 %v3082, %v3260
      %v3266 = vmul.f32 %v3085, %v3260
      %v3267 = vmul.f32 %v3088, %v3260
      %v3268 = vmul.f32 %v3091, %v3260
      %v3269 = vmul.f32 %v3094, %v3260
      %v3270 = vadd.f32 %v3251, %v3262
      %v3271 = vadd.f32 %v3252, %v3263
      %v3272 = vadd.f32 %v3253, %v3264
      %v3273 = vadd.f32 %v3254, %v3265
      %v3274 = vadd.f32 %v3255, %v3266
      %v3275 = vadd.f32 %v3256, %v3267
      %v3276 = vadd.f32 %v3257, %v3268
      %v3277 = vadd.f32 %v3258, %v3269
      %v3279 = vperm.slane %v3151, 0
      %v3281 = vmul.f32 %v3097, %v3279
      %v3282 = vmul.f32 %v3100, %v3279
      %v3283 = vmul.f32 %v3103, %v3279
      %v3284 = vmul.f32 %v3106, %v3279
      %v3285 = vmul.f32 %v3109, %v3279
      %v3286 = vmul.f32 %v3112, %v3279
      %v3287 = vmul.f32 %v3115, %v3279
      %v3288 = vmul.f32 %v3118, %v3279
      %v3289 = vadd.f32 %v3270, %v3281
      %v3290 = vadd.f32 %v3271, %v3282
      %v3291 = vadd.f32 %v3272, %v3283
      %v3292 = vadd.f32 %v3273, %v3284
      %v3293 = vadd.f32 %v3274, %v3285
      %v3294 = vadd.f32 %v3275, %v3286
      %v3295 = vadd.f32 %v3276, %v3287
      %v3296 = vadd.f32 %v3277, %v3288
      %v3298 = vperm.slane %v3152, 0
      %v3300 = vmul.f32 %v3121, %v3298
      %v3301 = vmul.f32 %v3124, %v3298
      %v3302 = vmul.f32 %v3127, %v3298
      %v3303 = vmul.f32 %v3130, %v3298
      %v3304 = vmul.f32 %v3133, %v3298
      %v3305 = vmul.f32 %v3136, %v3298
      %v3306 = vmul.f32 %v3139, %v3298
      %v3307 = vmul.f32 %v3142, %v3298
      %v3308 = vadd.f32 %v3289, %v3300
      %v3309 = vadd.f32 %v3290, %v3301
      %v3310 = vadd.f32 %v3291, %v3302
      %v3311 = vadd.f32 %v3292, %v3303
      %v3312 = vadd.f32 %v3293, %v3304
      %v3313 = vadd.f32 %v3294, %v3305
      %v3314 = vadd.f32 %v3295, %v3306
      %v3315 = vadd.f32 %v3296, %v3307
      %v3316 = vld [vmem:[%s39] sm:$0x1]
      %v3318 = vperm.slane %v3316, 0
      %v3320 = vadd.f32 %v3308, %v3318
      %v3321 = vadd.f32 %v3309, %v3318
      %v3322 = vadd.f32 %v3310, %v3318
      %v3323 = vadd.f32 %v3311, %v3318
      %v3324 = vadd.f32 %v3312, %v3318
      %v3325 = vadd.f32 %v3313, %v3318
      %v3326 = vadd.f32 %v3314, %v3318
      %v3327 = vadd.f32 %v3315, %v3318
      %v3328 = vmax.f32 %v3320, 0.0
      %v3329 = vmax.f32 %v3321, 0.0
      %v3330 = vmax.f32 %v3322, 0.0
      %v3331 = vmax.f32 %v3323, 0.0
      %v3332 = vmax.f32 %v3324, 0.0
      %v3333 = vmax.f32 %v3325, 0.0
      %v3334 = vmax.f32 %v3326, 0.0
      %v3335 = vmax.f32 %v3327, 0.0
      %v3336 = vpack.c.bf16 %v3329, %v3328
      %v3337 = vpack.c.bf16 %v3331, %v3330
      %v3338 = vpack.c.bf16 %v3333, %v3332
      %v3339 = vpack.c.bf16 %v3335, %v3334
      %v3340 = vld [vmem:[%s41] sm:$0xf]
      %v3341 = vld [vmem:[%s41 + $0x4] sm:$0xf]
      %v3342 = vld [vmem:[%s41 + $0x8] sm:$0xf]
      %v3343 = vld [vmem:[%s41 + $0xc] sm:$0xf]
      %v3344 = vld [vmem:[%s41 + $0x10] sm:$0xf]
      %v3345 = vld [vmem:[%s41 + $0x14] sm:$0xf]
      %v3346 = vld [vmem:[%s41 + $0x18] sm:$0xf]
      %v3347 = vld [vmem:[%s41 + $0x1c] sm:$0xf]
      %v3348 = vld [vmem:[%s43] sm:$0x1]
      %v3350 = vperm.slane %v3348, 0
      %v3360 = vunpack.c.l.b16 %v3340
      %v3361 = vunpack.c.l.b16 %v3341
      %v3362 = vunpack.c.l.b16 %v3342
      %v3363 = vunpack.c.l.b16 %v3343
      %v3364 = vunpack.c.l.b16 %v3344
      %v3365 = vunpack.c.l.b16 %v3345
      %v3366 = vunpack.c.l.b16 %v3346
      %v3367 = vunpack.c.l.b16 %v3347
      %v3368 = vpack.c.b16 %v3361, %v3360
      %v3369 = vpack.c.b16 %v3363, %v3362
      %v3370 = vpack.c.b16 %v3365, %v3364
      %v3371 = vpack.c.b16 %v3367, %v3366
      %v3377 = vsel %vm1934, %v3336, 0
      %v3380 = vsel %vm1934, %v3337, 0
      %v3383 = vsel %vm1934, %v3338, 0
      %v3386 = vsel %vm1934, %v3339, 0
      %3388 = vmatpush.bf16.msra.mxu0 0
      %3389 = vmatpush.bf16.msra.mxu0 0
      %3390 = vmatpush.bf16.msra.mxu0 0
      %3391 = vmatpush.bf16.msra.mxu0 0
      %3392 = vmatpush.bf16.msra.mxu0 %v3371
      %3393 = vmatpush.bf16.msra.mxu0 %v3370
      %3394 = vmatpush.bf16.msra.mxu0 %v3369
      %3395 = vmatpush.bf16.msra.mxu0 %v3368
      %3396 = vmatmul.bf16.gmra.mxu0 %v3377
      %v3397 = vpop.f32.mrf.mxu0
      %v3398 = vadd.f32 %v3350, %v3397
      %v3399 = vpop.f32.mrf.mxu0
      %v3400 = vadd.f32 %v3350, %v3399
      %3401 = vmatmul.bf16.gmra.mxu0 %v3380
      %v3402 = vpop.f32.mrf.mxu0
      %v3403 = vadd.f32 %v3350, %v3402
      %v3404 = vpop.f32.mrf.mxu0
      %v3405 = vadd.f32 %v3350, %v3404
      %3406 = vmatmul.bf16.gmra.mxu0 %v3383
      %v3407 = vpop.f32.mrf.mxu0
      %v3408 = vadd.f32 %v3350, %v3407
      %v3409 = vpop.f32.mrf.mxu0
      %v3410 = vadd.f32 %v3350, %v3409
      %3411 = vmatmul.bf16.gmra.mxu0 %v3386
      %v3412 = vpop.f32.mrf.mxu0
      %v3413 = vadd.f32 %v3350, %v3412
      %v3414 = vpop.f32.mrf.mxu0
      %v3415 = vadd.f32 %v3350, %v3414
      %3416 = vdwg.mxu0
      %v3417 = vmax.f32 %v3398, 0.0
      %v3418 = vmax.f32 %v3400, 0.0
      %v3419 = vmax.f32 %v3403, 0.0
      %v3420 = vmax.f32 %v3405, 0.0
      %v3421 = vmax.f32 %v3408, 0.0
      %v3422 = vmax.f32 %v3410, 0.0
      %v3423 = vmax.f32 %v3413, 0.0
      %v3424 = vmax.f32 %v3415, 0.0
      %3433 = vrot.lane.b32.xlu0 %v3417, 64
      %v3434 = vpop.permute.xlu0 %3433
      %3435 = vrot.lane.b32.xlu0 %v3418, 64
      %v3436 = vpop.permute.xlu0 %3435
      %3437 = vrot.lane.b32.xlu0 %v3419, 64
      %v3438 = vpop.permute.xlu0 %3437
      %3439 = vrot.lane.b32.xlu0 %v3420, 64
      %v3440 = vpop.permute.xlu0 %3439
      %3441 = vrot.lane.b32.xlu0 %v3421, 64
      %v3442 = vpop.permute.xlu0 %3441
      %3443 = vrot.lane.b32.xlu0 %v3422, 64
      %v3444 = vpop.permute.xlu0 %3443
      %3445 = vrot.lane.b32.xlu0 %v3423, 64
      %v3446 = vpop.permute.xlu0 %3445
      %3447 = vrot.lane.b32.xlu0 %v3424, 64
      %v3448 = vpop.permute.xlu0 %3447
      %v3457 = vsel %vm1934, %v2871, %v3434
      %v3458 = vsel %vm1934, %v2872, %v3436
      %v3459 = vsel %vm1934, %v2873, %v3438
      %v3460 = vsel %vm1934, %v2874, %v3440
      %v3461 = vsel %vm1934, %v2875, %v3442
      %v3462 = vsel %vm1934, %v2876, %v3444
      %v3463 = vsel %vm1934, %v2877, %v3446
      %v3464 = vsel %vm1934, %v2878, %v3448
      %v3465 = vadd.f32 %v3457, %v2697
      %v3466 = vadd.f32 %v3458, %v2698
      %v3467 = vadd.f32 %v3459, %v2699
      %v3468 = vadd.f32 %v3460, %v2700
      %v3469 = vadd.f32 %v3461, %v2701
      %v3470 = vadd.f32 %v3462, %v2702
      %v3471 = vadd.f32 %v3463, %v2703
      %v3472 = vadd.f32 %v3464, %v2704
      %v3473 = vld [vmem:[%s11] sm:$0xff]
      %v3474 = vld [vmem:[%s11 + $0x8] sm:$0xff]
      %v3475 = vld [vmem:[%s11 + $0x10] sm:$0xff]
      %v3476 = vld [vmem:[%s11 + $0x18] sm:$0xff]
      %v3477 = vld [vmem:[%s11 + $0x20] sm:$0xff]
      %v3478 = vld [vmem:[%s11 + $0x28] sm:$0xff]
      %v3479 = vld [vmem:[%s11 + $0x30] sm:$0xff]
      %v3480 = vld [vmem:[%s11 + $0x38] sm:$0xff]
      %v3481 = vld [vmem:[%s11 + $0x40] sm:$0xff]
      %v3482 = vld [vmem:[%s11 + $0x48] sm:$0xff]
      %v3483 = vld [vmem:[%s11 + $0x50] sm:$0xff]
      %v3484 = vld [vmem:[%s11 + $0x58] sm:$0xff]
      %v3485 = vld [vmem:[%s11 + $0x60] sm:$0xff]
      %v3486 = vld [vmem:[%s11 + $0x68] sm:$0xff]
      %v3487 = vld [vmem:[%s11 + $0x70] sm:$0xff]
      %v3488 = vld [vmem:[%s11 + $0x78] sm:$0xff]
      %v3489 = vld [vmem:[%s11 + $0x80] sm:$0xff]
      %v3490 = vld [vmem:[%s11 + $0x88] sm:$0xff]
      %v3492 = vsel %vm1934, %v3473, 0
      %v3495 = vsel %vm1934, %v3474, 0
      %v3498 = vsel %vm1934, %v3475, 0
      %v3501 = vsel %vm1934, %v3476, 0
      %v3504 = vsel %vm1934, %v3477, 0
      %v3507 = vsel %vm1934, %v3478, 0
      %v3510 = vsel %vm1934, %v3479, 0
      %v3513 = vsel %vm1934, %v3480, 0
      %v3516 = vsel %vm1934, %v3481, 0
      %v3519 = vsel %vm1934, %v3482, 0
      %v3522 = vsel %vm1934, %v3483, 0
      %v3525 = vsel %vm1934, %v3484, 0
      %v3528 = vsel %vm1934, %v3485, 0
      %v3531 = vsel %vm1934, %v3486, 0
      %v3534 = vsel %vm1934, %v3487, 0
      %v3537 = vsel %vm1934, %v3488, 0
      %v3540 = vsel %vm1934, %v3489, 0
      %v3543 = vsel %vm1934, %v3490, 0
      %3545 = vmatpush.msra.mxu0 0.0
      %3546 = vmatpush.msra.mxu0 0.0
      %3547 = vmatpush.msra.mxu0 0.0
      %3548 = vmatpush.msra.mxu0 0.0
      %3549 = vmatpush.msra.mxu0 0.0
      %3550 = vmatpush.msra.mxu0 0.0
      %3551 = vmatpush.msra.mxu0 0.0
      %3552 = vmatpush.msra.mxu0 0.0
      %3553 = vmatpush.msra.mxu0 %v3472
      %3554 = vmatpush.msra.mxu0 %v3471
      %3555 = vmatpush.msra.mxu0 %v3470
      %3556 = vmatpush.msra.mxu0 %v3469
      %3557 = vmatpush.msra.mxu0 %v3468
      %3558 = vmatpush.msra.mxu0 %v3467
      %3559 = vmatpush.msra.mxu0 %v3466
      %3560 = vmatpush.msra.mxu0 %v3465
      %3561 = vmatmul.f32.gmra.mxu0 %v3492
      %v3562 = vpop.f32.mrf.mxu0
      %v3563 = vadd.f32 0.0, %v3562
      %3564 = vmatmul.f32.gmra.mxu0 %v3495
      %v3565 = vpop.f32.mrf.mxu0
      %v3566 = vadd.f32 0.0, %v3565
      %3567 = vmatmul.f32.gmra.mxu0 %v3498
      %v3568 = vpop.f32.mrf.mxu0
      %v3569 = vadd.f32 0.0, %v3568
      %3570 = vmatmul.f32.gmra.mxu0 %v3501
      %v3571 = vpop.f32.mrf.mxu0
      %v3572 = vadd.f32 0.0, %v3571
      %3573 = vmatmul.f32.gmra.mxu0 %v3504
      %v3574 = vpop.f32.mrf.mxu0
      %v3575 = vadd.f32 0.0, %v3574
      %3576 = vmatmul.f32.gmra.mxu0 %v3507
      %v3577 = vpop.f32.mrf.mxu0
      %v3578 = vadd.f32 0.0, %v3577
      %3579 = vmatmul.f32.gmra.mxu0 %v3510
      %v3580 = vpop.f32.mrf.mxu0
      %v3581 = vadd.f32 0.0, %v3580
      %3582 = vmatmul.f32.gmra.mxu0 %v3513
      %v3583 = vpop.f32.mrf.mxu0
      %v3584 = vadd.f32 0.0, %v3583
      %3585 = vmatmul.f32.gmra.mxu0 %v3516
      %v3586 = vpop.f32.mrf.mxu0
      %v3587 = vadd.f32 0.0, %v3586
      %3588 = vmatmul.f32.gmra.mxu0 %v3519
      %v3589 = vpop.f32.mrf.mxu0
      %v3590 = vadd.f32 0.0, %v3589
      %3591 = vmatmul.f32.gmra.mxu0 %v3522
      %v3592 = vpop.f32.mrf.mxu0
      %v3593 = vadd.f32 0.0, %v3592
      %3594 = vmatmul.f32.gmra.mxu0 %v3525
      %v3595 = vpop.f32.mrf.mxu0
      %v3596 = vadd.f32 0.0, %v3595
      %3597 = vmatmul.f32.gmra.mxu0 %v3528
      %v3598 = vpop.f32.mrf.mxu0
      %v3599 = vadd.f32 0.0, %v3598
      %3600 = vmatmul.f32.gmra.mxu0 %v3531
      %v3601 = vpop.f32.mrf.mxu0
      %v3602 = vadd.f32 0.0, %v3601
      %3603 = vmatmul.f32.gmra.mxu0 %v3534
      %v3604 = vpop.f32.mrf.mxu0
      %v3605 = vadd.f32 0.0, %v3604
      %3606 = vmatmul.f32.gmra.mxu0 %v3537
      %v3607 = vpop.f32.mrf.mxu0
      %v3608 = vadd.f32 0.0, %v3607
      %3609 = vmatmul.f32.gmra.mxu0 %v3540
      %v3610 = vpop.f32.mrf.mxu0
      %v3611 = vadd.f32 0.0, %v3610
      %3612 = vmatmul.f32.gmra.mxu0 %v3543
      %v3613 = vpop.f32.mrf.mxu0
      %v3614 = vadd.f32 0.0, %v3613
      %3615 = vdwg.mxu0
      %v3616 = vmax.f32 %v3563, %v3569
      %v3617 = vmax.f32 %v3566, %v3572
      %v3618 = vmax.f32 %v3616, %v3575
      %v3619 = vmax.f32 %v3617, %v3578
      %v3620 = vmax.f32 %v3618, %v3581
      %v3621 = vmax.f32 %v3619, %v3584
      %v3622 = vmax.f32 %v3620, %v3587
      %v3623 = vmax.f32 %v3621, %v3590
      %v3624 = vmax.f32 %v3622, %v3593
      %v3625 = vmax.f32 %v3623, %v3596
      %v3626 = vmax.f32 %v3624, %v3599
      %v3627 = vmax.f32 %v3625, %v3602
      %v3628 = vmax.f32 %v3626, %v3605
      %v3629 = vmax.f32 %v3627, %v3608
      %v3630 = vmax.f32 %v3628, %v3611
      %v3631 = vmax.f32 %v3629, %v3614
      %v3632 = vpack.c.bf16 %v3631, %v3630
      %v3633 = vld [vmem:[%s45] sm:$0xf]
      %v3634 = vld [vmem:[%s45 + $0x4] sm:$0xf]
      %v3635 = vld [vmem:[%s45 + $0x8] sm:$0xf]
      %v3636 = vld [vmem:[%s45 + $0xc] sm:$0xf]
      %v3637 = vld [vmem:[%s45 + $0x10] sm:$0xf]
      %v3638 = vld [vmem:[%s45 + $0x14] sm:$0xf]
      %v3639 = vld [vmem:[%s45 + $0x18] sm:$0xf]
      %v3640 = vld [vmem:[%s45 + $0x1c] sm:$0xf]
      %v3641 = vld [vmem:[%s45 + $0x20] sm:$0xf]
      %v3642 = vld [vmem:[%s45 + $0x24] sm:$0xf]
      %v3643 = vld [vmem:[%s45 + $0x28] sm:$0xf]
      %v3644 = vld [vmem:[%s45 + $0x2c] sm:$0xf]
      %v3645 = vld [vmem:[%s45 + $0x30] sm:$0xf]
      %v3646 = vld [vmem:[%s45 + $0x34] sm:$0xf]
      %v3647 = vld [vmem:[%s45 + $0x38] sm:$0xf]
      %v3648 = vld [vmem:[%s45 + $0x3c] sm:$0xf]
      %v3649 = vld [vmem:[%s47] sm:$0x1]
      %v3651 = vperm.slane %v3649, 0
      %v3669 = vunpack.c.l.b16 %v3633
      %v3670 = vunpack.c.l.b16 %v3634
      %v3671 = vunpack.c.l.b16 %v3635
      %v3672 = vunpack.c.l.b16 %v3636
      %v3673 = vunpack.c.l.b16 %v3637
      %v3674 = vunpack.c.l.b16 %v3638
      %v3675 = vunpack.c.l.b16 %v3639
      %v3676 = vunpack.c.l.b16 %v3640
      %v3677 = vunpack.c.l.b16 %v3641
      %v3678 = vunpack.c.l.b16 %v3642
      %v3679 = vunpack.c.l.b16 %v3643
      %v3680 = vunpack.c.l.b16 %v3644
      %v3681 = vunpack.c.l.b16 %v3645
      %v3682 = vunpack.c.l.b16 %v3646
      %v3683 = vunpack.c.l.b16 %v3647
      %v3684 = vunpack.c.l.b16 %v3648
      %v3685 = vpack.c.b16 %v3670, %v3669
      %v3686 = vpack.c.b16 %v3672, %v3671
      %v3687 = vpack.c.b16 %v3674, %v3673
      %v3688 = vpack.c.b16 %v3676, %v3675
      %v3689 = vpack.c.b16 %v3678, %v3677
      %v3690 = vpack.c.b16 %v3680, %v3679
      %v3691 = vpack.c.b16 %v3682, %v3681
      %v3692 = vpack.c.b16 %v3684, %v3683
      %3701 = vmatpush.bf16.msra.mxu0 %v3692
      %3702 = vmatpush.bf16.msra.mxu0 %v3691
      %3703 = vmatpush.bf16.msra.mxu0 %v3690
      %3704 = vmatpush.bf16.msra.mxu0 %v3689
      %3705 = vmatpush.bf16.msra.mxu0 %v3688
      %3706 = vmatpush.bf16.msra.mxu0 %v3687
      %3707 = vmatpush.bf16.msra.mxu0 %v3686
      %3708 = vmatpush.bf16.msra.mxu0 %v3685
      %3709 = vmatmul.bf16.gmra.mxu0 %v3632
      %v3710 = vpop.f32.mrf.mxu0
      %v3711 = vadd.f32 %v3651, %v3710
      %v3712 = vpop.f32.mrf.mxu0
      %v3713 = vadd.f32 %v3651, %v3712
      %3714 = vdwg.mxu0
      %v3715 = vmax.f32 %v3711, 0.0
      %v3716 = vmax.f32 %v3713, 0.0
      %v3717 = vpack.c.bf16 %v3716, %v3715
      %v3718 = vld [vmem:[%s49] sm:$0xff]
      %v3719 = vld [vmem:[%s49 + $0x8] sm:$0xff]
      %v3720 = vld [vmem:[%s49 + $0x10] sm:$0xff]
      %v3721 = vld [vmem:[%s49 + $0x18] sm:$0xff]
      %v3722 = vld [vmem:[%s51] sm:$0x3]
      %v3724 = vperm.slane %v3722, 0
      %v3725 = vperm.slane %v3722, 1
      %v3732 = vunpack.c.l.b16 %v3718
      %v3733 = vunpack.c.h.b16 %v3718
      %v3734 = vunpack.c.l.b16 %v3719
      %v3735 = vunpack.c.h.b16 %v3719
      %v3736 = vunpack.c.l.b16 %v3720
      %v3737 = vunpack.c.h.b16 %v3720
      %v3738 = vunpack.c.l.b16 %v3721
      %v3739 = vunpack.c.h.b16 %v3721
      %v3740 = vpack.c.b16 %v3734, %v3732
      %v3741 = vpack.c.b16 %v3735, %v3733
      %v3742 = vpack.c.b16 %v3738, %v3736
      %v3743 = vpack.c.b16 %v3739, %v3737
      %v3749 = vsel %vm1715, %v3717, 0
      %3751 = vmatpush.bf16.msra.mxu0 0
      %3752 = vmatpush.bf16.msra.mxu0 0
      %3753 = vmatpush.bf16.msra.mxu0 0
      %3754 = vmatpush.bf16.msra.mxu0 0
      %3755 = vmatpush.bf16.msra.mxu0 0
      %3756 = vmatpush.bf16.msra.mxu0 0
      %3757 = vmatpush.bf16.msra.mxu0 %v3742
      %3758 = vmatpush.bf16.msra.mxu0 %v3740
      %3759 = vmatmul.bf16.gmra.mxu0 %v3749
      %v3760 = vpop.f32.mrf.mxu0
      %v3761 = vadd.f32 %v3724, %v3760
      %v3762 = vpop.f32.mrf.mxu0
      %v3763 = vadd.f32 %v3724, %v3762
      %3764 = vdwg.mxu0
      %3765 = vmatpush.bf16.msra.mxu0 0
      %3766 = vmatpush.bf16.msra.mxu0 0
      %3767 = vmatpush.bf16.msra.mxu0 0
      %3768 = vmatpush.bf16.msra.mxu0 0
      %3769 = vmatpush.bf16.msra.mxu0 0
      %3770 = vmatpush.bf16.msra.mxu0 0
      %3771 = vmatpush.bf16.msra.mxu0 %v3743
      %3772 = vmatpush.bf16.msra.mxu0 %v3741
      %3773 = vmatmul.bf16.gmra.mxu0 %v3749
      %v3774 = vpop.f32.mrf.mxu0
      %v3775 = vadd.f32 %v3725, %v3774
      %v3776 = vpop.f32.mrf.mxu0
      %v3777 = vadd.f32 %v3725, %v3776
      %3778 = vdwg.mxu0
      %v3779 = vmax.f32 %v3761, 0.0
      %v3780 = vmax.f32 %v3775, 0.0
      %v3781 = vmax.f32 %v3763, 0.0
      %v3782 = vmax.f32 %v3777, 0.0
      %v3783 = vld [vmem:[%s9] sm:$0xff]
      %v3784 = vld [vmem:[%s9 + $0x8] sm:$0xff]
      %v3785 = vld [vmem:[%s9 + $0x10] sm:$0xff]
      %v3786 = vld [vmem:[%s9 + $0x18] sm:$0xff]
      %v3787 = vld [vmem:[%s9 + $0x20] sm:$0xff]
      %v3788 = vld [vmem:[%s9 + $0x28] sm:$0xff]
      %v3789 = vld [vmem:[%s9 + $0x30] sm:$0xff]
      %v3790 = vld [vmem:[%s9 + $0x38] sm:$0xff]
      %v3791 = vld [vmem:[%s9 + $0x40] sm:$0xff]
      %v3792 = vld [vmem:[%s9 + $0x48] sm:$0xff]
      %v3793 = vld [vmem:[%s9 + $0x50] sm:$0xff]
      %v3794 = vld [vmem:[%s9 + $0x58] sm:$0xff]
      %v3795 = vld [vmem:[%s9 + $0x60] sm:$0xff]
      %v3796 = vld [vmem:[%s9 + $0x68] sm:$0xff]
      %v3797 = vld [vmem:[%s9 + $0x70] sm:$0xff]
      %v3798 = vld [vmem:[%s9 + $0x78] sm:$0xff]
      %v3799 = vld [vmem:[%s9 + $0x80] sm:$0xff]
      %v3800 = vld [vmem:[%s9 + $0x88] sm:$0xff]
      %v3802 = vsel %vm1408, %v3783, 0
      %v3805 = vsel %vm1408, %v3784, 0
      %v3808 = vsel %vm1408, %v3785, 0
      %v3811 = vsel %vm1408, %v3786, 0
      %v3814 = vsel %vm1408, %v3787, 0
      %v3817 = vsel %vm1408, %v3788, 0
      %v3820 = vsel %vm1408, %v3789, 0
      %v3823 = vsel %vm1408, %v3790, 0
      %v3826 = vsel %vm1408, %v3791, 0
      %v3829 = vsel %vm1408, %v3792, 0
      %v3832 = vsel %vm1408, %v3793, 0
      %v3835 = vsel %vm1408, %v3794, 0
      %v3838 = vsel %vm1408, %v3795, 0
      %v3841 = vsel %vm1408, %v3796, 0
      %v3844 = vsel %vm1408, %v3797, 0
      %v3847 = vsel %vm1408, %v3798, 0
      %v3850 = vsel %vm1408, %v3799, 0
      %v3853 = vsel %vm1408, %v3800, 0
      %3855 = vmatpush.msra.mxu0 0.0
      %3856 = vmatpush.msra.mxu0 0.0
      %3857 = vmatpush.msra.mxu0 0.0
      %3858 = vmatpush.msra.mxu0 0.0
      %3859 = vmatpush.msra.mxu0 0.0
      %3860 = vmatpush.msra.mxu0 0.0
      %3861 = vmatpush.msra.mxu0 0.0
      %3862 = vmatpush.msra.mxu0 0.0
      %3863 = vmatpush.msra.mxu0 0.0
      %3864 = vmatpush.msra.mxu0 0.0
      %3865 = vmatpush.msra.mxu0 0.0
      %3866 = vmatpush.msra.mxu0 0.0
      %3867 = vmatpush.msra.mxu0 0.0
      %3868 = vmatpush.msra.mxu0 0.0
      %3869 = vmatpush.msra.mxu0 %v3782
      %3870 = vmatpush.msra.mxu0 %v3780
      %3871 = vmatmul.f32.gmra.mxu0 %v3802
      %v3872 = vpop.f32.mrf.mxu0
      %v3873 = vadd.f32 0.0, %v3872
      %3874 = vmatmul.f32.gmra.mxu0 %v3805
      %v3875 = vpop.f32.mrf.mxu0
      %v3876 = vadd.f32 0.0, %v3875
      %3877 = vmatmul.f32.gmra.mxu0 %v3808
      %v3878 = vpop.f32.mrf.mxu0
      %v3879 = vadd.f32 0.0, %v3878
      %3880 = vmatmul.f32.gmra.mxu0 %v3811
      %v3881 = vpop.f32.mrf.mxu0
      %v3882 = vadd.f32 0.0, %v3881
      %3883 = vmatmul.f32.gmra.mxu0 %v3814
      %v3884 = vpop.f32.mrf.mxu0
      %v3885 = vadd.f32 0.0, %v3884
      %3886 = vmatmul.f32.gmra.mxu0 %v3817
      %v3887 = vpop.f32.mrf.mxu0
      %v3888 = vadd.f32 0.0, %v3887
      %3889 = vmatmul.f32.gmra.mxu0 %v3820
      %v3890 = vpop.f32.mrf.mxu0
      %v3891 = vadd.f32 0.0, %v3890
      %3892 = vmatmul.f32.gmra.mxu0 %v3823
      %v3893 = vpop.f32.mrf.mxu0
      %v3894 = vadd.f32 0.0, %v3893
      %3895 = vmatmul.f32.gmra.mxu0 %v3826
      %v3896 = vpop.f32.mrf.mxu0
      %v3897 = vadd.f32 0.0, %v3896
      %3898 = vmatmul.f32.gmra.mxu0 %v3829
      %v3899 = vpop.f32.mrf.mxu0
      %v3900 = vadd.f32 0.0, %v3899
      %3901 = vmatmul.f32.gmra.mxu0 %v3832
      %v3902 = vpop.f32.mrf.mxu0
      %v3903 = vadd.f32 0.0, %v3902
      %3904 = vmatmul.f32.gmra.mxu0 %v3835
      %v3905 = vpop.f32.mrf.mxu0
      %v3906 = vadd.f32 0.0, %v3905
      %3907 = vmatmul.f32.gmra.mxu0 %v3838
      %v3908 = vpop.f32.mrf.mxu0
      %v3909 = vadd.f32 0.0, %v3908
      %3910 = vmatmul.f32.gmra.mxu0 %v3841
      %v3911 = vpop.f32.mrf.mxu0
      %v3912 = vadd.f32 0.0, %v3911
      %3913 = vmatmul.f32.gmra.mxu0 %v3844
      %v3914 = vpop.f32.mrf.mxu0
      %v3915 = vadd.f32 0.0, %v3914
      %3916 = vmatmul.f32.gmra.mxu0 %v3847
      %v3917 = vpop.f32.mrf.mxu0
      %v3918 = vadd.f32 0.0, %v3917
      %3919 = vmatmul.f32.gmra.mxu0 %v3850
      %v3920 = vpop.f32.mrf.mxu0
      %v3921 = vadd.f32 0.0, %v3920
      %3922 = vmatmul.f32.gmra.mxu0 %v3853
      %v3923 = vpop.f32.mrf.mxu0
      %v3924 = vadd.f32 0.0, %v3923
      %3925 = vdwg.mxu0
      %v3926 = vld [vmem:[%s53] sm:$0x1]
      %v3927 = vld [vmem:[%s53 + $0x1] sm:$0x1]
      %v3928 = vld [vmem:[%s53 + $0x2] sm:$0x1]
      %v3929 = vld [vmem:[%s53 + $0x3] sm:$0x1]
      %v3930 = vld [vmem:[%s53 + $0x4] sm:$0x1]
      %v3931 = vld [vmem:[%s53 + $0x5] sm:$0x1]
      %v3932 = vld [vmem:[%s53 + $0x6] sm:$0x1]
      %v3933 = vld [vmem:[%s53 + $0x7] sm:$0x1]
      %v3934 = vld [vmem:[%s53 + $0x8] sm:$0x1]
      %v3936 = vperm.slane %v3926, 0
      %v3938 = vmul.f32 %v3873, %v3936
      %v3939 = vmul.f32 %v3876, %v3936
      %v3941 = vperm.slane %v3927, 0
      %v3943 = vmul.f32 %v3879, %v3941
      %v3944 = vmul.f32 %v3882, %v3941
      %v3945 = vadd.f32 %v3938, %v3943
      %v3946 = vadd.f32 %v3939, %v3944
      %v3948 = vperm.slane %v3928, 0
      %v3950 = vmul.f32 %v3885, %v3948
      %v3951 = vmul.f32 %v3888, %v3948
      %v3952 = vadd.f32 %v3945, %v3950
      %v3953 = vadd.f32 %v3946, %v3951
      %v3955 = vperm.slane %v3929, 0
      %v3957 = vmul.f32 %v3891, %v3955
      %v3958 = vmul.f32 %v3894, %v3955
      %v3959 = vadd.f32 %v3952, %v3957
      %v3960 = vadd.f32 %v3953, %v3958
      %v3962 = vperm.slane %v3930, 0
      %v3964 = vmul.f32 %v3897, %v3962
      %v3965 = vmul.f32 %v3900, %v3962
      %v3966 = vadd.f32 %v3959, %v3964
      %v3967 = vadd.f32 %v3960, %v3965
      %v3969 = vperm.slane %v3931, 0
      %v3971 = vmul.f32 %v3903, %v3969
      %v3972 = vmul.f32 %v3906, %v3969
      %v3973 = vadd.f32 %v3966, %v3971
      %v3974 = vadd.f32 %v3967, %v3972
      %v3976 = vperm.slane %v3932, 0
      %v3978 = vmul.f32 %v3909, %v3976
      %v3979 = vmul.f32 %v3912, %v3976
      %v3980 = vadd.f32 %v3973, %v3978
      %v3981 = vadd.f32 %v3974, %v3979
      %v3983 = vperm.slane %v3933, 0
      %v3985 = vmul.f32 %v3915, %v3983
      %v3986 = vmul.f32 %v3918, %v3983
      %v3987 = vadd.f32 %v3980, %v3985
      %v3988 = vadd.f32 %v3981, %v3986
      %v3990 = vperm.slane %v3934, 0
      %v3992 = vmul.f32 %v3921, %v3990
      %v3993 = vmul.f32 %v3924, %v3990
      %v3994 = vadd.f32 %v3987, %v3992
      %v3995 = vadd.f32 %v3988, %v3993
      %v3996 = vld [vmem:[%s55] sm:$0x1]
      %v3998 = vperm.slane %v3996, 0
      %v4000 = vadd.f32 %v3994, %v3998
      %v4001 = vadd.f32 %v3995, %v3998
      %v4002 = vmax.f32 %v4000, 0.0
      %v4003 = vmax.f32 %v4001, 0.0
      %v4004 = vpack.c.bf16 %v4003, %v4002
      %v4005 = vld [vmem:[%s57] sm:$0xf]
      %v4006 = vld [vmem:[%s57 + $0x4] sm:$0xf]
      %v4007 = vld [vmem:[%s57 + $0x8] sm:$0xf]
      %v4008 = vld [vmem:[%s57 + $0xc] sm:$0xf]
      %v4009 = vld [vmem:[%s57 + $0x10] sm:$0xf]
      %v4010 = vld [vmem:[%s57 + $0x14] sm:$0xf]
      %v4011 = vld [vmem:[%s57 + $0x18] sm:$0xf]
      %v4012 = vld [vmem:[%s57 + $0x1c] sm:$0xf]
      %v4013 = vld [vmem:[%s57 + $0x20] sm:$0xf]
      %v4014 = vld [vmem:[%s57 + $0x24] sm:$0xf]
      %v4015 = vld [vmem:[%s57 + $0x28] sm:$0xf]
      %v4016 = vld [vmem:[%s57 + $0x2c] sm:$0xf]
      %v4017 = vld [vmem:[%s57 + $0x30] sm:$0xf]
      %v4018 = vld [vmem:[%s57 + $0x34] sm:$0xf]
      %v4019 = vld [vmem:[%s57 + $0x38] sm:$0xf]
      %v4020 = vld [vmem:[%s57 + $0x3c] sm:$0xf]
      %v4021 = vld [vmem:[%s59] sm:$0x1]
      %v4023 = vperm.slane %v4021, 0
      %v4041 = vunpack.c.l.b16 %v4005
      %v4042 = vunpack.c.l.b16 %v4006
      %v4043 = vunpack.c.l.b16 %v4007
      %v4044 = vunpack.c.l.b16 %v4008
      %v4045 = vunpack.c.l.b16 %v4009
      %v4046 = vunpack.c.l.b16 %v4010
      %v4047 = vunpack.c.l.b16 %v4011
      %v4048 = vunpack.c.l.b16 %v4012
      %v4049 = vunpack.c.l.b16 %v4013
      %v4050 = vunpack.c.l.b16 %v4014
      %v4051 = vunpack.c.l.b16 %v4015
      %v4052 = vunpack.c.l.b16 %v4016
      %v4053 = vunpack.c.l.b16 %v4017
      %v4054 = vunpack.c.l.b16 %v4018
      %v4055 = vunpack.c.l.b16 %v4019
      %v4056 = vunpack.c.l.b16 %v4020
      %v4057 = vpack.c.b16 %v4042, %v4041
      %v4058 = vpack.c.b16 %v4044, %v4043
      %v4059 = vpack.c.b16 %v4046, %v4045
      %v4060 = vpack.c.b16 %v4048, %v4047
      %v4061 = vpack.c.b16 %v4050, %v4049
      %v4062 = vpack.c.b16 %v4052, %v4051
      %v4063 = vpack.c.b16 %v4054, %v4053
      %v4064 = vpack.c.b16 %v4056, %v4055
      %4073 = vmatpush.bf16.msra.mxu0 %v4064
      %4074 = vmatpush.bf16.msra.mxu0 %v4063
      %4075 = vmatpush.bf16.msra.mxu0 %v4062
      %4076 = vmatpush.bf16.msra.mxu0 %v4061
      %4077 = vmatpush.bf16.msra.mxu0 %v4060
      %4078 = vmatpush.bf16.msra.mxu0 %v4059
      %4079 = vmatpush.bf16.msra.mxu0 %v4058
      %4080 = vmatpush.bf16.msra.mxu0 %v4057
      %4081 = vmatmul.bf16.gmra.mxu0 %v4004
      %v4082 = vpop.f32.mrf.mxu0
      %v4083 = vadd.f32 %v4023, %v4082
      %v4084 = vpop.f32.mrf.mxu0
      %v4085 = vadd.f32 %v4023, %v4084
      %4086 = vdwg.mxu0
      %v4087 = vmax.f32 %v4083, 0.0
      %v4088 = vmax.f32 %v4085, 0.0
      %v4089 = vpack.c.bf16 %v3781, %v3779
      %v4090 = vpack.c.bf16 %v4088, %v4087
      %v4091 = vld [vmem:[%s61] sm:$0xf]
      %v4092 = vld [vmem:[%s61 + $0x4] sm:$0xf]
      %v4093 = vld [vmem:[%s61 + $0x8] sm:$0xf]
      %v4094 = vld [vmem:[%s61 + $0xc] sm:$0xf]
      %v4095 = vld [vmem:[%s61 + $0x10] sm:$0xf]
      %v4096 = vld [vmem:[%s61 + $0x14] sm:$0xf]
      %v4097 = vld [vmem:[%s61 + $0x18] sm:$0xf]
      %v4098 = vld [vmem:[%s61 + $0x1c] sm:$0xf]
      %v4099 = vld [vmem:[%s61 + $0x20] sm:$0xf]
      %v4100 = vld [vmem:[%s61 + $0x24] sm:$0xf]
      %v4101 = vld [vmem:[%s61 + $0x28] sm:$0xf]
      %v4102 = vld [vmem:[%s61 + $0x2c] sm:$0xf]
      %v4103 = vld [vmem:[%s61 + $0x30] sm:$0xf]
      %v4104 = vld [vmem:[%s61 + $0x34] sm:$0xf]
      %v4105 = vld [vmem:[%s61 + $0x38] sm:$0xf]
      %v4106 = vld [vmem:[%s61 + $0x3c] sm:$0xf]
      %v4107 = vld [vmem:[%s61 + $0x40] sm:$0xf]
      %v4108 = vld [vmem:[%s61 + $0x44] sm:$0xf]
      %v4109 = vld [vmem:[%s61 + $0x48] sm:$0xf]
      %v4110 = vld [vmem:[%s61 + $0x4c] sm:$0xf]
      %v4111 = vld [vmem:[%s61 + $0x50] sm:$0xf]
      %v4112 = vld [vmem:[%s61 + $0x54] sm:$0xf]
      %v4113 = vld [vmem:[%s61 + $0x58] sm:$0xf]
      %v4114 = vld [vmem:[%s61 + $0x5c] sm:$0xf]
      %v4115 = vld [vmem:[%s61 + $0x60] sm:$0xf]
      %v4116 = vld [vmem:[%s61 + $0x64] sm:$0xf]
      %v4117 = vld [vmem:[%s61 + $0x68] sm:$0xf]
      %v4118 = vld [vmem:[%s61 + $0x6c] sm:$0xf]
      %v4119 = vld [vmem:[%s61 + $0x70] sm:$0xf]
      %v4120 = vld [vmem:[%s61 + $0x74] sm:$0xf]
      %v4121 = vld [vmem:[%s61 + $0x78] sm:$0xf]
      %v4122 = vld [vmem:[%s61 + $0x7c] sm:$0xf]
      %v4123 = vld [vmem:[%s63] sm:$0x1]
      %v4125 = vperm.slane %v4123, 0
      %v4159 = vunpack.c.l.b16 %v4091
      %v4160 = vunpack.c.l.b16 %v4092
      %v4161 = vunpack.c.l.b16 %v4093
      %v4162 = vunpack.c.l.b16 %v4094
      %v4163 = vunpack.c.l.b16 %v4095
      %v4164 = vunpack.c.l.b16 %v4096
      %v4165 = vunpack.c.l.b16 %v4097
      %v4166 = vunpack.c.l.b16 %v4098
      %v4167 = vunpack.c.l.b16 %v4099
      %v4168 = vunpack.c.l.b16 %v4100
      %v4169 = vunpack.c.l.b16 %v4101
      %v4170 = vunpack.c.l.b16 %v4102
      %v4171 = vunpack.c.l.b16 %v4103
      %v4172 = vunpack.c.l.b16 %v4104
      %v4173 = vunpack.c.l.b16 %v4105
      %v4174 = vunpack.c.l.b16 %v4106
      %v4175 = vunpack.c.l.b16 %v4107
      %v4176 = vunpack.c.l.b16 %v4108
      %v4177 = vunpack.c.l.b16 %v4109
      %v4178 = vunpack.c.l.b16 %v4110
      %v4179 = vunpack.c.l.b16 %v4111
      %v4180 = vunpack.c.l.b16 %v4112
      %v4181 = vunpack.c.l.b16 %v4113
      %v4182 = vunpack.c.l.b16 %v4114
      %v4183 = vunpack.c.l.b16 %v4115
      %v4184 = vunpack.c.l.b16 %v4116
      %v4185 = vunpack.c.l.b16 %v4117
      %v4186 = vunpack.c.l.b16 %v4118
      %v4187 = vunpack.c.l.b16 %v4119
      %v4188 = vunpack.c.l.b16 %v4120
      %v4189 = vunpack.c.l.b16 %v4121
      %v4190 = vunpack.c.l.b16 %v4122
      %v4191 = vpack.c.b16 %v4160, %v4159
      %v4192 = vpack.c.b16 %v4162, %v4161
      %v4193 = vpack.c.b16 %v4164, %v4163
      %v4194 = vpack.c.b16 %v4166, %v4165
      %v4195 = vpack.c.b16 %v4168, %v4167
      %v4196 = vpack.c.b16 %v4170, %v4169
      %v4197 = vpack.c.b16 %v4172, %v4171
      %v4198 = vpack.c.b16 %v4174, %v4173
      %v4199 = vpack.c.b16 %v4176, %v4175
      %v4200 = vpack.c.b16 %v4178, %v4177
      %v4201 = vpack.c.b16 %v4180, %v4179
      %v4202 = vpack.c.b16 %v4182, %v4181
      %v4203 = vpack.c.b16 %v4184, %v4183
      %v4204 = vpack.c.b16 %v4186, %v4185
      %v4205 = vpack.c.b16 %v4188, %v4187
      %v4206 = vpack.c.b16 %v4190, %v4189
      %4223 = vmatpush.bf16.msra.mxu0 %v4198
      %4224 = vmatpush.bf16.msra.mxu0 %v4197
      %4225 = vmatpush.bf16.msra.mxu0 %v4196
      %4226 = vmatpush.bf16.msra.mxu0 %v4195
      %4227 = vmatpush.bf16.msra.mxu0 %v4194
      %4228 = vmatpush.bf16.msra.mxu0 %v4193
      %4229 = vmatpush.bf16.msra.mxu0 %v4192
      %4230 = vmatpush.bf16.msra.mxu0 %v4191
      %4231 = vmatmul.bf16.gmra.mxu0 %v4089
      %v4232 = vpop.f32.mrf.mxu0
      %v4233 = vadd.f32 %v4125, %v4232
      %v4234 = vpop.f32.mrf.mxu0
      %v4235 = vadd.f32 %v4125, %v4234
      %4236 = vdwg.mxu0
      %4237 = vmatpush.bf16.msra.mxu0 %v4206
      %4238 = vmatpush.bf16.msra.mxu0 %v4205
      %4239 = vmatpush.bf16.msra.mxu0 %v4204
      %4240 = vmatpush.bf16.msra.mxu0 %v4203
      %4241 = vmatpush.bf16.msra.mxu0 %v4202
      %4242 = vmatpush.bf16.msra.mxu0 %v4201
      %4243 = vmatpush.bf16.msra.mxu0 %v4200
      %4244 = vmatpush.bf16.msra.mxu0 %v4199
      %4245 = vmatmul.bf16.gmra.mxu0 %v4090
      %v4246 = vpop.f32.mrf.mxu0
      %v4247 = vadd.f32 %v4233, %v4246
      %v4248 = vpop.f32.mrf.mxu0
      %v4249 = vadd.f32 %v4235, %v4248
      %4250 = vdwg.mxu0
      %v4251 = vmax.f32 %v4247, 0.0
      %v4252 = vmax.f32 %v4249, 0.0
      %v4253 = vpack.c.bf16 %v4252, %v4251
      %v4254 = vld [vmem:[%s65] sm:$0xff]
      %v4255 = vld [vmem:[%s65 + $0x8] sm:$0xff]
      %v4256 = vld [vmem:[%s65 + $0x10] sm:$0xff]
      %v4257 = vld [vmem:[%s65 + $0x18] sm:$0xff]
      %v4258 = vld [vmem:[%s65 + $0x20] sm:$0xff]
      %v4259 = vld [vmem:[%s65 + $0x28] sm:$0xff]
      %v4260 = vld [vmem:[%s65 + $0x30] sm:$0xff]
      %v4261 = vld [vmem:[%s65 + $0x38] sm:$0xff]
      %v4262 = vld [vmem:[%s67] sm:$0x3]
      %v4264 = vperm.slane %v4262, 0
      %v4265 = vperm.slane %v4262, 1
      %v4276 = vunpack.c.l.b16 %v4254
      %v4277 = vunpack.c.h.b16 %v4254
      %v4278 = vunpack.c.l.b16 %v4255
      %v4279 = vunpack.c.h.b16 %v4255
      %v4280 = vunpack.c.l.b16 %v4256
      %v4281 = vunpack.c.h.b16 %v4256
      %v4282 = vunpack.c.l.b16 %v4257
      %v4283 = vunpack.c.h.b16 %v4257
      %v4284 = vunpack.c.l.b16 %v4258
      %v4285 = vunpack.c.h.b16 %v4258
      %v4286 = vunpack.c.l.b16 %v4259
      %v4287 = vunpack.c.h.b16 %v4259
      %v4288 = vunpack.c.l.b16 %v4260
      %v4289 = vunpack.c.h.b16 %v4260
      %v4290 = vunpack.c.l.b16 %v4261
      %v4291 = vunpack.c.h.b16 %v4261
      %v4292 = vpack.c.b16 %v4278, %v4276
      %v4293 = vpack.c.b16 %v4279, %v4277
      %v4294 = vpack.c.b16 %v4282, %v4280
      %v4295 = vpack.c.b16 %v4283, %v4281
      %v4296 = vpack.c.b16 %v4286, %v4284
      %v4297 = vpack.c.b16 %v4287, %v4285
      %v4298 = vpack.c.b16 %v4290, %v4288
      %v4299 = vpack.c.b16 %v4291, %v4289
      %v4309 = vsel %vm1934, %v4253, 0
      %4311 = vmatpush.bf16.msra.mxu0 0
      %4312 = vmatpush.bf16.msra.mxu0 0
      %4313 = vmatpush.bf16.msra.mxu0 0
      %4314 = vmatpush.bf16.msra.mxu0 0
      %4315 = vmatpush.bf16.msra.mxu0 %v4298
      %4316 = vmatpush.bf16.msra.mxu0 %v4296
      %4317 = vmatpush.bf16.msra.mxu0 %v4294
      %4318 = vmatpush.bf16.msra.mxu0 %v4292
      %4319 = vmatmul.bf16.gmra.mxu0 %v4309
      %v4320 = vpop.f32.mrf.mxu0
      %v4321 = vadd.f32 %v4264, %v4320
      %v4322 = vpop.f32.mrf.mxu0
      %v4323 = vadd.f32 %v4264, %v4322
      %4324 = vdwg.mxu0
      %4325 = vmatpush.bf16.msra.mxu0 0
      %4326 = vmatpush.bf16.msra.mxu0 0
      %4327 = vmatpush.bf16.msra.mxu0 0
      %4328 = vmatpush.bf16.msra.mxu0 0
      %4329 = vmatpush.bf16.msra.mxu0 %v4299
      %4330 = vmatpush.bf16.msra.mxu0 %v4297
      %4331 = vmatpush.bf16.msra.mxu0 %v4295
      %4332 = vmatpush.bf16.msra.mxu0 %v4293
      %4333 = vmatmul.bf16.gmra.mxu0 %v4309
      %v4334 = vpop.f32.mrf.mxu0
      %v4335 = vadd.f32 %v4265, %v4334
      %v4336 = vpop.f32.mrf.mxu0
      %v4337 = vadd.f32 %v4265, %v4336
      %4338 = vdwg.mxu0
      %v4339 = vmax.f32 %v4321, 0.0
      %v4340 = vmax.f32 %v4335, 0.0
      %v4341 = vmax.f32 %v4323, 0.0
      %v4342 = vmax.f32 %v4337, 0.0
      %4343 = vmatpush.msra.mxu0 0.0
      %4344 = vmatpush.msra.mxu0 0.0
      %4345 = vmatpush.msra.mxu0 0.0
      %4346 = vmatpush.msra.mxu0 0.0
      %4347 = vmatpush.msra.mxu0 0.0
      %4348 = vmatpush.msra.mxu0 0.0
      %4349 = vmatpush.msra.mxu0 0.0
      %4350 = vmatpush.msra.mxu0 0.0
      %4351 = vmatpush.msra.mxu0 0.0
      %4352 = vmatpush.msra.mxu0 0.0
      %4353 = vmatpush.msra.mxu0 0.0
      %4354 = vmatpush.msra.mxu0 0.0
      %4355 = vmatpush.msra.mxu0 0.0
      %4356 = vmatpush.msra.mxu0 0.0
      %4357 = vmatpush.msra.mxu0 %v4342
      %4358 = vmatpush.msra.mxu0 %v4340
      %4359 = vmatmul.f32.gmra.mxu0 %v3802
      %v4360 = vpop.f32.mrf.mxu0
      %v4361 = vadd.f32 0.0, %v4360
      %4362 = vmatmul.f32.gmra.mxu0 %v3805
      %v4363 = vpop.f32.mrf.mxu0
      %v4364 = vadd.f32 0.0, %v4363
      %4365 = vmatmul.f32.gmra.mxu0 %v3808
      %v4366 = vpop.f32.mrf.mxu0
      %v4367 = vadd.f32 0.0, %v4366
      %4368 = vmatmul.f32.gmra.mxu0 %v3811
      %v4369 = vpop.f32.mrf.mxu0
      %v4370 = vadd.f32 0.0, %v4369
      %4371 = vmatmul.f32.gmra.mxu0 %v3814
      %v4372 = vpop.f32.mrf.mxu0
      %v4373 = vadd.f32 0.0, %v4372
      %4374 = vmatmul.f32.gmra.mxu0 %v3817
      %v4375 = vpop.f32.mrf.mxu0
      %v4376 = vadd.f32 0.0, %v4375
      %4377 = vmatmul.f32.gmra.mxu0 %v3820
      %v4378 = vpop.f32.mrf.mxu0
      %v4379 = vadd.f32 0.0, %v4378
      %4380 = vmatmul.f32.gmra.mxu0 %v3823
      %v4381 = vpop.f32.mrf.mxu0
      %v4382 = vadd.f32 0.0, %v4381
      %4383 = vmatmul.f32.gmra.mxu0 %v3826
      %v4384 = vpop.f32.mrf.mxu0
      %v4385 = vadd.f32 0.0, %v4384
      %4386 = vmatmul.f32.gmra.mxu0 %v3829
      %v4387 = vpop.f32.mrf.mxu0
      %v4388 = vadd.f32 0.0, %v4387
      %4389 = vmatmul.f32.gmra.mxu0 %v3832
      %v4390 = vpop.f32.mrf.mxu0
      %v4391 = vadd.f32 0.0, %v4390
      %4392 = vmatmul.f32.gmra.mxu0 %v3835
      %v4393 = vpop.f32.mrf.mxu0
      %v4394 = vadd.f32 0.0, %v4393
      %4395 = vmatmul.f32.gmra.mxu0 %v3838
      %v4396 = vpop.f32.mrf.mxu0
      %v4397 = vadd.f32 0.0, %v4396
      %4398 = vmatmul.f32.gmra.mxu0 %v3841
      %v4399 = vpop.f32.mrf.mxu0
      %v4400 = vadd.f32 0.0, %v4399
      %4401 = vmatmul.f32.gmra.mxu0 %v3844
      %v4402 = vpop.f32.mrf.mxu0
      %v4403 = vadd.f32 0.0, %v4402
      %4404 = vmatmul.f32.gmra.mxu0 %v3847
      %v4405 = vpop.f32.mrf.mxu0
      %v4406 = vadd.f32 0.0, %v4405
      %4407 = vmatmul.f32.gmra.mxu0 %v3850
      %v4408 = vpop.f32.mrf.mxu0
      %v4409 = vadd.f32 0.0, %v4408
      %4410 = vmatmul.f32.gmra.mxu0 %v3853
      %v4411 = vpop.f32.mrf.mxu0
      %v4412 = vadd.f32 0.0, %v4411
      %4413 = vdwg.mxu0
      %v4414 = vld [vmem:[%s69] sm:$0x1]
      %v4415 = vld [vmem:[%s69 + $0x1] sm:$0x1]
      %v4416 = vld [vmem:[%s69 + $0x2] sm:$0x1]
      %v4417 = vld [vmem:[%s69 + $0x3] sm:$0x1]
      %v4418 = vld [vmem:[%s69 + $0x4] sm:$0x1]
      %v4419 = vld [vmem:[%s69 + $0x5] sm:$0x1]
      %v4420 = vld [vmem:[%s69 + $0x6] sm:$0x1]
      %v4421 = vld [vmem:[%s69 + $0x7] sm:$0x1]
      %v4422 = vld [vmem:[%s69 + $0x8] sm:$0x1]
      %v4424 = vperm.slane %v4414, 0
      %v4426 = vmul.f32 %v4361, %v4424
      %v4427 = vmul.f32 %v4364, %v4424
      %v4429 = vperm.slane %v4415, 0
      %v4431 = vmul.f32 %v4367, %v4429
      %v4432 = vmul.f32 %v4370, %v4429
      %v4433 = vadd.f32 %v4426, %v4431
      %v4434 = vadd.f32 %v4427, %v4432
      %v4436 = vperm.slane %v4416, 0
      %v4438 = vmul.f32 %v4373, %v4436
      %v4439 = vmul.f32 %v4376, %v4436
      %v4440 = vadd.f32 %v4433, %v4438
      %v4441 = vadd.f32 %v4434, %v4439
      %v4443 = vperm.slane %v4417, 0
      %v4445 = vmul.f32 %v4379, %v4443
      %v4446 = vmul.f32 %v4382, %v4443
      %v4447 = vadd.f32 %v4440, %v4445
      %v4448 = vadd.f32 %v4441, %v4446
      %v4450 = vperm.slane %v4418, 0
      %v4452 = vmul.f32 %v4385, %v4450
      %v4453 = vmul.f32 %v4388, %v4450
      %v4454 = vadd.f32 %v4447, %v4452
      %v4455 = vadd.f32 %v4448, %v4453
      %v4457 = vperm.slane %v4419, 0
      %v4459 = vmul.f32 %v4391, %v4457
      %v4460 = vmul.f32 %v4394, %v4457
      %v4461 = vadd.f32 %v4454, %v4459
      %v4462 = vadd.f32 %v4455, %v4460
      %v4464 = vperm.slane %v4420, 0
      %v4466 = vmul.f32 %v4397, %v4464
      %v4467 = vmul.f32 %v4400, %v4464
      %v4468 = vadd.f32 %v4461, %v4466
      %v4469 = vadd.f32 %v4462, %v4467
      %v4471 = vperm.slane %v4421, 0
      %v4473 = vmul.f32 %v4403, %v4471
      %v4474 = vmul.f32 %v4406, %v4471
      %v4475 = vadd.f32 %v4468, %v4473
      %v4476 = vadd.f32 %v4469, %v4474
      %v4478 = vperm.slane %v4422, 0
      %v4480 = vmul.f32 %v4409, %v4478
      %v4481 = vmul.f32 %v4412, %v4478
      %v4482 = vadd.f32 %v4475, %v4480
      %v4483 = vadd.f32 %v4476, %v4481
      %v4484 = vld [vmem:[%s71] sm:$0x1]
      %v4486 = vperm.slane %v4484, 0
      %v4488 = vadd.f32 %v4482, %v4486
      %v4489 = vadd.f32 %v4483, %v4486
      %v4490 = vmax.f32 %v4488, 0.0
      %v4491 = vmax.f32 %v4489, 0.0
      %v4492 = vpack.c.bf16 %v4491, %v4490
      %v4493 = vld [vmem:[%s73] sm:$0xf]
      %v4494 = vld [vmem:[%s73 + $0x4] sm:$0xf]
      %v4495 = vld [vmem:[%s73 + $0x8] sm:$0xf]
      %v4496 = vld [vmem:[%s73 + $0xc] sm:$0xf]
      %v4497 = vld [vmem:[%s73 + $0x10] sm:$0xf]
      %v4498 = vld [vmem:[%s73 + $0x14] sm:$0xf]
      %v4499 = vld [vmem:[%s73 + $0x18] sm:$0xf]
      %v4500 = vld [vmem:[%s73 + $0x1c] sm:$0xf]
      %v4501 = vld [vmem:[%s73 + $0x20] sm:$0xf]
      %v4502 = vld [vmem:[%s73 + $0x24] sm:$0xf]
      %v4503 = vld [vmem:[%s73 + $0x28] sm:$0xf]
      %v4504 = vld [vmem:[%s73 + $0x2c] sm:$0xf]
      %v4505 = vld [vmem:[%s73 + $0x30] sm:$0xf]
      %v4506 = vld [vmem:[%s73 + $0x34] sm:$0xf]
      %v4507 = vld [vmem:[%s73 + $0x38] sm:$0xf]
      %v4508 = vld [vmem:[%s73 + $0x3c] sm:$0xf]
      %v4509 = vld [vmem:[%s75] sm:$0x1]
      %v4511 = vperm.slane %v4509, 0
      %v4529 = vunpack.c.l.b16 %v4493
      %v4530 = vunpack.c.l.b16 %v4494
      %v4531 = vunpack.c.l.b16 %v4495
      %v4532 = vunpack.c.l.b16 %v4496
      %v4533 = vunpack.c.l.b16 %v4497
      %v4534 = vunpack.c.l.b16 %v4498
      %v4535 = vunpack.c.l.b16 %v4499
      %v4536 = vunpack.c.l.b16 %v4500
      %v4537 = vunpack.c.l.b16 %v4501
      %v4538 = vunpack.c.l.b16 %v4502
      %v4539 = vunpack.c.l.b16 %v4503
      %v4540 = vunpack.c.l.b16 %v4504
      %v4541 = vunpack.c.l.b16 %v4505
      %v4542 = vunpack.c.l.b16 %v4506
      %v4543 = vunpack.c.l.b16 %v4507
      %v4544 = vunpack.c.l.b16 %v4508
      %v4545 = vpack.c.b16 %v4530, %v4529
      %v4546 = vpack.c.b16 %v4532, %v4531
      %v4547 = vpack.c.b16 %v4534, %v4533
      %v4548 = vpack.c.b16 %v4536, %v4535
      %v4549 = vpack.c.b16 %v4538, %v4537
      %v4550 = vpack.c.b16 %v4540, %v4539
      %v4551 = vpack.c.b16 %v4542, %v4541
      %v4552 = vpack.c.b16 %v4544, %v4543
      %4561 = vmatpush.bf16.msra.mxu0 %v4552
      %4562 = vmatpush.bf16.msra.mxu0 %v4551
      %4563 = vmatpush.bf16.msra.mxu0 %v4550
      %4564 = vmatpush.bf16.msra.mxu0 %v4549
      %4565 = vmatpush.bf16.msra.mxu0 %v4548
      %4566 = vmatpush.bf16.msra.mxu0 %v4547
      %4567 = vmatpush.bf16.msra.mxu0 %v4546
      %4568 = vmatpush.bf16.msra.mxu0 %v4545
      %4569 = vmatmul.bf16.gmra.mxu0 %v4492
      %v4570 = vpop.f32.mrf.mxu0
      %v4571 = vadd.f32 %v4511, %v4570
      %v4572 = vpop.f32.mrf.mxu0
      %v4573 = vadd.f32 %v4511, %v4572
      %4574 = vdwg.mxu0
      %v4575 = vmax.f32 %v4571, 0.0
      %v4576 = vmax.f32 %v4573, 0.0
      %v4577 = vadd.f32 %v4339, %v3779
      %v4578 = vadd.f32 %v4575, %v4087
      %v4579 = vadd.f32 %v4341, %v3781
      %v4580 = vadd.f32 %v4576, %v4088
      %4581 = vst [vmem:[%s1154] sm:$0xff] %v4577
      %4582 = vst [vmem:[%s1154 + $0x8] sm:$0xff] %v4578
      %4583 = vst [vmem:[%s1154 + $0x10] sm:$0xff] %v4579
      %4584 = vst [vmem:[%s1154 + $0x18] sm:$0xff] %v4580
      %p4585 = scmp.lt.s32.totalorder %s88, 1
      %s4586 = scalar_select %p4585, %s88, 1
      %s4587 = smul.addr %s4586, 4
      %s4588 = smul.addr %s4587, 8
      %s4589 = scalar_lea.vmem %s77, %s4588
      // Predicated region
      $region173: #{_lambda_.1} parent=171 // pred_check
        %p4590 = pneg %p909
      $region174: #{_lambda_.1} parent=171 // pred_check_branch
        %4592 = sbr.rel (%p4590) target = $region176
      $region175: #{_lambda_.1} parent=171 // pred_region
        _
      $region176: #{_lambda_.1} parent=171 // pred_fallthru
        _
    $region172: #{_lambda_.1} parent=5 // pred_fallthru
      _
    %p4593 = scmp.le.s32.totalorder 2, %s83
    // Predicated region
    $region177: #{_lambda_.1} parent=5 // pred_check
      %p4594 = pneg %p4593
    $region178: #{_lambda_.1} parent=5 // pred_check_branch
      %4596 = sbr.rel (%p4594) target = $region180
    $region179: #{_lambda_.1} parent=5 // pred_region
      %s4597 = ssub.s32 %s83, 2
      // Predicated region
      $region181: #{_lambda_.1} parent=179 // pred_check
        %p4598 = pneg %p915
      $region182: #{_lambda_.1} parent=179 // pred_check_branch
        %4600 = sbr.rel (%p4598) target = $region184
      $region183: #{_lambda_.1} parent=179 // pred_region
        %p4601 = scmp.lt.s32.totalorder %s89, 1
        %s4602 = scalar_select %p4601, %s89, 1
        %s4603 = smul.addr %s4602, 4
        %s4604 = smul.addr %s4603, 8
        %s4605 = scalar_lea.vmem %s77, %s4604
      $region184: #{_lambda_.1} parent=179 // pred_fallthru
        _
    $region180: #{_lambda_.1} parent=5 // pred_fallthru
      _
  $region6: #{_lambda_.1} parent=0 // loop_footer
    %s87 = sadd.s32 1, %s83
  $region7: #{_lambda_.1} parent=0 // loop_footer_branch
    %82 = sbr.rel target = $region3
  $region8: #{_lambda_.1} parent=0 // loop_exit
    _

</llo_original>
